<compile_context>
chip_gen: v7x
topology: tpu7x:2x2x1
jax: 0.10.0
libtpu: 0.0.40
codegen_flags: <defaults>
</compile_context>

<pallas_src>
import functools

import numpy as np
import jax
import jax.numpy as jnp
from jax import lax
from jax.experimental import pallas as pl
from jax.experimental.pallas import tpu as pltpu

BN_EPS = 1e-3  # BatchNorm3d(eps=0.001) everywhere in the reference module


def _round_up(x, m):
    return ((x + m - 1) // m) * m


# ----------------------------------------------------------------------------
# Fused Pallas kernel
# ----------------------------------------------------------------------------
def _basic_block_kernel(x_ref, mask_ref, w1_ref, w2_ref, wd_ref,
                        g1_ref, b1_ref, g2_ref, b2_ref, gd_ref, bd_ref,
                        o_ref, *, dhw, eps):
    """x_ref   : (N, Cin, S)        input, S = D*H*W
       mask_ref: (27, 1, N*S)       0/1 per-tap boundary masks
       w1_ref  : (Cout, 27*cin_p)   conv1 weights, contraction order (kd,kh,kw,c)
       w2_ref  : (Cout, 27*cmid_p)  conv2 weights
       wd_ref  : (Cout, cin_p)      1x1x1 downsample weights
       g*/b*   : (Cout, 1)          BN affine parameters
       o_ref   : (N, Cout, S)       output
    """
    N, _, S = x_ref.shape
    D, H, W = dhw
    NS = N * S
    cin_p = w1_ref.shape[1] // 27     # channel-padded Cin  (multiple of 8)
    cmid_p = w2_ref.shape[1] // 27    # channel-padded Cout (multiple of 8)

    def pad_rows(a, rows):
        if a.shape[0] == rows:
            return a
        zeros = jnp.zeros((rows - a.shape[0], a.shape[1]), a.dtype)
        return jnp.concatenate([a, zeros], axis=0)

    # Flatten the batch onto the lane axis: (cin_p, N*S), lane-dense.
    # x is loaded ONCE and shared between conv1 and the downsample path.
    xf = pad_rows(jnp.concatenate([x_ref[i] for i in range(N)], axis=1), cin_p)

    def im2col_3x3x3(feat):
        # feat: (C, NS) -> (27*C, NS), row order (kd, kh, kw, c).  Each tap is
        # a circular lane shift (pltpu.roll, XLU) times a 0/1 boundary mask.
        rows = []
        t = 0
        for kd in range(3):
            for kh in range(3):
                for kw in range(3):
                    off = (kd - 1) * H * W + (kh - 1) * W + (kw - 1)
                    if off == 0:
                        rows.append(feat)               # center tap, mask == 1
                    else:
                        shifted = pltpu.roll(feat, (-off) % NS, 1)
                        rows.append(shifted * mask_ref[t])
                    t += 1
        return jnp.concatenate(rows, axis=0)

    def bn(y, g, b):
        # Training-mode BatchNorm3d: per-channel stats over the lane axis
        # (= batch + spatial), biased variance.  Data never leaves VMEM.
        mean = jnp.mean(y, axis=1, keepdims=True)
        var = jnp.mean((y - mean) * (y - mean), axis=1, keepdims=True)
        return (y - mean) * lax.rsqrt(var + eps) * g + b

    # ---- c1 = conv3x3x3 -> BN -> ReLU    (one MXU dot, K = 27*cin_p) --------
    y1 = jnp.dot(w1_ref[...], im2col_3x3x3(xf),
                 preferred_element_type=jnp.float32)
    h1 = jnp.maximum(bn(y1, g1_ref[...], b1_ref[...]), 0.0)      # (Cout, NS)

    # ---- c2 = conv3x3x3  (its BN is fused with the residual tail below) ----
    y2 = jnp.dot(w2_ref[...], im2col_3x3x3(pad_rows(h1, cmid_p)),
                 preferred_element_type=jnp.float32)

    # ---- downsample = conv1x1x1 -> BN    (re-uses the already-loaded xf) ---
    yd = jnp.dot(wd_ref[...], xf, preferred_element_type=jnp.float32)
    res = bn(yd, gd_ref[...], bd_ref[...])

    # ---- out = ReLU(BN(y2) + res), lane-dense stores (last dim = S) --------
    out = jnp.maximum(bn(y2, g2_ref[...], b2_ref[...]) + res, 0.0)
    for i in range(N):
        o_ref[i] = out[:, i * S:(i + 1) * S]


# ----------------------------------------------------------------------------
# Wrapper
# ----------------------------------------------------------------------------
def _tap_masks(n, d, h, w):
    """0/1 masks (27, 1, n*d*h*w): 1 where the shifted tap stays inside the
    (d,h,w) volume of the SAME batch element, 0 where zero padding applies."""
    s = np.arange(n * d * h * w) % (d * h * w)
    di, hi, wi = s // (h * w), (s // w) % h, s % w
    masks = []
    for kd in range(3):
        for kh in range(3):
            for kw in range(3):
                dd, dh, dw = kd - 1, kh - 1, kw - 1
                m = ((di + dd >= 0) & (di + dd < d) &
                     (hi + dh >= 0) & (hi + dh < h) &
                     (wi + dw >= 0) & (wi + dw < w))
                masks.append(m.astype(np.float32))
    return jnp.asarray(np.stack(masks)[:, None, :])


def _flatten_conv_weight(w, cin_pad):
    """PyTorch layout (Cout, Cin, KD, KH, KW) -> (Cout, KD*KH*KW*cin_pad)."""
    co, ci, kd, kh, kw = w.shape
    w = jnp.transpose(w, (0, 2, 3, 4, 1))                  # (Co, KD, KH, KW, Ci)
    if ci < cin_pad:
        w = jnp.pad(w, ((0, 0), (0, 0), (0, 0), (0, 0), (0, cin_pad - ci)))
    return w.reshape(co, kd * kh * kw * cin_pad).astype(jnp.float32)


def basic_block_forward(x_ncdhw, p):
    """x: (N, Cin, D, H, W) NCDHW -> (N, Cout, D, H, W) NCDHW."""
    N, Cin, D, H, W = x_ncdhw.shape
    Cout = p["w1"].shape[0]
    S = D * H * W
    cin_p = _round_up(Cin, 8)
    cmid_p = _round_up(Cout, 8)

    x = x_ncdhw.reshape(N, Cin, S).astype(jnp.float32)      # free (contiguous)
    masks = _tap_masks(N, D, H, W)                          # (27, 1, N*S)
    w1 = _flatten_conv_weight(p["w1"], cin_p)               # (Cout, 27*cin_p)
    w2 = _flatten_conv_weight(p["w2"], cmid_p)              # (Cout, 27*cmid_p)
    wd = _flatten_conv_weight(p["wd"], cin_p)               # (Cout, cin_p)
    col = lambda v: v.reshape(-1, 1).astype(jnp.float32)    # (Cout, 1)

    kernel = functools.partial(_basic_block_kernel, dhw=(D, H, W), eps=BN_EPS)
    out = pl.pallas_call(     # single fused kernel, no grid: whole block in VMEM
        kernel,
        out_shape=jax.ShapeDtypeStruct((N, Cout, S), jnp.float32),
    )(x, masks, w1, w2, wd,
      col(p["g1"]), col(p["b1"]), col(p["g2"]), col(p["b2"]),
      col(p["gd"]), col(p["bd"]))
    return out.reshape(N, Cout, D, H, W)                    # free (contiguous)


# ----------------------------------------------------------------------------
# Pure-JAX reference (NCDHW / OIDHW, matching the PyTorch module)
# ----------------------------------------------------------------------------
def _conv_ref(x, w, padding):
    return lax.conv_general_dilated(
        x, w, window_strides=(1, 1, 1), padding=padding,
        dimension_numbers=("NCDHW", "OIDHW", "NCDHW"))


def _bn_ref(y, g, b):
    m = jnp.mean(y, axis=(0, 2, 3, 4), keepdims=True)
    v = jnp.mean((y - m) ** 2, axis=(0, 2, 3, 4), keepdims=True)
    return (y - m) * lax.rsqrt(v + BN_EPS) * g.reshape(1, -1, 1, 1, 1) \
        + b.reshape(1, -1, 1, 1, 1)


def basic_block_ref(x, p):
    x = x.astype(jnp.float32)
    h1 = jax.nn.relu(_bn_ref(_conv_ref(x, p["w1"], [(1, 1)] * 3), p["g1"], p["b1"]))
    y2 = _bn_ref(_conv_ref(h1, p["w2"], [(1, 1)] * 3), p["g2"], p["b2"])
    res = _bn_ref(_conv_ref(x, p["wd"], [(0, 0)] * 3), p["gd"], p["bd"])
    return jax.nn.relu(y2 + res)


# ----------------------------------------------------------------------------
if __name__ == "__main__":
    N, Cin, Cout, D, H, W = 2, 4, 8, 8, 8, 8    # BasicBlock(nIn=4, nOut=8)
    key = jax.random.PRNGKey(0)
    ks = jax.random.split(key, 8)
    params = {
        # conv weights in PyTorch layout (Cout, Cin, KD, KH, KW)
        "w1": 0.1 * jax.random.normal(ks[0], (Cout, Cin, 3, 3, 3), jnp.float32),
        "g1": 1.0 + 0.1 * jax.random.normal(ks[1], (Cout,), jnp.float32),
        "b1": 0.1 * jax.random.normal(ks[2], (Cout,), jnp.float32),
        "w2": 0.1 * jax.random.normal(ks[3], (Cout, Cout, 3, 3, 3), jnp.float32),
        "g2": 1.0 + 0.1 * jax.random.normal(ks[4], (Cout,), jnp.float32),
        "b2": 0.1 * jax.random.normal(ks[5], (Cout,), jnp.float32),
        "wd": 0.1 * jax.random.normal(ks[6], (Cout, Cin, 1, 1, 1), jnp.float32),
        "gd": jnp.ones((Cout,), jnp.float32),
        "bd": jnp.zeros((Cout,), jnp.float32),
    }
    x = jax.random.normal(ks[7], (N, Cin, D, H, W), jnp.float32)   # NCDHW

    out = jax.block_until_ready(basic_block_forward(x, params))
    ref = jax.block_until_ready(basic_block_ref(x, params))

    assert out.shape == (N, Cout, D, H, W), out.shape
    # Tolerance accommodates MXU default-precision f32 matmul vs XLA's conv
    # reference; real bugs (wrong taps / masks / BN stats) give O(1) errors.
    if not jnp.allclose(out, ref, rtol=2e-2, atol=2e-2):
        raise AssertionError(
            f"mismatch: max abs err = {float(jnp.max(jnp.abs(out - ref)))}")
    print("KERNEL_OK")
</pallas_src>

<mosaic_0001>
module attributes {stable_mosaic.version = 11 : i64} {
  func.func @_basic_block_kernel(%arg0: memref<2x4x512xf32, #tpu.memory_space<vmem>>, %arg1: memref<27x1x1024xf32, #tpu.memory_space<vmem>>, %arg2: memref<8x216xf32, #tpu.memory_space<vmem>>, %arg3: memref<8x216xf32, #tpu.memory_space<vmem>>, %arg4: memref<8x8xf32, #tpu.memory_space<vmem>>, %arg5: memref<8x1xf32, #tpu.memory_space<vmem>>, %arg6: memref<8x1xf32, #tpu.memory_space<vmem>>, %arg7: memref<8x1xf32, #tpu.memory_space<vmem>>, %arg8: memref<8x1xf32, #tpu.memory_space<vmem>>, %arg9: memref<8x1xf32, #tpu.memory_space<vmem>>, %arg10: memref<8x1xf32, #tpu.memory_space<vmem>>, %arg11: memref<2x8x512xf32, #tpu.memory_space<vmem>>) attributes {dimension_semantics = [], scalar_prefetch = 0 : i64, scratch_operands = 0 : i64, tpu.core_type = #tpu.core_type<tc>} {
    %c0 = arith.constant 0 : index
    %c0_0 = arith.constant 0 : index
    %c0_1 = arith.constant 0 : index
    %0 = vector.load %arg0[%c0, %c0_0, %c0_1] : memref<2x4x512xf32, #tpu.memory_space<vmem>>, vector<1x4x512xf32>
    %1 = vector.shape_cast %0 : vector<1x4x512xf32> to vector<4x512xf32>
    %c1 = arith.constant 1 : index
    %c0_2 = arith.constant 0 : index
    %c0_3 = arith.constant 0 : index
    %2 = vector.load %arg0[%c1, %c0_2, %c0_3] : memref<2x4x512xf32, #tpu.memory_space<vmem>>, vector<1x4x512xf32>
    %3 = vector.shape_cast %2 : vector<1x4x512xf32> to vector<4x512xf32>
    %4 = tpu.concatenate %1, %3 in 1 : vector<4x512xf32>, vector<4x512xf32> -> vector<4x1024xf32>
    %cst = arith.constant 0.000000e+00 : f32
    %5 = vector.broadcast %cst : f32 to vector<4x1024xf32>
    %6 = tpu.concatenate %4, %5 in 0 : vector<4x1024xf32>, vector<4x1024xf32> -> vector<8x1024xf32>
    %c0_4 = arith.constant 0 : index
    %c0_5 = arith.constant 0 : index
    %7 = vector.load %arg2[%c0_4, %c0_5] : memref<8x216xf32, #tpu.memory_space<vmem>>, vector<8x216xf32>
    %c73_i32 = arith.constant 73 : i32
    %8 = tpu.dynamic_rotate %6 by %c73_i32 dim 1 : vector<8x1024xf32>, i32 -> vector<8x1024xf32>
    %c0_6 = arith.constant 0 : index
    %c0_7 = arith.constant 0 : index
    %c0_8 = arith.constant 0 : index
    %9 = vector.load %arg1[%c0_6, %c0_7, %c0_8] : memref<27x1x1024xf32, #tpu.memory_space<vmem>>, vector<1x1x1024xf32>
    %10 = vector.shape_cast %9 : vector<1x1x1024xf32> to vector<1x1024xf32>
    %11 = vector.broadcast %10 : vector<1x1024xf32> to vector<8x1024xf32>
    %12 = arith.mulf %8, %11 : vector<8x1024xf32>
    %c72_i32 = arith.constant 72 : i32
    %13 = tpu.dynamic_rotate %6 by %c72_i32 dim 1 : vector<8x1024xf32>, i32 -> vector<8x1024xf32>
    %c1_9 = arith.constant 1 : index
    %c0_10 = arith.constant 0 : index
    %c0_11 = arith.constant 0 : index
    %14 = vector.load %arg1[%c1_9, %c0_10, %c0_11] : memref<27x1x1024xf32, #tpu.memory_space<vmem>>, vector<1x1x1024xf32>
    %15 = vector.shape_cast %14 : vector<1x1x1024xf32> to vector<1x1024xf32>
    %16 = vector.broadcast %15 : vector<1x1024xf32> to vector<8x1024xf32>
    %17 = arith.mulf %13, %16 : vector<8x1024xf32>
    %c71_i32 = arith.constant 71 : i32
    %18 = tpu.dynamic_rotate %6 by %c71_i32 dim 1 : vector<8x1024xf32>, i32 -> vector<8x1024xf32>
    %c2 = arith.constant 2 : index
    %c0_12 = arith.constant 0 : index
    %c0_13 = arith.constant 0 : index
    %19 = vector.load %arg1[%c2, %c0_12, %c0_13] : memref<27x1x1024xf32, #tpu.memory_space<vmem>>, vector<1x1x1024xf32>
    %20 = vector.shape_cast %19 : vector<1x1x1024xf32> to vector<1x1024xf32>
    %21 = vector.broadcast %20 : vector<1x1024xf32> to vector<8x1024xf32>
    %22 = arith.mulf %18, %21 : vector<8x1024xf32>
    %c65_i32 = arith.constant 65 : i32
    %23 = tpu.dynamic_rotate %6 by %c65_i32 dim 1 : vector<8x1024xf32>, i32 -> vector<8x1024xf32>
    %c3 = arith.constant 3 : index
    %c0_14 = arith.constant 0 : index
    %c0_15 = arith.constant 0 : index
    %24 = vector.load %arg1[%c3, %c0_14, %c0_15] : memref<27x1x1024xf32, #tpu.memory_space<vmem>>, vector<1x1x1024xf32>
    %25 = vector.shape_cast %24 : vector<1x1x1024xf32> to vector<1x1024xf32>
    %26 = vector.broadcast %25 : vector<1x1024xf32> to vector<8x1024xf32>
    %27 = arith.mulf %23, %26 : vector<8x1024xf32>
    %c64_i32 = arith.constant 64 : i32
    %28 = tpu.dynamic_rotate %6 by %c64_i32 dim 1 : vector<8x1024xf32>, i32 -> vector<8x1024xf32>
    %c4 = arith.constant 4 : index
    %c0_16 = arith.constant 0 : index
    %c0_17 = arith.constant 0 : index
    %29 = vector.load %arg1[%c4, %c0_16, %c0_17] : memref<27x1x1024xf32, #tpu.memory_space<vmem>>, vector<1x1x1024xf32>
    %30 = vector.shape_cast %29 : vector<1x1x1024xf32> to vector<1x1024xf32>
    %31 = vector.broadcast %30 : vector<1x1024xf32> to vector<8x1024xf32>
    %32 = arith.mulf %28, %31 : vector<8x1024xf32>
    %c63_i32 = arith.constant 63 : i32
    %33 = tpu.dynamic_rotate %6 by %c63_i32 dim 1 : vector<8x1024xf32>, i32 -> vector<8x1024xf32>
    %c5 = arith.constant 5 : index
    %c0_18 = arith.constant 0 : index
    %c0_19 = arith.constant 0 : index
    %34 = vector.load %arg1[%c5, %c0_18, %c0_19] : memref<27x1x1024xf32, #tpu.memory_space<vmem>>, vector<1x1x1024xf32>
    %35 = vector.shape_cast %34 : vector<1x1x1024xf32> to vector<1x1024xf32>
    %36 = vector.broadcast %35 : vector<1x1024xf32> to vector<8x1024xf32>
    %37 = arith.mulf %33, %36 : vector<8x1024xf32>
    %c57_i32 = arith.constant 57 : i32
    %38 = tpu.dynamic_rotate %6 by %c57_i32 dim 1 : vector<8x1024xf32>, i32 -> vector<8x1024xf32>
    %c6 = arith.constant 6 : index
    %c0_20 = arith.constant 0 : index
    %c0_21 = arith.constant 0 : index
    %39 = vector.load %arg1[%c6, %c0_20, %c0_21] : memref<27x1x1024xf32, #tpu.memory_space<vmem>>, vector<1x1x1024xf32>
    %40 = vector.shape_cast %39 : vector<1x1x1024xf32> to vector<1x1024xf32>
    %41 = vector.broadcast %40 : vector<1x1024xf32> to vector<8x1024xf32>
    %42 = arith.mulf %38, %41 : vector<8x1024xf32>
    %c56_i32 = arith.constant 56 : i32
    %43 = tpu.dynamic_rotate %6 by %c56_i32 dim 1 : vector<8x1024xf32>, i32 -> vector<8x1024xf32>
    %c7 = arith.constant 7 : index
    %c0_22 = arith.constant 0 : index
    %c0_23 = arith.constant 0 : index
    %44 = vector.load %arg1[%c7, %c0_22, %c0_23] : memref<27x1x1024xf32, #tpu.memory_space<vmem>>, vector<1x1x1024xf32>
    %45 = vector.shape_cast %44 : vector<1x1x1024xf32> to vector<1x1024xf32>
    %46 = vector.broadcast %45 : vector<1x1024xf32> to vector<8x1024xf32>
    %47 = arith.mulf %43, %46 : vector<8x1024xf32>
    %c55_i32 = arith.constant 55 : i32
    %48 = tpu.dynamic_rotate %6 by %c55_i32 dim 1 : vector<8x1024xf32>, i32 -> vector<8x1024xf32>
    %c8 = arith.constant 8 : index
    %c0_24 = arith.constant 0 : index
    %c0_25 = arith.constant 0 : index
    %49 = vector.load %arg1[%c8, %c0_24, %c0_25] : memref<27x1x1024xf32, #tpu.memory_space<vmem>>, vector<1x1x1024xf32>
    %50 = vector.shape_cast %49 : vector<1x1x1024xf32> to vector<1x1024xf32>
    %51 = vector.broadcast %50 : vector<1x1024xf32> to vector<8x1024xf32>
    %52 = arith.mulf %48, %51 : vector<8x1024xf32>
    %c9_i32 = arith.constant 9 : i32
    %53 = tpu.dynamic_rotate %6 by %c9_i32 dim 1 : vector<8x1024xf32>, i32 -> vector<8x1024xf32>
    %c9 = arith.constant 9 : index
    %c0_26 = arith.constant 0 : index
    %c0_27 = arith.constant 0 : index
    %54 = vector.load %arg1[%c9, %c0_26, %c0_27] : memref<27x1x1024xf32, #tpu.memory_space<vmem>>, vector<1x1x1024xf32>
    %55 = vector.shape_cast %54 : vector<1x1x1024xf32> to vector<1x1024xf32>
    %56 = vector.broadcast %55 : vector<1x1024xf32> to vector<8x1024xf32>
    %57 = arith.mulf %53, %56 : vector<8x1024xf32>
    %c8_i32 = arith.constant 8 : i32
    %58 = tpu.dynamic_rotate %6 by %c8_i32 dim 1 : vector<8x1024xf32>, i32 -> vector<8x1024xf32>
    %c10 = arith.constant 10 : index
    %c0_28 = arith.constant 0 : index
    %c0_29 = arith.constant 0 : index
    %59 = vector.load %arg1[%c10, %c0_28, %c0_29] : memref<27x1x1024xf32, #tpu.memory_space<vmem>>, vector<1x1x1024xf32>
    %60 = vector.shape_cast %59 : vector<1x1x1024xf32> to vector<1x1024xf32>
    %61 = vector.broadcast %60 : vector<1x1024xf32> to vector<8x1024xf32>
    %62 = arith.mulf %58, %61 : vector<8x1024xf32>
    %c7_i32 = arith.constant 7 : i32
    %63 = tpu.dynamic_rotate %6 by %c7_i32 dim 1 : vector<8x1024xf32>, i32 -> vector<8x1024xf32>
    %c11 = arith.constant 11 : index
    %c0_30 = arith.constant 0 : index
    %c0_31 = arith.constant 0 : index
    %64 = vector.load %arg1[%c11, %c0_30, %c0_31] : memref<27x1x1024xf32, #tpu.memory_space<vmem>>, vector<1x1x1024xf32>
    %65 = vector.shape_cast %64 : vector<1x1x1024xf32> to vector<1x1024xf32>
    %66 = vector.broadcast %65 : vector<1x1024xf32> to vector<8x1024xf32>
    %67 = arith.mulf %63, %66 : vector<8x1024xf32>
    %c1_i32 = arith.constant 1 : i32
    %68 = tpu.dynamic_rotate %6 by %c1_i32 dim 1 : vector<8x1024xf32>, i32 -> vector<8x1024xf32>
    %c12 = arith.constant 12 : index
    %c0_32 = arith.constant 0 : index
    %c0_33 = arith.constant 0 : index
    %69 = vector.load %arg1[%c12, %c0_32, %c0_33] : memref<27x1x1024xf32, #tpu.memory_space<vmem>>, vector<1x1x1024xf32>
    %70 = vector.shape_cast %69 : vector<1x1x1024xf32> to vector<1x1024xf32>
    %71 = vector.broadcast %70 : vector<1x1024xf32> to vector<8x1024xf32>
    %72 = arith.mulf %68, %71 : vector<8x1024xf32>
    %c1023_i32 = arith.constant 1023 : i32
    %73 = tpu.dynamic_rotate %6 by %c1023_i32 dim 1 : vector<8x1024xf32>, i32 -> vector<8x1024xf32>
    %c14 = arith.constant 14 : index
    %c0_34 = arith.constant 0 : index
    %c0_35 = arith.constant 0 : index
    %74 = vector.load %arg1[%c14, %c0_34, %c0_35] : memref<27x1x1024xf32, #tpu.memory_space<vmem>>, vector<1x1x1024xf32>
    %75 = vector.shape_cast %74 : vector<1x1x1024xf32> to vector<1x1024xf32>
    %76 = vector.broadcast %75 : vector<1x1024xf32> to vector<8x1024xf32>
    %77 = arith.mulf %73, %76 : vector<8x1024xf32>
    %c1017_i32 = arith.constant 1017 : i32
    %78 = tpu.dynamic_rotate %6 by %c1017_i32 dim 1 : vector<8x1024xf32>, i32 -> vector<8x1024xf32>
    %c15 = arith.constant 15 : index
    %c0_36 = arith.constant 0 : index
    %c0_37 = arith.constant 0 : index
    %79 = vector.load %arg1[%c15, %c0_36, %c0_37] : memref<27x1x1024xf32, #tpu.memory_space<vmem>>, vector<1x1x1024xf32>
    %80 = vector.shape_cast %79 : vector<1x1x1024xf32> to vector<1x1024xf32>
    %81 = vector.broadcast %80 : vector<1x1024xf32> to vector<8x1024xf32>
    %82 = arith.mulf %78, %81 : vector<8x1024xf32>
    %c1016_i32 = arith.constant 1016 : i32
    %83 = tpu.dynamic_rotate %6 by %c1016_i32 dim 1 : vector<8x1024xf32>, i32 -> vector<8x1024xf32>
    %c16 = arith.constant 16 : index
    %c0_38 = arith.constant 0 : index
    %c0_39 = arith.constant 0 : index
    %84 = vector.load %arg1[%c16, %c0_38, %c0_39] : memref<27x1x1024xf32, #tpu.memory_space<vmem>>, vector<1x1x1024xf32>
    %85 = vector.shape_cast %84 : vector<1x1x1024xf32> to vector<1x1024xf32>
    %86 = vector.broadcast %85 : vector<1x1024xf32> to vector<8x1024xf32>
    %87 = arith.mulf %83, %86 : vector<8x1024xf32>
    %c1015_i32 = arith.constant 1015 : i32
    %88 = tpu.dynamic_rotate %6 by %c1015_i32 dim 1 : vector<8x1024xf32>, i32 -> vector<8x1024xf32>
    %c17 = arith.constant 17 : index
    %c0_40 = arith.constant 0 : index
    %c0_41 = arith.constant 0 : index
    %89 = vector.load %arg1[%c17, %c0_40, %c0_41] : memref<27x1x1024xf32, #tpu.memory_space<vmem>>, vector<1x1x1024xf32>
    %90 = vector.shape_cast %89 : vector<1x1x1024xf32> to vector<1x1024xf32>
    %91 = vector.broadcast %90 : vector<1x1024xf32> to vector<8x1024xf32>
    %92 = arith.mulf %88, %91 : vector<8x1024xf32>
    %c969_i32 = arith.constant 969 : i32
    %93 = tpu.dynamic_rotate %6 by %c969_i32 dim 1 : vector<8x1024xf32>, i32 -> vector<8x1024xf32>
    %c18 = arith.constant 18 : index
    %c0_42 = arith.constant 0 : index
    %c0_43 = arith.constant 0 : index
    %94 = vector.load %arg1[%c18, %c0_42, %c0_43] : memref<27x1x1024xf32, #tpu.memory_space<vmem>>, vector<1x1x1024xf32>
    %95 = vector.shape_cast %94 : vector<1x1x1024xf32> to vector<1x1024xf32>
    %96 = vector.broadcast %95 : vector<1x1024xf32> to vector<8x1024xf32>
    %97 = arith.mulf %93, %96 : vector<8x1024xf32>
    %c968_i32 = arith.constant 968 : i32
    %98 = tpu.dynamic_rotate %6 by %c968_i32 dim 1 : vector<8x1024xf32>, i32 -> vector<8x1024xf32>
    %c19 = arith.constant 19 : index
    %c0_44 = arith.constant 0 : index
    %c0_45 = arith.constant 0 : index
    %99 = vector.load %arg1[%c19, %c0_44, %c0_45] : memref<27x1x1024xf32, #tpu.memory_space<vmem>>, vector<1x1x1024xf32>
    %100 = vector.shape_cast %99 : vector<1x1x1024xf32> to vector<1x1024xf32>
    %101 = vector.broadcast %100 : vector<1x1024xf32> to vector<8x1024xf32>
    %102 = arith.mulf %98, %101 : vector<8x1024xf32>
    %c967_i32 = arith.constant 967 : i32
    %103 = tpu.dynamic_rotate %6 by %c967_i32 dim 1 : vector<8x1024xf32>, i32 -> vector<8x1024xf32>
    %c20 = arith.constant 20 : index
    %c0_46 = arith.constant 0 : index
    %c0_47 = arith.constant 0 : index
    %104 = vector.load %arg1[%c20, %c0_46, %c0_47] : memref<27x1x1024xf32, #tpu.memory_space<vmem>>, vector<1x1x1024xf32>
    %105 = vector.shape_cast %104 : vector<1x1x1024xf32> to vector<1x1024xf32>
    %106 = vector.broadcast %105 : vector<1x1024xf32> to vector<8x1024xf32>
    %107 = arith.mulf %103, %106 : vector<8x1024xf32>
    %c961_i32 = arith.constant 961 : i32
    %108 = tpu.dynamic_rotate %6 by %c961_i32 dim 1 : vector<8x1024xf32>, i32 -> vector<8x1024xf32>
    %c21 = arith.constant 21 : index
    %c0_48 = arith.constant 0 : index
    %c0_49 = arith.constant 0 : index
    %109 = vector.load %arg1[%c21, %c0_48, %c0_49] : memref<27x1x1024xf32, #tpu.memory_space<vmem>>, vector<1x1x1024xf32>
    %110 = vector.shape_cast %109 : vector<1x1x1024xf32> to vector<1x1024xf32>
    %111 = vector.broadcast %110 : vector<1x1024xf32> to vector<8x1024xf32>
    %112 = arith.mulf %108, %111 : vector<8x1024xf32>
    %c960_i32 = arith.constant 960 : i32
    %113 = tpu.dynamic_rotate %6 by %c960_i32 dim 1 : vector<8x1024xf32>, i32 -> vector<8x1024xf32>
    %c22 = arith.constant 22 : index
    %c0_50 = arith.constant 0 : index
    %c0_51 = arith.constant 0 : index
    %114 = vector.load %arg1[%c22, %c0_50, %c0_51] : memref<27x1x1024xf32, #tpu.memory_space<vmem>>, vector<1x1x1024xf32>
    %115 = vector.shape_cast %114 : vector<1x1x1024xf32> to vector<1x1024xf32>
    %116 = vector.broadcast %115 : vector<1x1024xf32> to vector<8x1024xf32>
    %117 = arith.mulf %113, %116 : vector<8x1024xf32>
    %c959_i32 = arith.constant 959 : i32
    %118 = tpu.dynamic_rotate %6 by %c959_i32 dim 1 : vector<8x1024xf32>, i32 -> vector<8x1024xf32>
    %c23 = arith.constant 23 : index
    %c0_52 = arith.constant 0 : index
    %c0_53 = arith.constant 0 : index
    %119 = vector.load %arg1[%c23, %c0_52, %c0_53] : memref<27x1x1024xf32, #tpu.memory_space<vmem>>, vector<1x1x1024xf32>
    %120 = vector.shape_cast %119 : vector<1x1x1024xf32> to vector<1x1024xf32>
    %121 = vector.broadcast %120 : vector<1x1024xf32> to vector<8x1024xf32>
    %122 = arith.mulf %118, %121 : vector<8x1024xf32>
    %c953_i32 = arith.constant 953 : i32
    %123 = tpu.dynamic_rotate %6 by %c953_i32 dim 1 : vector<8x1024xf32>, i32 -> vector<8x1024xf32>
    %c24 = arith.constant 24 : index
    %c0_54 = arith.constant 0 : index
    %c0_55 = arith.constant 0 : index
    %124 = vector.load %arg1[%c24, %c0_54, %c0_55] : memref<27x1x1024xf32, #tpu.memory_space<vmem>>, vector<1x1x1024xf32>
    %125 = vector.shape_cast %124 : vector<1x1x1024xf32> to vector<1x1024xf32>
    %126 = vector.broadcast %125 : vector<1x1024xf32> to vector<8x1024xf32>
    %127 = arith.mulf %123, %126 : vector<8x1024xf32>
    %c952_i32 = arith.constant 952 : i32
    %128 = tpu.dynamic_rotate %6 by %c952_i32 dim 1 : vector<8x1024xf32>, i32 -> vector<8x1024xf32>
    %c25 = arith.constant 25 : index
    %c0_56 = arith.constant 0 : index
    %c0_57 = arith.constant 0 : index
    %129 = vector.load %arg1[%c25, %c0_56, %c0_57] : memref<27x1x1024xf32, #tpu.memory_space<vmem>>, vector<1x1x1024xf32>
    %130 = vector.shape_cast %129 : vector<1x1x1024xf32> to vector<1x1024xf32>
    %131 = vector.broadcast %130 : vector<1x1024xf32> to vector<8x1024xf32>
    %132 = arith.mulf %128, %131 : vector<8x1024xf32>
    %c951_i32 = arith.constant 951 : i32
    %133 = tpu.dynamic_rotate %6 by %c951_i32 dim 1 : vector<8x1024xf32>, i32 -> vector<8x1024xf32>
    %c26 = arith.constant 26 : index
    %c0_58 = arith.constant 0 : index
    %c0_59 = arith.constant 0 : index
    %134 = vector.load %arg1[%c26, %c0_58, %c0_59] : memref<27x1x1024xf32, #tpu.memory_space<vmem>>, vector<1x1x1024xf32>
    %135 = vector.shape_cast %134 : vector<1x1x1024xf32> to vector<1x1024xf32>
    %136 = vector.broadcast %135 : vector<1x1024xf32> to vector<8x1024xf32>
    %137 = arith.mulf %133, %136 : vector<8x1024xf32>
    %138 = tpu.concatenate %12, %17, %22, %27, %32, %37, %42, %47, %52, %57, %62, %67, %72, %6, %77, %82 in 0 : vector<8x1024xf32>, vector<8x1024xf32>, vector<8x1024xf32>, vector<8x1024xf32>, vector<8x1024xf32>, vector<8x1024xf32>, vector<8x1024xf32>, vector<8x1024xf32>, vector<8x1024xf32>, vector<8x1024xf32>, vector<8x1024xf32>, vector<8x1024xf32>, vector<8x1024xf32>, vector<8x1024xf32>, vector<8x1024xf32>, vector<8x1024xf32> -> vector<128x1024xf32>
    %139 = tpu.concatenate %87, %92, %97, %102, %107, %112, %117, %122, %127, %132, %137 in 0 : vector<8x1024xf32>, vector<8x1024xf32>, vector<8x1024xf32>, vector<8x1024xf32>, vector<8x1024xf32>, vector<8x1024xf32>, vector<8x1024xf32>, vector<8x1024xf32>, vector<8x1024xf32>, vector<8x1024xf32>, vector<8x1024xf32> -> vector<88x1024xf32>
    %140 = tpu.concatenate %138, %139 in 0 : vector<128x1024xf32>, vector<88x1024xf32> -> vector<216x1024xf32>
    %cst_60 = arith.constant dense<0.000000e+00> : vector<8x1024xf32>
    %141 = tpu.matmul %7, %140, %cst_60 {dimension_numbers = #tpu.dot_dimension_numbers<[1], [0], [0], [1], [0, 0, 1, 1], [], []>} : vector<8x216xf32>, vector<216x1024xf32>, vector<8x1024xf32> -> vector<8x1024xf32>
    %c0_61 = arith.constant 0 : index
    %c0_62 = arith.constant 0 : index
    %142 = vector.load %arg5[%c0_61, %c0_62] : memref<8x1xf32, #tpu.memory_space<vmem>>, vector<8x1xf32>
    %c0_63 = arith.constant 0 : index
    %c0_64 = arith.constant 0 : index
    %143 = vector.load %arg6[%c0_63, %c0_64] : memref<8x1xf32, #tpu.memory_space<vmem>>, vector<8x1xf32>
    %cst_65 = arith.constant dense<0.000000e+00> : vector<8xf32>
    %144 = vector.multi_reduction <add>, %141, %cst_65 [1] : vector<8x1024xf32> to vector<8xf32>
    %145 = vector.shape_cast %144 : vector<8xf32> to vector<8x1xf32>
    %cst_66 = arith.constant 1.024000e+03 : f32
    %146 = vector.broadcast %cst_66 : f32 to vector<8x1xf32>
    %147 = arith.divf %145, %146 : vector<8x1xf32>
    %148 = vector.broadcast %147 : vector<8x1xf32> to vector<8x1024xf32>
    %149 = arith.subf %141, %148 : vector<8x1024xf32>
    %150 = vector.broadcast %147 : vector<8x1xf32> to vector<8x1024xf32>
    %151 = arith.subf %141, %150 : vector<8x1024xf32>
    %152 = arith.mulf %149, %151 : vector<8x1024xf32>
    %cst_67 = arith.constant dense<0.000000e+00> : vector<8xf32>
    %153 = vector.multi_reduction <add>, %152, %cst_67 [1] : vector<8x1024xf32> to vector<8xf32>
    %154 = vector.shape_cast %153 : vector<8xf32> to vector<8x1xf32>
    %cst_68 = arith.constant 1.024000e+03 : f32
    %155 = vector.broadcast %cst_68 : f32 to vector<8x1xf32>
    %156 = arith.divf %154, %155 : vector<8x1xf32>
    %157 = vector.broadcast %147 : vector<8x1xf32> to vector<8x1024xf32>
    %158 = arith.subf %141, %157 : vector<8x1024xf32>
    %cst_69 = arith.constant 1.000000e-03 : f32
    %159 = vector.broadcast %cst_69 : f32 to vector<8x1xf32>
    %160 = arith.addf %156, %159 : vector<8x1xf32>
    %161 = math.rsqrt %160 : vector<8x1xf32>
    %162 = vector.broadcast %161 : vector<8x1xf32> to vector<8x1024xf32>
    %163 = arith.mulf %158, %162 : vector<8x1024xf32>
    %164 = vector.broadcast %142 : vector<8x1xf32> to vector<8x1024xf32>
    %165 = arith.mulf %163, %164 : vector<8x1024xf32>
    %166 = vector.broadcast %143 : vector<8x1xf32> to vector<8x1024xf32>
    %167 = arith.addf %165, %166 : vector<8x1024xf32>
    %cst_70 = arith.constant 0.000000e+00 : f32
    %168 = vector.broadcast %cst_70 : f32 to vector<8x1024xf32>
    %169 = arith.maximumf %167, %168 : vector<8x1024xf32>
    %c0_71 = arith.constant 0 : index
    %c0_72 = arith.constant 0 : index
    %170 = vector.load %arg3[%c0_71, %c0_72] : memref<8x216xf32, #tpu.memory_space<vmem>>, vector<8x216xf32>
    %c73_i32_73 = arith.constant 73 : i32
    %171 = tpu.dynamic_rotate %169 by %c73_i32_73 dim 1 : vector<8x1024xf32>, i32 -> vector<8x1024xf32>
    %c0_74 = arith.constant 0 : index
    %c0_75 = arith.constant 0 : index
    %c0_76 = arith.constant 0 : index
    %172 = vector.load %arg1[%c0_74, %c0_75, %c0_76] : memref<27x1x1024xf32, #tpu.memory_space<vmem>>, vector<1x1x1024xf32>
    %173 = vector.shape_cast %172 : vector<1x1x1024xf32> to vector<1x1024xf32>
    %174 = vector.broadcast %173 : vector<1x1024xf32> to vector<8x1024xf32>
    %175 = arith.mulf %171, %174 : vector<8x1024xf32>
    %c72_i32_77 = arith.constant 72 : i32
    %176 = tpu.dynamic_rotate %169 by %c72_i32_77 dim 1 : vector<8x1024xf32>, i32 -> vector<8x1024xf32>
    %c1_78 = arith.constant 1 : index
    %c0_79 = arith.constant 0 : index
    %c0_80 = arith.constant 0 : index
    %177 = vector.load %arg1[%c1_78, %c0_79, %c0_80] : memref<27x1x1024xf32, #tpu.memory_space<vmem>>, vector<1x1x1024xf32>
    %178 = vector.shape_cast %177 : vector<1x1x1024xf32> to vector<1x1024xf32>
    %179 = vector.broadcast %178 : vector<1x1024xf32> to vector<8x1024xf32>
    %180 = arith.mulf %176, %179 : vector<8x1024xf32>
    %c71_i32_81 = arith.constant 71 : i32
    %181 = tpu.dynamic_rotate %169 by %c71_i32_81 dim 1 : vector<8x1024xf32>, i32 -> vector<8x1024xf32>
    %c2_82 = arith.constant 2 : index
    %c0_83 = arith.constant 0 : index
    %c0_84 = arith.constant 0 : index
    %182 = vector.load %arg1[%c2_82, %c0_83, %c0_84] : memref<27x1x1024xf32, #tpu.memory_space<vmem>>, vector<1x1x1024xf32>
    %183 = vector.shape_cast %182 : vector<1x1x1024xf32> to vector<1x1024xf32>
    %184 = vector.broadcast %183 : vector<1x1024xf32> to vector<8x1024xf32>
    %185 = arith.mulf %181, %184 : vector<8x1024xf32>
    %c65_i32_85 = arith.constant 65 : i32
    %186 = tpu.dynamic_rotate %169 by %c65_i32_85 dim 1 : vector<8x1024xf32>, i32 -> vector<8x1024xf32>
    %c3_86 = arith.constant 3 : index
    %c0_87 = arith.constant 0 : index
    %c0_88 = arith.constant 0 : index
    %187 = vector.load %arg1[%c3_86, %c0_87, %c0_88] : memref<27x1x1024xf32, #tpu.memory_space<vmem>>, vector<1x1x1024xf32>
    %188 = vector.shape_cast %187 : vector<1x1x1024xf32> to vector<1x1024xf32>
    %189 = vector.broadcast %188 : vector<1x1024xf32> to vector<8x1024xf32>
    %190 = arith.mulf %186, %189 : vector<8x1024xf32>
    %c64_i32_89 = arith.constant 64 : i32
    %191 = tpu.dynamic_rotate %169 by %c64_i32_89 dim 1 : vector<8x1024xf32>, i32 -> vector<8x1024xf32>
    %c4_90 = arith.constant 4 : index
    %c0_91 = arith.constant 0 : index
    %c0_92 = arith.constant 0 : index
    %192 = vector.load %arg1[%c4_90, %c0_91, %c0_92] : memref<27x1x1024xf32, #tpu.memory_space<vmem>>, vector<1x1x1024xf32>
    %193 = vector.shape_cast %192 : vector<1x1x1024xf32> to vector<1x1024xf32>
    %194 = vector.broadcast %193 : vector<1x1024xf32> to vector<8x1024xf32>
    %195 = arith.mulf %191, %194 : vector<8x1024xf32>
    %c63_i32_93 = arith.constant 63 : i32
    %196 = tpu.dynamic_rotate %169 by %c63_i32_93 dim 1 : vector<8x1024xf32>, i32 -> vector<8x1024xf32>
    %c5_94 = arith.constant 5 : index
    %c0_95 = arith.constant 0 : index
    %c0_96 = arith.constant 0 : index
    %197 = vector.load %arg1[%c5_94, %c0_95, %c0_96] : memref<27x1x1024xf32, #tpu.memory_space<vmem>>, vector<1x1x1024xf32>
    %198 = vector.shape_cast %197 : vector<1x1x1024xf32> to vector<1x1024xf32>
    %199 = vector.broadcast %198 : vector<1x1024xf32> to vector<8x1024xf32>
    %200 = arith.mulf %196, %199 : vector<8x1024xf32>
    %c57_i32_97 = arith.constant 57 : i32
    %201 = tpu.dynamic_rotate %169 by %c57_i32_97 dim 1 : vector<8x1024xf32>, i32 -> vector<8x1024xf32>
    %c6_98 = arith.constant 6 : index
    %c0_99 = arith.constant 0 : index
    %c0_100 = arith.constant 0 : index
    %202 = vector.load %arg1[%c6_98, %c0_99, %c0_100] : memref<27x1x1024xf32, #tpu.memory_space<vmem>>, vector<1x1x1024xf32>
    %203 = vector.shape_cast %202 : vector<1x1x1024xf32> to vector<1x1024xf32>
    %204 = vector.broadcast %203 : vector<1x1024xf32> to vector<8x1024xf32>
    %205 = arith.mulf %201, %204 : vector<8x1024xf32>
    %c56_i32_101 = arith.constant 56 : i32
    %206 = tpu.dynamic_rotate %169 by %c56_i32_101 dim 1 : vector<8x1024xf32>, i32 -> vector<8x1024xf32>
    %c7_102 = arith.constant 7 : index
    %c0_103 = arith.constant 0 : index
    %c0_104 = arith.constant 0 : index
    %207 = vector.load %arg1[%c7_102, %c0_103, %c0_104] : memref<27x1x1024xf32, #tpu.memory_space<vmem>>, vector<1x1x1024xf32>
    %208 = vector.shape_cast %207 : vector<1x1x1024xf32> to vector<1x1024xf32>
    %209 = vector.broadcast %208 : vector<1x1024xf32> to vector<8x1024xf32>
    %210 = arith.mulf %206, %209 : vector<8x1024xf32>
    %c55_i32_105 = arith.constant 55 : i32
    %211 = tpu.dynamic_rotate %169 by %c55_i32_105 dim 1 : vector<8x1024xf32>, i32 -> vector<8x1024xf32>
    %c8_106 = arith.constant 8 : index
    %c0_107 = arith.constant 0 : index
    %c0_108 = arith.constant 0 : index
    %212 = vector.load %arg1[%c8_106, %c0_107, %c0_108] : memref<27x1x1024xf32, #tpu.memory_space<vmem>>, vector<1x1x1024xf32>
    %213 = vector.shape_cast %212 : vector<1x1x1024xf32> to vector<1x1024xf32>
    %214 = vector.broadcast %213 : vector<1x1024xf32> to vector<8x1024xf32>
    %215 = arith.mulf %211, %214 : vector<8x1024xf32>
    %c9_i32_109 = arith.constant 9 : i32
    %216 = tpu.dynamic_rotate %169 by %c9_i32_109 dim 1 : vector<8x1024xf32>, i32 -> vector<8x1024xf32>
    %c9_110 = arith.constant 9 : index
    %c0_111 = arith.constant 0 : index
    %c0_112 = arith.constant 0 : index
    %217 = vector.load %arg1[%c9_110, %c0_111, %c0_112] : memref<27x1x1024xf32, #tpu.memory_space<vmem>>, vector<1x1x1024xf32>
    %218 = vector.shape_cast %217 : vector<1x1x1024xf32> to vector<1x1024xf32>
    %219 = vector.broadcast %218 : vector<1x1024xf32> to vector<8x1024xf32>
    %220 = arith.mulf %216, %219 : vector<8x1024xf32>
    %c8_i32_113 = arith.constant 8 : i32
    %221 = tpu.dynamic_rotate %169 by %c8_i32_113 dim 1 : vector<8x1024xf32>, i32 -> vector<8x1024xf32>
    %c10_114 = arith.constant 10 : index
    %c0_115 = arith.constant 0 : index
    %c0_116 = arith.constant 0 : index
    %222 = vector.load %arg1[%c10_114, %c0_115, %c0_116] : memref<27x1x1024xf32, #tpu.memory_space<vmem>>, vector<1x1x1024xf32>
    %223 = vector.shape_cast %222 : vector<1x1x1024xf32> to vector<1x1024xf32>
    %224 = vector.broadcast %223 : vector<1x1024xf32> to vector<8x1024xf32>
    %225 = arith.mulf %221, %224 : vector<8x1024xf32>
    %c7_i32_117 = arith.constant 7 : i32
    %226 = tpu.dynamic_rotate %169 by %c7_i32_117 dim 1 : vector<8x1024xf32>, i32 -> vector<8x1024xf32>
    %c11_118 = arith.constant 11 : index
    %c0_119 = arith.constant 0 : index
    %c0_120 = arith.constant 0 : index
    %227 = vector.load %arg1[%c11_118, %c0_119, %c0_120] : memref<27x1x1024xf32, #tpu.memory_space<vmem>>, vector<1x1x1024xf32>
    %228 = vector.shape_cast %227 : vector<1x1x1024xf32> to vector<1x1024xf32>
    %229 = vector.broadcast %228 : vector<1x1024xf32> to vector<8x1024xf32>
    %230 = arith.mulf %226, %229 : vector<8x1024xf32>
    %c1_i32_121 = arith.constant 1 : i32
    %231 = tpu.dynamic_rotate %169 by %c1_i32_121 dim 1 : vector<8x1024xf32>, i32 -> vector<8x1024xf32>
    %c12_122 = arith.constant 12 : index
    %c0_123 = arith.constant 0 : index
    %c0_124 = arith.constant 0 : index
    %232 = vector.load %arg1[%c12_122, %c0_123, %c0_124] : memref<27x1x1024xf32, #tpu.memory_space<vmem>>, vector<1x1x1024xf32>
    %233 = vector.shape_cast %232 : vector<1x1x1024xf32> to vector<1x1024xf32>
    %234 = vector.broadcast %233 : vector<1x1024xf32> to vector<8x1024xf32>
    %235 = arith.mulf %231, %234 : vector<8x1024xf32>
    %c1023_i32_125 = arith.constant 1023 : i32
    %236 = tpu.dynamic_rotate %169 by %c1023_i32_125 dim 1 : vector<8x1024xf32>, i32 -> vector<8x1024xf32>
    %c14_126 = arith.constant 14 : index
    %c0_127 = arith.constant 0 : index
    %c0_128 = arith.constant 0 : index
    %237 = vector.load %arg1[%c14_126, %c0_127, %c0_128] : memref<27x1x1024xf32, #tpu.memory_space<vmem>>, vector<1x1x1024xf32>
    %238 = vector.shape_cast %237 : vector<1x1x1024xf32> to vector<1x1024xf32>
    %239 = vector.broadcast %238 : vector<1x1024xf32> to vector<8x1024xf32>
    %240 = arith.mulf %236, %239 : vector<8x1024xf32>
    %c1017_i32_129 = arith.constant 1017 : i32
    %241 = tpu.dynamic_rotate %169 by %c1017_i32_129 dim 1 : vector<8x1024xf32>, i32 -> vector<8x1024xf32>
    %c15_130 = arith.constant 15 : index
    %c0_131 = arith.constant 0 : index
    %c0_132 = arith.constant 0 : index
    %242 = vector.load %arg1[%c15_130, %c0_131, %c0_132] : memref<27x1x1024xf32, #tpu.memory_space<vmem>>, vector<1x1x1024xf32>
    %243 = vector.shape_cast %242 : vector<1x1x1024xf32> to vector<1x1024xf32>
    %244 = vector.broadcast %243 : vector<1x1024xf32> to vector<8x1024xf32>
    %245 = arith.mulf %241, %244 : vector<8x1024xf32>
    %c1016_i32_133 = arith.constant 1016 : i32
    %246 = tpu.dynamic_rotate %169 by %c1016_i32_133 dim 1 : vector<8x1024xf32>, i32 -> vector<8x1024xf32>
    %c16_134 = arith.constant 16 : index
    %c0_135 = arith.constant 0 : index
    %c0_136 = arith.constant 0 : index
    %247 = vector.load %arg1[%c16_134, %c0_135, %c0_136] : memref<27x1x1024xf32, #tpu.memory_space<vmem>>, vector<1x1x1024xf32>
    %248 = vector.shape_cast %247 : vector<1x1x1024xf32> to vector<1x1024xf32>
    %249 = vector.broadcast %248 : vector<1x1024xf32> to vector<8x1024xf32>
    %250 = arith.mulf %246, %249 : vector<8x1024xf32>
    %c1015_i32_137 = arith.constant 1015 : i32
    %251 = tpu.dynamic_rotate %169 by %c1015_i32_137 dim 1 : vector<8x1024xf32>, i32 -> vector<8x1024xf32>
    %c17_138 = arith.constant 17 : index
    %c0_139 = arith.constant 0 : index
    %c0_140 = arith.constant 0 : index
    %252 = vector.load %arg1[%c17_138, %c0_139, %c0_140] : memref<27x1x1024xf32, #tpu.memory_space<vmem>>, vector<1x1x1024xf32>
    %253 = vector.shape_cast %252 : vector<1x1x1024xf32> to vector<1x1024xf32>
    %254 = vector.broadcast %253 : vector<1x1024xf32> to vector<8x1024xf32>
    %255 = arith.mulf %251, %254 : vector<8x1024xf32>
    %c969_i32_141 = arith.constant 969 : i32
    %256 = tpu.dynamic_rotate %169 by %c969_i32_141 dim 1 : vector<8x1024xf32>, i32 -> vector<8x1024xf32>
    %c18_142 = arith.constant 18 : index
    %c0_143 = arith.constant 0 : index
    %c0_144 = arith.constant 0 : index
    %257 = vector.load %arg1[%c18_142, %c0_143, %c0_144] : memref<27x1x1024xf32, #tpu.memory_space<vmem>>, vector<1x1x1024xf32>
    %258 = vector.shape_cast %257 : vector<1x1x1024xf32> to vector<1x1024xf32>
    %259 = vector.broadcast %258 : vector<1x1024xf32> to vector<8x1024xf32>
    %260 = arith.mulf %256, %259 : vector<8x1024xf32>
    %c968_i32_145 = arith.constant 968 : i32
    %261 = tpu.dynamic_rotate %169 by %c968_i32_145 dim 1 : vector<8x1024xf32>, i32 -> vector<8x1024xf32>
    %c19_146 = arith.constant 19 : index
    %c0_147 = arith.constant 0 : index
    %c0_148 = arith.constant 0 : index
    %262 = vector.load %arg1[%c19_146, %c0_147, %c0_148] : memref<27x1x1024xf32, #tpu.memory_space<vmem>>, vector<1x1x1024xf32>
    %263 = vector.shape_cast %262 : vector<1x1x1024xf32> to vector<1x1024xf32>
    %264 = vector.broadcast %263 : vector<1x1024xf32> to vector<8x1024xf32>
    %265 = arith.mulf %261, %264 : vector<8x1024xf32>
    %c967_i32_149 = arith.constant 967 : i32
    %266 = tpu.dynamic_rotate %169 by %c967_i32_149 dim 1 : vector<8x1024xf32>, i32 -> vector<8x1024xf32>
    %c20_150 = arith.constant 20 : index
    %c0_151 = arith.constant 0 : index
    %c0_152 = arith.constant 0 : index
    %267 = vector.load %arg1[%c20_150, %c0_151, %c0_152] : memref<27x1x1024xf32, #tpu.memory_space<vmem>>, vector<1x1x1024xf32>
    %268 = vector.shape_cast %267 : vector<1x1x1024xf32> to vector<1x1024xf32>
    %269 = vector.broadcast %268 : vector<1x1024xf32> to vector<8x1024xf32>
    %270 = arith.mulf %266, %269 : vector<8x1024xf32>
    %c961_i32_153 = arith.constant 961 : i32
    %271 = tpu.dynamic_rotate %169 by %c961_i32_153 dim 1 : vector<8x1024xf32>, i32 -> vector<8x1024xf32>
    %c21_154 = arith.constant 21 : index
    %c0_155 = arith.constant 0 : index
    %c0_156 = arith.constant 0 : index
    %272 = vector.load %arg1[%c21_154, %c0_155, %c0_156] : memref<27x1x1024xf32, #tpu.memory_space<vmem>>, vector<1x1x1024xf32>
    %273 = vector.shape_cast %272 : vector<1x1x1024xf32> to vector<1x1024xf32>
    %274 = vector.broadcast %273 : vector<1x1024xf32> to vector<8x1024xf32>
    %275 = arith.mulf %271, %274 : vector<8x1024xf32>
    %c960_i32_157 = arith.constant 960 : i32
    %276 = tpu.dynamic_rotate %169 by %c960_i32_157 dim 1 : vector<8x1024xf32>, i32 -> vector<8x1024xf32>
    %c22_158 = arith.constant 22 : index
    %c0_159 = arith.constant 0 : index
    %c0_160 = arith.constant 0 : index
    %277 = vector.load %arg1[%c22_158, %c0_159, %c0_160] : memref<27x1x1024xf32, #tpu.memory_space<vmem>>, vector<1x1x1024xf32>
    %278 = vector.shape_cast %277 : vector<1x1x1024xf32> to vector<1x1024xf32>
    %279 = vector.broadcast %278 : vector<1x1024xf32> to vector<8x1024xf32>
    %280 = arith.mulf %276, %279 : vector<8x1024xf32>
    %c959_i32_161 = arith.constant 959 : i32
    %281 = tpu.dynamic_rotate %169 by %c959_i32_161 dim 1 : vector<8x1024xf32>, i32 -> vector<8x1024xf32>
    %c23_162 = arith.constant 23 : index
    %c0_163 = arith.constant 0 : index
    %c0_164 = arith.constant 0 : index
    %282 = vector.load %arg1[%c23_162, %c0_163, %c0_164] : memref<27x1x1024xf32, #tpu.memory_space<vmem>>, vector<1x1x1024xf32>
    %283 = vector.shape_cast %282 : vector<1x1x1024xf32> to vector<1x1024xf32>
    %284 = vector.broadcast %283 : vector<1x1024xf32> to vector<8x1024xf32>
    %285 = arith.mulf %281, %284 : vector<8x1024xf32>
    %c953_i32_165 = arith.constant 953 : i32
    %286 = tpu.dynamic_rotate %169 by %c953_i32_165 dim 1 : vector<8x1024xf32>, i32 -> vector<8x1024xf32>
    %c24_166 = arith.constant 24 : index
    %c0_167 = arith.constant 0 : index
    %c0_168 = arith.constant 0 : index
    %287 = vector.load %arg1[%c24_166, %c0_167, %c0_168] : memref<27x1x1024xf32, #tpu.memory_space<vmem>>, vector<1x1x1024xf32>
    %288 = vector.shape_cast %287 : vector<1x1x1024xf32> to vector<1x1024xf32>
    %289 = vector.broadcast %288 : vector<1x1024xf32> to vector<8x1024xf32>
    %290 = arith.mulf %286, %289 : vector<8x1024xf32>
    %c952_i32_169 = arith.constant 952 : i32
    %291 = tpu.dynamic_rotate %169 by %c952_i32_169 dim 1 : vector<8x1024xf32>, i32 -> vector<8x1024xf32>
    %c25_170 = arith.constant 25 : index
    %c0_171 = arith.constant 0 : index
    %c0_172 = arith.constant 0 : index
    %292 = vector.load %arg1[%c25_170, %c0_171, %c0_172] : memref<27x1x1024xf32, #tpu.memory_space<vmem>>, vector<1x1x1024xf32>
    %293 = vector.shape_cast %292 : vector<1x1x1024xf32> to vector<1x1024xf32>
    %294 = vector.broadcast %293 : vector<1x1024xf32> to vector<8x1024xf32>
    %295 = arith.mulf %291, %294 : vector<8x1024xf32>
    %c951_i32_173 = arith.constant 951 : i32
    %296 = tpu.dynamic_rotate %169 by %c951_i32_173 dim 1 : vector<8x1024xf32>, i32 -> vector<8x1024xf32>
    %c26_174 = arith.constant 26 : index
    %c0_175 = arith.constant 0 : index
    %c0_176 = arith.constant 0 : index
    %297 = vector.load %arg1[%c26_174, %c0_175, %c0_176] : memref<27x1x1024xf32, #tpu.memory_space<vmem>>, vector<1x1x1024xf32>
    %298 = vector.shape_cast %297 : vector<1x1x1024xf32> to vector<1x1024xf32>
    %299 = vector.broadcast %298 : vector<1x1024xf32> to vector<8x1024xf32>
    %300 = arith.mulf %296, %299 : vector<8x1024xf32>
    %301 = tpu.concatenate %175, %180, %185, %190, %195, %200, %205, %210, %215, %220, %225, %230, %235, %169, %240, %245 in 0 : vector<8x1024xf32>, vector<8x1024xf32>, vector<8x1024xf32>, vector<8x1024xf32>, vector<8x1024xf32>, vector<8x1024xf32>, vector<8x1024xf32>, vector<8x1024xf32>, vector<8x1024xf32>, vector<8x1024xf32>, vector<8x1024xf32>, vector<8x1024xf32>, vector<8x1024xf32>, vector<8x1024xf32>, vector<8x1024xf32>, vector<8x1024xf32> -> vector<128x1024xf32>
    %302 = tpu.concatenate %250, %255, %260, %265, %270, %275, %280, %285, %290, %295, %300 in 0 : vector<8x1024xf32>, vector<8x1024xf32>, vector<8x1024xf32>, vector<8x1024xf32>, vector<8x1024xf32>, vector<8x1024xf32>, vector<8x1024xf32>, vector<8x1024xf32>, vector<8x1024xf32>, vector<8x1024xf32>, vector<8x1024xf32> -> vector<88x1024xf32>
    %303 = tpu.concatenate %301, %302 in 0 : vector<128x1024xf32>, vector<88x1024xf32> -> vector<216x1024xf32>
    %cst_177 = arith.constant dense<0.000000e+00> : vector<8x1024xf32>
    %304 = tpu.matmul %170, %303, %cst_177 {dimension_numbers = #tpu.dot_dimension_numbers<[1], [0], [0], [1], [0, 0, 1, 1], [], []>} : vector<8x216xf32>, vector<216x1024xf32>, vector<8x1024xf32> -> vector<8x1024xf32>
    %c0_178 = arith.constant 0 : index
    %c0_179 = arith.constant 0 : index
    %305 = vector.load %arg4[%c0_178, %c0_179] : memref<8x8xf32, #tpu.memory_space<vmem>>, vector<8x8xf32>
    %cst_180 = arith.constant dense<0.000000e+00> : vector<8x1024xf32>
    %306 = tpu.matmul %305, %6, %cst_180 {dimension_numbers = #tpu.dot_dimension_numbers<[1], [0], [0], [1], [0, 0, 1, 1], [], []>} : vector<8x8xf32>, vector<8x1024xf32>, vector<8x1024xf32> -> vector<8x1024xf32>
    %c0_181 = arith.constant 0 : index
    %c0_182 = arith.constant 0 : index
    %307 = vector.load %arg9[%c0_181, %c0_182] : memref<8x1xf32, #tpu.memory_space<vmem>>, vector<8x1xf32>
    %c0_183 = arith.constant 0 : index
    %c0_184 = arith.constant 0 : index
    %308 = vector.load %arg10[%c0_183, %c0_184] : memref<8x1xf32, #tpu.memory_space<vmem>>, vector<8x1xf32>
    %cst_185 = arith.constant dense<0.000000e+00> : vector<8xf32>
    %309 = vector.multi_reduction <add>, %306, %cst_185 [1] : vector<8x1024xf32> to vector<8xf32>
    %310 = vector.shape_cast %309 : vector<8xf32> to vector<8x1xf32>
    %cst_186 = arith.constant 1.024000e+03 : f32
    %311 = vector.broadcast %cst_186 : f32 to vector<8x1xf32>
    %312 = arith.divf %310, %311 : vector<8x1xf32>
    %313 = vector.broadcast %312 : vector<8x1xf32> to vector<8x1024xf32>
    %314 = arith.subf %306, %313 : vector<8x1024xf32>
    %315 = vector.broadcast %312 : vector<8x1xf32> to vector<8x1024xf32>
    %316 = arith.subf %306, %315 : vector<8x1024xf32>
    %317 = arith.mulf %314, %316 : vector<8x1024xf32>
    %cst_187 = arith.constant dense<0.000000e+00> : vector<8xf32>
    %318 = vector.multi_reduction <add>, %317, %cst_187 [1] : vector<8x1024xf32> to vector<8xf32>
    %319 = vector.shape_cast %318 : vector<8xf32> to vector<8x1xf32>
    %cst_188 = arith.constant 1.024000e+03 : f32
    %320 = vector.broadcast %cst_188 : f32 to vector<8x1xf32>
    %321 = arith.divf %319, %320 : vector<8x1xf32>
    %322 = vector.broadcast %312 : vector<8x1xf32> to vector<8x1024xf32>
    %323 = arith.subf %306, %322 : vector<8x1024xf32>
    %cst_189 = arith.constant 1.000000e-03 : f32
    %324 = vector.broadcast %cst_189 : f32 to vector<8x1xf32>
    %325 = arith.addf %321, %324 : vector<8x1xf32>
    %326 = math.rsqrt %325 : vector<8x1xf32>
    %327 = vector.broadcast %326 : vector<8x1xf32> to vector<8x1024xf32>
    %328 = arith.mulf %323, %327 : vector<8x1024xf32>
    %329 = vector.broadcast %307 : vector<8x1xf32> to vector<8x1024xf32>
    %330 = arith.mulf %328, %329 : vector<8x1024xf32>
    %331 = vector.broadcast %308 : vector<8x1xf32> to vector<8x1024xf32>
    %332 = arith.addf %330, %331 : vector<8x1024xf32>
    %c0_190 = arith.constant 0 : index
    %c0_191 = arith.constant 0 : index
    %333 = vector.load %arg7[%c0_190, %c0_191] : memref<8x1xf32, #tpu.memory_space<vmem>>, vector<8x1xf32>
    %c0_192 = arith.constant 0 : index
    %c0_193 = arith.constant 0 : index
    %334 = vector.load %arg8[%c0_192, %c0_193] : memref<8x1xf32, #tpu.memory_space<vmem>>, vector<8x1xf32>
    %cst_194 = arith.constant dense<0.000000e+00> : vector<8xf32>
    %335 = vector.multi_reduction <add>, %304, %cst_194 [1] : vector<8x1024xf32> to vector<8xf32>
    %336 = vector.shape_cast %335 : vector<8xf32> to vector<8x1xf32>
    %cst_195 = arith.constant 1.024000e+03 : f32
    %337 = vector.broadcast %cst_195 : f32 to vector<8x1xf32>
    %338 = arith.divf %336, %337 : vector<8x1xf32>
    %339 = vector.broadcast %338 : vector<8x1xf32> to vector<8x1024xf32>
    %340 = arith.subf %304, %339 : vector<8x1024xf32>
    %341 = vector.broadcast %338 : vector<8x1xf32> to vector<8x1024xf32>
    %342 = arith.subf %304, %341 : vector<8x1024xf32>
    %343 = arith.mulf %340, %342 : vector<8x1024xf32>
    %cst_196 = arith.constant dense<0.000000e+00> : vector<8xf32>
    %344 = vector.multi_reduction <add>, %343, %cst_196 [1] : vector<8x1024xf32> to vector<8xf32>
    %345 = vector.shape_cast %344 : vector<8xf32> to vector<8x1xf32>
    %cst_197 = arith.constant 1.024000e+03 : f32
    %346 = vector.broadcast %cst_197 : f32 to vector<8x1xf32>
    %347 = arith.divf %345, %346 : vector<8x1xf32>
    %348 = vector.broadcast %338 : vector<8x1xf32> to vector<8x1024xf32>
    %349 = arith.subf %304, %348 : vector<8x1024xf32>
    %cst_198 = arith.constant 1.000000e-03 : f32
    %350 = vector.broadcast %cst_198 : f32 to vector<8x1xf32>
    %351 = arith.addf %347, %350 : vector<8x1xf32>
    %352 = math.rsqrt %351 : vector<8x1xf32>
    %353 = vector.broadcast %352 : vector<8x1xf32> to vector<8x1024xf32>
    %354 = arith.mulf %349, %353 : vector<8x1024xf32>
    %355 = vector.broadcast %333 : vector<8x1xf32> to vector<8x1024xf32>
    %356 = arith.mulf %354, %355 : vector<8x1024xf32>
    %357 = vector.broadcast %334 : vector<8x1xf32> to vector<8x1024xf32>
    %358 = arith.addf %356, %357 : vector<8x1024xf32>
    %359 = arith.addf %358, %332 : vector<8x1024xf32>
    %cst_199 = arith.constant 0.000000e+00 : f32
    %360 = vector.broadcast %cst_199 : f32 to vector<8x1024xf32>
    %361 = arith.maximumf %359, %360 : vector<8x1024xf32>
    %362 = vector.extract_strided_slice %361 {offsets = [0, 0], sizes = [8, 512], strides = [1, 1]} : vector<8x1024xf32> to vector<8x512xf32>
    %c0_200 = arith.constant 0 : index
    %c0_201 = arith.constant 0 : index
    %c0_202 = arith.constant 0 : index
    %363 = vector.load %arg11[%c0_200, %c0_201, %c0_202] : memref<2x8x512xf32, #tpu.memory_space<vmem>>, vector<1x8x512xf32>
    %364 = vector.shape_cast %363 : vector<1x8x512xf32> to vector<8x512xf32>
    %365 = vector.shape_cast %362 : vector<8x512xf32> to vector<1x8x512xf32>
    tpu.vector_store %arg11[%c0_200, %c0_201, %c0_202], %365 {strides = array<i32>} : memref<2x8x512xf32, #tpu.memory_space<vmem>>, vector<1x8x512xf32>,
    %366 = vector.extract_strided_slice %361 {offsets = [0, 512], sizes = [8, 512], strides = [1, 1]} : vector<8x1024xf32> to vector<8x512xf32>
    %c1_203 = arith.constant 1 : index
    %c0_204 = arith.constant 0 : index
    %c0_205 = arith.constant 0 : index
    %367 = vector.load %arg11[%c1_203, %c0_204, %c0_205] : memref<2x8x512xf32, #tpu.memory_space<vmem>>, vector<1x8x512xf32>
    %368 = vector.shape_cast %367 : vector<1x8x512xf32> to vector<8x512xf32>
    %369 = vector.shape_cast %366 : vector<8x512xf32> to vector<1x8x512xf32>
    tpu.vector_store %arg11[%c1_203, %c0_204, %c0_205], %369 {strides = array<i32>} : memref<2x8x512xf32, #tpu.memory_space<vmem>>, vector<1x8x512xf32>,
    return
  }
}

</mosaic_0001>

<llo_original>
// kernel: tpu_custom_call.1
$region0: #{tpu_custom_call.1}
  #allocation0 [shape = 'u32[]', space=smem, size = 0x4, offset = 0x4, fixed_abs, tag = 'smem constant byte address 0x4 - core index']
  #allocation1 [shape = 'u32[144,128]{1,0:T(1,128)}', space=vmem, size = 0x12000, scoped, tag = 'internal scratch']
  %s0 = inlined_call_operand.vmem [shape: f32[2,4,512], index: 0, kind: input, shape index: {}]
  %s1 = inlined_call_operand.hbm [shape: f32[27,1,1024], index: 1, kind: input, shape index: {}]
  %s2 = inlined_call_operand.vmem [shape: f32[8,216], index: 2, kind: input, shape index: {}]
  %s3 = inlined_call_operand.vmem [shape: f32[8,216], index: 3, kind: input, shape index: {}]
  %s4 = inlined_call_operand.hbm [shape: f32[8,8], index: 4, kind: input, shape index: {}]
  %s5 = inlined_call_operand.vmem [shape: f32[8,1], index: 5, kind: input, shape index: {}]
  %s6 = inlined_call_operand.vmem [shape: f32[8,1], index: 6, kind: input, shape index: {}]
  %s7 = inlined_call_operand.vmem [shape: f32[8,1], index: 7, kind: input, shape index: {}]
  %s8 = inlined_call_operand.vmem [shape: f32[8,1], index: 8, kind: input, shape index: {}]
  %s9 = inlined_call_operand.vmem [shape: f32[8,1], index: 9, kind: input, shape index: {}]
  %s10 = inlined_call_operand.vmem [shape: f32[8,1], index: 10, kind: input, shape index: {}]
  %s11 = inlined_call_operand.hbm [shape: f32[2,8,512], index: 11, kind: output, shape index: {}]
  %s12 = sld [smem:[#allocation0]]
  $region62: #{tpu_custom_call.1} parent=0
    _
  %s14 = ssub.s32 1, %s12
  %s15 = scalar_select 0, %s14, %s12
  $region1: #{tpu_custom_call.1} parent=0
    #allocation2 [shape = 'u8[110592]{0}', space=vmem, size = 0x1b000, scoped, tag = 'input window, operand 1, single buffered']
    #allocation3 [shape = 's32[1]{0}', space=sflag, size = 0x4, scoped, tag = 'scoped memory for tpu_custom_call.1']
    #allocation4 [shape = 's32[1]{0}', space=sflag, size = 0x4, scoped, tag = 'scoped memory for tpu_custom_call.1']
    #allocation5 [shape = 'u8[4096]{0}', space=vmem, size = 0x1000, scoped, tag = 'input window, operand 4, single buffered']
    #allocation6 [shape = 's32[1]{0}', space=sflag, size = 0x4, scoped, tag = 'scoped memory for tpu_custom_call.1']
    #allocation7 [shape = 'u8[32768]{0}', space=vmem, size = 0x8000, scoped, tag = 'output window, operand 0, single buffered']
    %16 = vsyncpa [#allocation3], 0
    %17 = vsyncpa [#allocation6], 0
    %18 = vsyncpa [#allocation4], 0
    // Predicated region
    $region2: #{tpu_custom_call.1} parent=1 // pred_check
      _
    $region3: #{tpu_custom_call.1} parent=1 // pred_check_branch
      %20 = sbr.rel (0) target = $region5
    $region4: #{tpu_custom_call.1} parent=1 // pred_region
      _
    $region5: #{tpu_custom_call.1} parent=1 // pred_fallthru
      _
    // Predicated region
    $region6: #{tpu_custom_call.1} parent=1 // pred_check
      _
    $region7: #{tpu_custom_call.1} parent=1 // pred_check_branch
      %22 = sbr.rel (0) target = $region9
    $region8: #{tpu_custom_call.1} parent=1 // pred_region
      %s24 = ssub.s32 3456, 3456
      %25 = vsyncadd [#allocation3], %s24
      %s26 = sshll.u32 [#allocation2], 4
      %s27 = int_to_ptr.vmem [resolvable:$true] %s26
      %32 = dma.hbm_to_vmem [thread:$0]  %s1, 3456, %s27, [#allocation3], 128, 128, 8
    $region9: #{tpu_custom_call.1} parent=1 // pred_fallthru
      _
    // Predicated region
    $region10: #{tpu_custom_call.1} parent=1 // pred_check
      _
    $region11: #{tpu_custom_call.1} parent=1 // pred_check_branch
      %34 = sbr.rel (0) target = $region13
    $region12: #{tpu_custom_call.1} parent=1 // pred_region
      _
    $region13: #{tpu_custom_call.1} parent=1 // pred_fallthru
      _
    // Predicated region
    $region14: #{tpu_custom_call.1} parent=1 // pred_check
      _
    $region15: #{tpu_custom_call.1} parent=1 // pred_check_branch
      %36 = sbr.rel (0) target = $region17
    $region16: #{tpu_custom_call.1} parent=1 // pred_region
      _
    $region17: #{tpu_custom_call.1} parent=1 // pred_fallthru
      _
    // Predicated region
    $region18: #{tpu_custom_call.1} parent=1 // pred_check
      _
    $region19: #{tpu_custom_call.1} parent=1 // pred_check_branch
      %38 = sbr.rel (0) target = $region21
    $region20: #{tpu_custom_call.1} parent=1 // pred_region
      %s40 = ssub.s32 128, 128
      %41 = vsyncadd [#allocation6], %s40
      %s43 = sshll.u32 [#allocation5], 4
      %s44 = int_to_ptr.vmem [resolvable:$true] %s43
      %46 = dma.hbm_to_vmem [thread:$0]  %s4, 128, %s44, [#allocation6]
    $region21: #{tpu_custom_call.1} parent=1 // pred_fallthru
      _
    // Predicated region
    $region22: #{tpu_custom_call.1} parent=1 // pred_check
      _
    $region23: #{tpu_custom_call.1} parent=1 // pred_check_branch
      %48 = sbr.rel (0) target = $region25
    $region24: #{tpu_custom_call.1} parent=1 // pred_region
      _
    $region25: #{tpu_custom_call.1} parent=1 // pred_fallthru
      _
    // Predicated region
    $region26: #{tpu_custom_call.1} parent=1 // pred_check
      _
    $region27: #{tpu_custom_call.1} parent=1 // pred_check_branch
      %50 = sbr.rel (0) target = $region29
    $region28: #{tpu_custom_call.1} parent=1 // pred_region
      _
    $region29: #{tpu_custom_call.1} parent=1 // pred_fallthru
      _
    // Predicated region
    $region30: #{tpu_custom_call.1} parent=1 // pred_check
      _
    $region31: #{tpu_custom_call.1} parent=1 // pred_check_branch
      %52 = sbr.rel (0) target = $region33
    $region32: #{tpu_custom_call.1} parent=1 // pred_region
      _
    $region33: #{tpu_custom_call.1} parent=1 // pred_fallthru
      _
    // Predicated region
    $region34: #{tpu_custom_call.1} parent=1 // pred_check
      _
    $region35: #{tpu_custom_call.1} parent=1 // pred_check_branch
      %54 = sbr.rel (0) target = $region37
    $region36: #{tpu_custom_call.1} parent=1 // pred_region
      _
    $region37: #{tpu_custom_call.1} parent=1 // pred_fallthru
      _
    // Predicated region
    $region38: #{tpu_custom_call.1} parent=1 // pred_check
      _
    $region39: #{tpu_custom_call.1} parent=1 // pred_check_branch
      %56 = sbr.rel (0) target = $region41
    $region40: #{tpu_custom_call.1} parent=1 // pred_region
      _
    $region41: #{tpu_custom_call.1} parent=1 // pred_fallthru
      _
    // Predicated region
    $region42: #{tpu_custom_call.1} parent=1 // pred_check
      _
    $region43: #{tpu_custom_call.1} parent=1 // pred_check_branch
      %58 = sbr.rel (0) target = $region45
    $region44: #{tpu_custom_call.1} parent=1 // pred_region
      _
    $region45: #{tpu_custom_call.1} parent=1 // pred_fallthru
      _
    // Predicated region
    $region46: #{tpu_custom_call.1} parent=1 // pred_check
      _
    $region47: #{tpu_custom_call.1} parent=1 // pred_check_branch
      %60 = sbr.rel (0) target = $region49
    $region48: #{tpu_custom_call.1} parent=1 // pred_region
      %61 = dma.done [#allocation3], 3456
    $region49: #{tpu_custom_call.1} parent=1 // pred_fallthru
      _
    // Predicated region
    $region50: #{tpu_custom_call.1} parent=1 // pred_check
      _
    $region51: #{tpu_custom_call.1} parent=1 // pred_check_branch
      %63 = sbr.rel (0) target = $region53
    $region52: #{tpu_custom_call.1} parent=1 // pred_region
      %64 = dma.done [#allocation6], 128
    $region53: #{tpu_custom_call.1} parent=1 // pred_fallthru
      _
    %v65 = vld [vmem:[%s0] sm:$0xff]
    %v66 = vld [vmem:[%s0 + $0x8] sm:$0xff]
    %s67 = scalar_lea.vmem %s0, 16
    %v68 = vld [vmem:[%s67] sm:$0xff]
    %v69 = vld [vmem:[%s67 + $0x8] sm:$0xff]
    %v72 = vcombine.high %v65, %v65
    %v73 = vcombine.high %v66, %v66
    %v78 = vcombine.high %v68, %v68
    %v79 = vcombine.high %v69, %v69
    %vm82 = vcmask 1043456
    %v83 = vsel %vm82, %v65, 0.0
    %v84 = vsel %vm82, %v72, 0.0
    %v85 = vsel %vm82, %v66, 0.0
    %v86 = vsel %vm82, %v73, 0.0
    %v87 = vsel %vm82, %v68, 0.0
    %v88 = vsel %vm82, %v78, 0.0
    %v89 = vsel %vm82, %v69, 0.0
    %v90 = vsel %vm82, %v79, 0.0
    %v91 = vld [vmem:[%s2] sm:$0xff]
    %v92 = vld [vmem:[%s2 + $0x8] sm:$0xff]
    %93 = vrot.lane.b32.xlu0 %v83, 73
    %v94 = vpop.permute.xlu0 %93
    %95 = vrot.lane.b32.xlu0 %v84, 73
    %v96 = vpop.permute.xlu0 %95
    %97 = vrot.lane.b32.xlu0 %v85, 73
    %v98 = vpop.permute.xlu0 %97
    %99 = vrot.lane.b32.xlu0 %v86, 73
    %v100 = vpop.permute.xlu0 %99
    %101 = vrot.lane.b32.xlu0 %v87, 73
    %v102 = vpop.permute.xlu0 %101
    %103 = vrot.lane.b32.xlu0 %v88, 73
    %v104 = vpop.permute.xlu0 %103
    %105 = vrot.lane.b32.xlu0 %v89, 73
    %v106 = vpop.permute.xlu0 %105
    %107 = vrot.lane.b32.xlu0 %v90, 73
    %v108 = vpop.permute.xlu0 %107
    %v109 = vlaneseq
    %v110 = vand.u32 %v109, 127
    %vm111 = vcmp.lt.s32.totalorder %v110, 73
    %v112 = vsel %vm111, %v106, %v108
    %v113 = vsel %vm111, %v104, %v106
    %v114 = vsel %vm111, %v102, %v104
    %v115 = vsel %vm111, %v100, %v102
    %v116 = vsel %vm111, %v98, %v100
    %v117 = vsel %vm111, %v96, %v98
    %v118 = vsel %vm111, %v94, %v96
    %v119 = vsel %vm111, %v108, %v94
    %v120 = vld [vmem:[#allocation2] sm:$0xff]
    %v122 = vlaneseq
    %v123 = vshrl.u32 %v122, 7
    %v124 = vsub.s32 0, %v123
    %v125 = vrot.slane %v120, %v124
    %v126 = vlaneseq
    %v127 = vshrl.u32 %v126, 7
    %v128 = vsub.s32 1, %v127
    %v129 = vrot.slane %v120, %v128
    %v130 = vlaneseq
    %v131 = vshrl.u32 %v130, 7
    %v132 = vsub.s32 2, %v131
    %v133 = vrot.slane %v120, %v132
    %v134 = vlaneseq
    %v135 = vshrl.u32 %v134, 7
    %v136 = vsub.s32 3, %v135
    %v137 = vrot.slane %v120, %v136
    %v138 = vlaneseq
    %v139 = vshrl.u32 %v138, 7
    %v140 = vsub.s32 4, %v139
    %v141 = vrot.slane %v120, %v140
    %v142 = vlaneseq
    %v143 = vshrl.u32 %v142, 7
    %v144 = vsub.s32 5, %v143
    %v145 = vrot.slane %v120, %v144
    %v146 = vlaneseq
    %v147 = vshrl.u32 %v146, 7
    %v148 = vsub.s32 6, %v147
    %v149 = vrot.slane %v120, %v148
    %v150 = vlaneseq
    %v151 = vshrl.u32 %v150, 7
    %v152 = vsub.s32 7, %v151
    %v153 = vrot.slane %v120, %v152
    %v162 = vmul.f32 %v119, %v125
    %v163 = vmul.f32 %v118, %v129
    %v164 = vmul.f32 %v117, %v133
    %v165 = vmul.f32 %v116, %v137
    %v166 = vmul.f32 %v115, %v141
    %v167 = vmul.f32 %v114, %v145
    %v168 = vmul.f32 %v113, %v149
    %v169 = vmul.f32 %v112, %v153
    %170 = vrot.lane.b32.xlu0 %v83, 72
    %v171 = vpop.permute.xlu0 %170
    %172 = vrot.lane.b32.xlu0 %v84, 72
    %v173 = vpop.permute.xlu0 %172
    %174 = vrot.lane.b32.xlu0 %v85, 72
    %v175 = vpop.permute.xlu0 %174
    %176 = vrot.lane.b32.xlu0 %v86, 72
    %v177 = vpop.permute.xlu0 %176
    %178 = vrot.lane.b32.xlu0 %v87, 72
    %v179 = vpop.permute.xlu0 %178
    %180 = vrot.lane.b32.xlu0 %v88, 72
    %v181 = vpop.permute.xlu0 %180
    %182 = vrot.lane.b32.xlu0 %v89, 72
    %v183 = vpop.permute.xlu0 %182
    %184 = vrot.lane.b32.xlu0 %v90, 72
    %v185 = vpop.permute.xlu0 %184
    %vm186 = vcmp.lt.s32.totalorder %v110, 72
    %v187 = vsel %vm186, %v183, %v185
    %v188 = vsel %vm186, %v181, %v183
    %v189 = vsel %vm186, %v179, %v181
    %v190 = vsel %vm186, %v177, %v179
    %v191 = vsel %vm186, %v175, %v177
    %v192 = vsel %vm186, %v173, %v175
    %v193 = vsel %vm186, %v171, %v173
    %v194 = vsel %vm186, %v185, %v171
    %s195 = scalar_lea.vmem [#allocation2], 8
    %v196 = vld [vmem:[%s195] sm:$0xff]
    %v198 = vlaneseq
    %v199 = vshrl.u32 %v198, 7
    %v200 = vsub.s32 0, %v199
    %v201 = vrot.slane %v196, %v200
    %v202 = vlaneseq
    %v203 = vshrl.u32 %v202, 7
    %v204 = vsub.s32 1, %v203
    %v205 = vrot.slane %v196, %v204
    %v206 = vlaneseq
    %v207 = vshrl.u32 %v206, 7
    %v208 = vsub.s32 2, %v207
    %v209 = vrot.slane %v196, %v208
    %v210 = vlaneseq
    %v211 = vshrl.u32 %v210, 7
    %v212 = vsub.s32 3, %v211
    %v213 = vrot.slane %v196, %v212
    %v214 = vlaneseq
    %v215 = vshrl.u32 %v214, 7
    %v216 = vsub.s32 4, %v215
    %v217 = vrot.slane %v196, %v216
    %v218 = vlaneseq
    %v219 = vshrl.u32 %v218, 7
    %v220 = vsub.s32 5, %v219
    %v221 = vrot.slane %v196, %v220
    %v222 = vlaneseq
    %v223 = vshrl.u32 %v222, 7
    %v224 = vsub.s32 6, %v223
    %v225 = vrot.slane %v196, %v224
    %v226 = vlaneseq
    %v227 = vshrl.u32 %v226, 7
    %v228 = vsub.s32 7, %v227
    %v229 = vrot.slane %v196, %v228
    %v238 = vmul.f32 %v194, %v201
    %v239 = vmul.f32 %v193, %v205
    %v240 = vmul.f32 %v192, %v209
    %v241 = vmul.f32 %v191, %v213
    %v242 = vmul.f32 %v190, %v217
    %v243 = vmul.f32 %v189, %v221
    %v244 = vmul.f32 %v188, %v225
    %v245 = vmul.f32 %v187, %v229
    %246 = vrot.lane.b32.xlu0 %v83, 71
    %v247 = vpop.permute.xlu0 %246
    %248 = vrot.lane.b32.xlu0 %v84, 71
    %v249 = vpop.permute.xlu0 %248
    %250 = vrot.lane.b32.xlu0 %v85, 71
    %v251 = vpop.permute.xlu0 %250
    %252 = vrot.lane.b32.xlu0 %v86, 71
    %v253 = vpop.permute.xlu0 %252
    %254 = vrot.lane.b32.xlu0 %v87, 71
    %v255 = vpop.permute.xlu0 %254
    %256 = vrot.lane.b32.xlu0 %v88, 71
    %v257 = vpop.permute.xlu0 %256
    %258 = vrot.lane.b32.xlu0 %v89, 71
    %v259 = vpop.permute.xlu0 %258
    %260 = vrot.lane.b32.xlu0 %v90, 71
    %v261 = vpop.permute.xlu0 %260
    %vm262 = vcmp.lt.s32.totalorder %v110, 71
    %v263 = vsel %vm262, %v259, %v261
    %v264 = vsel %vm262, %v257, %v259
    %v265 = vsel %vm262, %v255, %v257
    %v266 = vsel %vm262, %v253, %v255
    %v267 = vsel %vm262, %v251, %v253
    %v268 = vsel %vm262, %v249, %v251
    %v269 = vsel %vm262, %v247, %v249
    %v270 = vsel %vm262, %v261, %v247
    %s271 = scalar_lea.vmem [#allocation2], 16
    %v272 = vld [vmem:[%s271] sm:$0xff]
    %v274 = vlaneseq
    %v275 = vshrl.u32 %v274, 7
    %v276 = vsub.s32 0, %v275
    %v277 = vrot.slane %v272, %v276
    %v278 = vlaneseq
    %v279 = vshrl.u32 %v278, 7
    %v280 = vsub.s32 1, %v279
    %v281 = vrot.slane %v272, %v280
    %v282 = vlaneseq
    %v283 = vshrl.u32 %v282, 7
    %v284 = vsub.s32 2, %v283
    %v285 = vrot.slane %v272, %v284
    %v286 = vlaneseq
    %v287 = vshrl.u32 %v286, 7
    %v288 = vsub.s32 3, %v287
    %v289 = vrot.slane %v272, %v288
    %v290 = vlaneseq
    %v291 = vshrl.u32 %v290, 7
    %v292 = vsub.s32 4, %v291
    %v293 = vrot.slane %v272, %v292
    %v294 = vlaneseq
    %v295 = vshrl.u32 %v294, 7
    %v296 = vsub.s32 5, %v295
    %v297 = vrot.slane %v272, %v296
    %v298 = vlaneseq
    %v299 = vshrl.u32 %v298, 7
    %v300 = vsub.s32 6, %v299
    %v301 = vrot.slane %v272, %v300
    %v302 = vlaneseq
    %v303 = vshrl.u32 %v302, 7
    %v304 = vsub.s32 7, %v303
    %v305 = vrot.slane %v272, %v304
    %v314 = vmul.f32 %v270, %v277
    %v315 = vmul.f32 %v269, %v281
    %v316 = vmul.f32 %v268, %v285
    %v317 = vmul.f32 %v267, %v289
    %v318 = vmul.f32 %v266, %v293
    %v319 = vmul.f32 %v265, %v297
    %v320 = vmul.f32 %v264, %v301
    %v321 = vmul.f32 %v263, %v305
    %322 = vrot.lane.b32.xlu0 %v83, 65
    %v323 = vpop.permute.xlu0 %322
    %324 = vrot.lane.b32.xlu0 %v84, 65
    %v325 = vpop.permute.xlu0 %324
    %326 = vrot.lane.b32.xlu0 %v85, 65
    %v327 = vpop.permute.xlu0 %326
    %328 = vrot.lane.b32.xlu0 %v86, 65
    %v329 = vpop.permute.xlu0 %328
    %330 = vrot.lane.b32.xlu0 %v87, 65
    %v331 = vpop.permute.xlu0 %330
    %332 = vrot.lane.b32.xlu0 %v88, 65
    %v333 = vpop.permute.xlu0 %332
    %334 = vrot.lane.b32.xlu0 %v89, 65
    %v335 = vpop.permute.xlu0 %334
    %336 = vrot.lane.b32.xlu0 %v90, 65
    %v337 = vpop.permute.xlu0 %336
    %vm338 = vcmp.lt.s32.totalorder %v110, 65
    %v339 = vsel %vm338, %v335, %v337
    %v340 = vsel %vm338, %v333, %v335
    %v341 = vsel %vm338, %v331, %v333
    %v342 = vsel %vm338, %v329, %v331
    %v343 = vsel %vm338, %v327, %v329
    %v344 = vsel %vm338, %v325, %v327
    %v345 = vsel %vm338, %v323, %v325
    %v346 = vsel %vm338, %v337, %v323
    %s347 = scalar_lea.vmem [#allocation2], 24
    %v348 = vld [vmem:[%s347] sm:$0xff]
    %v350 = vlaneseq
    %v351 = vshrl.u32 %v350, 7
    %v352 = vsub.s32 0, %v351
    %v353 = vrot.slane %v348, %v352
    %v354 = vlaneseq
    %v355 = vshrl.u32 %v354, 7
    %v356 = vsub.s32 1, %v355
    %v357 = vrot.slane %v348, %v356
    %v358 = vlaneseq
    %v359 = vshrl.u32 %v358, 7
    %v360 = vsub.s32 2, %v359
    %v361 = vrot.slane %v348, %v360
    %v362 = vlaneseq
    %v363 = vshrl.u32 %v362, 7
    %v364 = vsub.s32 3, %v363
    %v365 = vrot.slane %v348, %v364
    %v366 = vlaneseq
    %v367 = vshrl.u32 %v366, 7
    %v368 = vsub.s32 4, %v367
    %v369 = vrot.slane %v348, %v368
    %v370 = vlaneseq
    %v371 = vshrl.u32 %v370, 7
    %v372 = vsub.s32 5, %v371
    %v373 = vrot.slane %v348, %v372
    %v374 = vlaneseq
    %v375 = vshrl.u32 %v374, 7
    %v376 = vsub.s32 6, %v375
    %v377 = vrot.slane %v348, %v376
    %v378 = vlaneseq
    %v379 = vshrl.u32 %v378, 7
    %v380 = vsub.s32 7, %v379
    %v381 = vrot.slane %v348, %v380
    %v390 = vmul.f32 %v346, %v353
    %v391 = vmul.f32 %v345, %v357
    %v392 = vmul.f32 %v344, %v361
    %v393 = vmul.f32 %v343, %v365
    %v394 = vmul.f32 %v342, %v369
    %v395 = vmul.f32 %v341, %v373
    %v396 = vmul.f32 %v340, %v377
    %v397 = vmul.f32 %v339, %v381
    %398 = vrot.lane.b32.xlu0 %v83, 64
    %v399 = vpop.permute.xlu0 %398
    %400 = vrot.lane.b32.xlu0 %v84, 64
    %v401 = vpop.permute.xlu0 %400
    %402 = vrot.lane.b32.xlu0 %v85, 64
    %v403 = vpop.permute.xlu0 %402
    %404 = vrot.lane.b32.xlu0 %v86, 64
    %v405 = vpop.permute.xlu0 %404
    %406 = vrot.lane.b32.xlu0 %v87, 64
    %v407 = vpop.permute.xlu0 %406
    %408 = vrot.lane.b32.xlu0 %v88, 64
    %v409 = vpop.permute.xlu0 %408
    %410 = vrot.lane.b32.xlu0 %v89, 64
    %v411 = vpop.permute.xlu0 %410
    %412 = vrot.lane.b32.xlu0 %v90, 64
    %v413 = vpop.permute.xlu0 %412
    %vm414 = vcmp.lt.s32.totalorder %v110, 64
    %v415 = vsel %vm414, %v411, %v413
    %v416 = vsel %vm414, %v409, %v411
    %v417 = vsel %vm414, %v407, %v409
    %v418 = vsel %vm414, %v405, %v407
    %v419 = vsel %vm414, %v403, %v405
    %v420 = vsel %vm414, %v401, %v403
    %v421 = vsel %vm414, %v399, %v401
    %v422 = vsel %vm414, %v413, %v399
    %s423 = scalar_lea.vmem [#allocation2], 32
    %v424 = vld [vmem:[%s423] sm:$0xff]
    %v426 = vlaneseq
    %v427 = vshrl.u32 %v426, 7
    %v428 = vsub.s32 0, %v427
    %v429 = vrot.slane %v424, %v428
    %v430 = vlaneseq
    %v431 = vshrl.u32 %v430, 7
    %v432 = vsub.s32 1, %v431
    %v433 = vrot.slane %v424, %v432
    %v434 = vlaneseq
    %v435 = vshrl.u32 %v434, 7
    %v436 = vsub.s32 2, %v435
    %v437 = vrot.slane %v424, %v436
    %v438 = vlaneseq
    %v439 = vshrl.u32 %v438, 7
    %v440 = vsub.s32 3, %v439
    %v441 = vrot.slane %v424, %v440
    %v442 = vlaneseq
    %v443 = vshrl.u32 %v442, 7
    %v444 = vsub.s32 4, %v443
    %v445 = vrot.slane %v424, %v444
    %v446 = vlaneseq
    %v447 = vshrl.u32 %v446, 7
    %v448 = vsub.s32 5, %v447
    %v449 = vrot.slane %v424, %v448
    %v450 = vlaneseq
    %v451 = vshrl.u32 %v450, 7
    %v452 = vsub.s32 6, %v451
    %v453 = vrot.slane %v424, %v452
    %v454 = vlaneseq
    %v455 = vshrl.u32 %v454, 7
    %v456 = vsub.s32 7, %v455
    %v457 = vrot.slane %v424, %v456
    %v466 = vmul.f32 %v422, %v429
    %v467 = vmul.f32 %v421, %v433
    %v468 = vmul.f32 %v420, %v437
    %v469 = vmul.f32 %v419, %v441
    %v470 = vmul.f32 %v418, %v445
    %v471 = vmul.f32 %v417, %v449
    %v472 = vmul.f32 %v416, %v453
    %v473 = vmul.f32 %v415, %v457
    %474 = vrot.lane.b32.xlu0 %v83, 63
    %v475 = vpop.permute.xlu0 %474
    %476 = vrot.lane.b32.xlu0 %v84, 63
    %v477 = vpop.permute.xlu0 %476
    %478 = vrot.lane.b32.xlu0 %v85, 63
    %v479 = vpop.permute.xlu0 %478
    %480 = vrot.lane.b32.xlu0 %v86, 63
    %v481 = vpop.permute.xlu0 %480
    %482 = vrot.lane.b32.xlu0 %v87, 63
    %v483 = vpop.permute.xlu0 %482
    %484 = vrot.lane.b32.xlu0 %v88, 63
    %v485 = vpop.permute.xlu0 %484
    %486 = vrot.lane.b32.xlu0 %v89, 63
    %v487 = vpop.permute.xlu0 %486
    %488 = vrot.lane.b32.xlu0 %v90, 63
    %v489 = vpop.permute.xlu0 %488
    %vm490 = vcmp.lt.s32.totalorder %v110, 63
    %v491 = vsel %vm490, %v487, %v489
    %v492 = vsel %vm490, %v485, %v487
    %v493 = vsel %vm490, %v483, %v485
    %v494 = vsel %vm490, %v481, %v483
    %v495 = vsel %vm490, %v479, %v481
    %v496 = vsel %vm490, %v477, %v479
    %v497 = vsel %vm490, %v475, %v477
    %v498 = vsel %vm490, %v489, %v475
    %s499 = scalar_lea.vmem [#allocation2], 40
    %v500 = vld [vmem:[%s499] sm:$0xff]
    %v502 = vlaneseq
    %v503 = vshrl.u32 %v502, 7
    %v504 = vsub.s32 0, %v503
    %v505 = vrot.slane %v500, %v504
    %v506 = vlaneseq
    %v507 = vshrl.u32 %v506, 7
    %v508 = vsub.s32 1, %v507
    %v509 = vrot.slane %v500, %v508
    %v510 = vlaneseq
    %v511 = vshrl.u32 %v510, 7
    %v512 = vsub.s32 2, %v511
    %v513 = vrot.slane %v500, %v512
    %v514 = vlaneseq
    %v515 = vshrl.u32 %v514, 7
    %v516 = vsub.s32 3, %v515
    %v517 = vrot.slane %v500, %v516
    %v518 = vlaneseq
    %v519 = vshrl.u32 %v518, 7
    %v520 = vsub.s32 4, %v519
    %v521 = vrot.slane %v500, %v520
    %v522 = vlaneseq
    %v523 = vshrl.u32 %v522, 7
    %v524 = vsub.s32 5, %v523
    %v525 = vrot.slane %v500, %v524
    %v526 = vlaneseq
    %v527 = vshrl.u32 %v526, 7
    %v528 = vsub.s32 6, %v527
    %v529 = vrot.slane %v500, %v528
    %v530 = vlaneseq
    %v531 = vshrl.u32 %v530, 7
    %v532 = vsub.s32 7, %v531
    %v533 = vrot.slane %v500, %v532
    %v542 = vmul.f32 %v498, %v505
    %v543 = vmul.f32 %v497, %v509
    %v544 = vmul.f32 %v496, %v513
    %v545 = vmul.f32 %v495, %v517
    %v546 = vmul.f32 %v494, %v521
    %v547 = vmul.f32 %v493, %v525
    %v548 = vmul.f32 %v492, %v529
    %v549 = vmul.f32 %v491, %v533
    %550 = vrot.lane.b32.xlu0 %v83, 57
    %v551 = vpop.permute.xlu0 %550
    %552 = vrot.lane.b32.xlu0 %v84, 57
    %v553 = vpop.permute.xlu0 %552
    %554 = vrot.lane.b32.xlu0 %v85, 57
    %v555 = vpop.permute.xlu0 %554
    %556 = vrot.lane.b32.xlu0 %v86, 57
    %v557 = vpop.permute.xlu0 %556
    %558 = vrot.lane.b32.xlu0 %v87, 57
    %v559 = vpop.permute.xlu0 %558
    %560 = vrot.lane.b32.xlu0 %v88, 57
    %v561 = vpop.permute.xlu0 %560
    %562 = vrot.lane.b32.xlu0 %v89, 57
    %v563 = vpop.permute.xlu0 %562
    %564 = vrot.lane.b32.xlu0 %v90, 57
    %v565 = vpop.permute.xlu0 %564
    %vm566 = vcmp.lt.s32.totalorder %v110, 57
    %v567 = vsel %vm566, %v563, %v565
    %v568 = vsel %vm566, %v561, %v563
    %v569 = vsel %vm566, %v559, %v561
    %v570 = vsel %vm566, %v557, %v559
    %v571 = vsel %vm566, %v555, %v557
    %v572 = vsel %vm566, %v553, %v555
    %v573 = vsel %vm566, %v551, %v553
    %v574 = vsel %vm566, %v565, %v551
    %s575 = scalar_lea.vmem [#allocation2], 48
    %v576 = vld [vmem:[%s575] sm:$0xff]
    %v578 = vlaneseq
    %v579 = vshrl.u32 %v578, 7
    %v580 = vsub.s32 0, %v579
    %v581 = vrot.slane %v576, %v580
    %v582 = vlaneseq
    %v583 = vshrl.u32 %v582, 7
    %v584 = vsub.s32 1, %v583
    %v585 = vrot.slane %v576, %v584
    %v586 = vlaneseq
    %v587 = vshrl.u32 %v586, 7
    %v588 = vsub.s32 2, %v587
    %v589 = vrot.slane %v576, %v588
    %v590 = vlaneseq
    %v591 = vshrl.u32 %v590, 7
    %v592 = vsub.s32 3, %v591
    %v593 = vrot.slane %v576, %v592
    %v594 = vlaneseq
    %v595 = vshrl.u32 %v594, 7
    %v596 = vsub.s32 4, %v595
    %v597 = vrot.slane %v576, %v596
    %v598 = vlaneseq
    %v599 = vshrl.u32 %v598, 7
    %v600 = vsub.s32 5, %v599
    %v601 = vrot.slane %v576, %v600
    %v602 = vlaneseq
    %v603 = vshrl.u32 %v602, 7
    %v604 = vsub.s32 6, %v603
    %v605 = vrot.slane %v576, %v604
    %v606 = vlaneseq
    %v607 = vshrl.u32 %v606, 7
    %v608 = vsub.s32 7, %v607
    %v609 = vrot.slane %v576, %v608
    %v618 = vmul.f32 %v574, %v581
    %v619 = vmul.f32 %v573, %v585
    %v620 = vmul.f32 %v572, %v589
    %v621 = vmul.f32 %v571, %v593
    %v622 = vmul.f32 %v570, %v597
    %v623 = vmul.f32 %v569, %v601
    %v624 = vmul.f32 %v568, %v605
    %v625 = vmul.f32 %v567, %v609
    %626 = vrot.lane.b32.xlu0 %v83, 56
    %v627 = vpop.permute.xlu0 %626
    %628 = vrot.lane.b32.xlu0 %v84, 56
    %v629 = vpop.permute.xlu0 %628
    %630 = vrot.lane.b32.xlu0 %v85, 56
    %v631 = vpop.permute.xlu0 %630
    %632 = vrot.lane.b32.xlu0 %v86, 56
    %v633 = vpop.permute.xlu0 %632
    %634 = vrot.lane.b32.xlu0 %v87, 56
    %v635 = vpop.permute.xlu0 %634
    %636 = vrot.lane.b32.xlu0 %v88, 56
    %v637 = vpop.permute.xlu0 %636
    %638 = vrot.lane.b32.xlu0 %v89, 56
    %v639 = vpop.permute.xlu0 %638
    %640 = vrot.lane.b32.xlu0 %v90, 56
    %v641 = vpop.permute.xlu0 %640
    %vm642 = vcmp.lt.s32.totalorder %v110, 56
    %v643 = vsel %vm642, %v639, %v641
    %v644 = vsel %vm642, %v637, %v639
    %v645 = vsel %vm642, %v635, %v637
    %v646 = vsel %vm642, %v633, %v635
    %v647 = vsel %vm642, %v631, %v633
    %v648 = vsel %vm642, %v629, %v631
    %v649 = vsel %vm642, %v627, %v629
    %v650 = vsel %vm642, %v641, %v627
    %s651 = scalar_lea.vmem [#allocation2], 56
    %v652 = vld [vmem:[%s651] sm:$0xff]
    %v654 = vlaneseq
    %v655 = vshrl.u32 %v654, 7
    %v656 = vsub.s32 0, %v655
    %v657 = vrot.slane %v652, %v656
    %v658 = vlaneseq
    %v659 = vshrl.u32 %v658, 7
    %v660 = vsub.s32 1, %v659
    %v661 = vrot.slane %v652, %v660
    %v662 = vlaneseq
    %v663 = vshrl.u32 %v662, 7
    %v664 = vsub.s32 2, %v663
    %v665 = vrot.slane %v652, %v664
    %v666 = vlaneseq
    %v667 = vshrl.u32 %v666, 7
    %v668 = vsub.s32 3, %v667
    %v669 = vrot.slane %v652, %v668
    %v670 = vlaneseq
    %v671 = vshrl.u32 %v670, 7
    %v672 = vsub.s32 4, %v671
    %v673 = vrot.slane %v652, %v672
    %v674 = vlaneseq
    %v675 = vshrl.u32 %v674, 7
    %v676 = vsub.s32 5, %v675
    %v677 = vrot.slane %v652, %v676
    %v678 = vlaneseq
    %v679 = vshrl.u32 %v678, 7
    %v680 = vsub.s32 6, %v679
    %v681 = vrot.slane %v652, %v680
    %v682 = vlaneseq
    %v683 = vshrl.u32 %v682, 7
    %v684 = vsub.s32 7, %v683
    %v685 = vrot.slane %v652, %v684
    %v694 = vmul.f32 %v650, %v657
    %v695 = vmul.f32 %v649, %v661
    %v696 = vmul.f32 %v648, %v665
    %v697 = vmul.f32 %v647, %v669
    %v698 = vmul.f32 %v646, %v673
    %v699 = vmul.f32 %v645, %v677
    %v700 = vmul.f32 %v644, %v681
    %v701 = vmul.f32 %v643, %v685
    %702 = vrot.lane.b32.xlu0 %v83, 55
    %v703 = vpop.permute.xlu0 %702
    %704 = vrot.lane.b32.xlu0 %v84, 55
    %v705 = vpop.permute.xlu0 %704
    %706 = vrot.lane.b32.xlu0 %v85, 55
    %v707 = vpop.permute.xlu0 %706
    %708 = vrot.lane.b32.xlu0 %v86, 55
    %v709 = vpop.permute.xlu0 %708
    %710 = vrot.lane.b32.xlu0 %v87, 55
    %v711 = vpop.permute.xlu0 %710
    %712 = vrot.lane.b32.xlu0 %v88, 55
    %v713 = vpop.permute.xlu0 %712
    %714 = vrot.lane.b32.xlu0 %v89, 55
    %v715 = vpop.permute.xlu0 %714
    %716 = vrot.lane.b32.xlu0 %v90, 55
    %v717 = vpop.permute.xlu0 %716
    %vm718 = vcmp.lt.s32.totalorder %v110, 55
    %v719 = vsel %vm718, %v715, %v717
    %v720 = vsel %vm718, %v713, %v715
    %v721 = vsel %vm718, %v711, %v713
    %v722 = vsel %vm718, %v709, %v711
    %v723 = vsel %vm718, %v707, %v709
    %v724 = vsel %vm718, %v705, %v707
    %v725 = vsel %vm718, %v703, %v705
    %v726 = vsel %vm718, %v717, %v703
    %s727 = scalar_lea.vmem [#allocation2], 64
    %v728 = vld [vmem:[%s727] sm:$0xff]
    %v730 = vlaneseq
    %v731 = vshrl.u32 %v730, 7
    %v732 = vsub.s32 0, %v731
    %v733 = vrot.slane %v728, %v732
    %v734 = vlaneseq
    %v735 = vshrl.u32 %v734, 7
    %v736 = vsub.s32 1, %v735
    %v737 = vrot.slane %v728, %v736
    %v738 = vlaneseq
    %v739 = vshrl.u32 %v738, 7
    %v740 = vsub.s32 2, %v739
    %v741 = vrot.slane %v728, %v740
    %v742 = vlaneseq
    %v743 = vshrl.u32 %v742, 7
    %v744 = vsub.s32 3, %v743
    %v745 = vrot.slane %v728, %v744
    %v746 = vlaneseq
    %v747 = vshrl.u32 %v746, 7
    %v748 = vsub.s32 4, %v747
    %v749 = vrot.slane %v728, %v748
    %v750 = vlaneseq
    %v751 = vshrl.u32 %v750, 7
    %v752 = vsub.s32 5, %v751
    %v753 = vrot.slane %v728, %v752
    %v754 = vlaneseq
    %v755 = vshrl.u32 %v754, 7
    %v756 = vsub.s32 6, %v755
    %v757 = vrot.slane %v728, %v756
    %v758 = vlaneseq
    %v759 = vshrl.u32 %v758, 7
    %v760 = vsub.s32 7, %v759
    %v761 = vrot.slane %v728, %v760
    %v770 = vmul.f32 %v726, %v733
    %v771 = vmul.f32 %v725, %v737
    %v772 = vmul.f32 %v724, %v741
    %v773 = vmul.f32 %v723, %v745
    %v774 = vmul.f32 %v722, %v749
    %v775 = vmul.f32 %v721, %v753
    %v776 = vmul.f32 %v720, %v757
    %v777 = vmul.f32 %v719, %v761
    %778 = vrot.lane.b32.xlu0 %v83, 9
    %v779 = vpop.permute.xlu0 %778
    %780 = vrot.lane.b32.xlu0 %v84, 9
    %v781 = vpop.permute.xlu0 %780
    %782 = vrot.lane.b32.xlu0 %v85, 9
    %v783 = vpop.permute.xlu0 %782
    %784 = vrot.lane.b32.xlu0 %v86, 9
    %v785 = vpop.permute.xlu0 %784
    %786 = vrot.lane.b32.xlu0 %v87, 9
    %v787 = vpop.permute.xlu0 %786
    %788 = vrot.lane.b32.xlu0 %v88, 9
    %v789 = vpop.permute.xlu0 %788
    %790 = vrot.lane.b32.xlu0 %v89, 9
    %v791 = vpop.permute.xlu0 %790
    %792 = vrot.lane.b32.xlu0 %v90, 9
    %v793 = vpop.permute.xlu0 %792
    %vm794 = vcmp.lt.s32.totalorder %v110, 9
    %v795 = vsel %vm794, %v791, %v793
    %v796 = vsel %vm794, %v789, %v791
    %v797 = vsel %vm794, %v787, %v789
    %v798 = vsel %vm794, %v785, %v787
    %v799 = vsel %vm794, %v783, %v785
    %v800 = vsel %vm794, %v781, %v783
    %v801 = vsel %vm794, %v779, %v781
    %v802 = vsel %vm794, %v793, %v779
    %s803 = scalar_lea.vmem [#allocation2], 72
    %v804 = vld [vmem:[%s803] sm:$0xff]
    %v806 = vlaneseq
    %v807 = vshrl.u32 %v806, 7
    %v808 = vsub.s32 0, %v807
    %v809 = vrot.slane %v804, %v808
    %v810 = vlaneseq
    %v811 = vshrl.u32 %v810, 7
    %v812 = vsub.s32 1, %v811
    %v813 = vrot.slane %v804, %v812
    %v814 = vlaneseq
    %v815 = vshrl.u32 %v814, 7
    %v816 = vsub.s32 2, %v815
    %v817 = vrot.slane %v804, %v816
    %v818 = vlaneseq
    %v819 = vshrl.u32 %v818, 7
    %v820 = vsub.s32 3, %v819
    %v821 = vrot.slane %v804, %v820
    %v822 = vlaneseq
    %v823 = vshrl.u32 %v822, 7
    %v824 = vsub.s32 4, %v823
    %v825 = vrot.slane %v804, %v824
    %v826 = vlaneseq
    %v827 = vshrl.u32 %v826, 7
    %v828 = vsub.s32 5, %v827
    %v829 = vrot.slane %v804, %v828
    %v830 = vlaneseq
    %v831 = vshrl.u32 %v830, 7
    %v832 = vsub.s32 6, %v831
    %v833 = vrot.slane %v804, %v832
    %v834 = vlaneseq
    %v835 = vshrl.u32 %v834, 7
    %v836 = vsub.s32 7, %v835
    %v837 = vrot.slane %v804, %v836
    %v846 = vmul.f32 %v802, %v809
    %v847 = vmul.f32 %v801, %v813
    %v848 = vmul.f32 %v800, %v817
    %v849 = vmul.f32 %v799, %v821
    %v850 = vmul.f32 %v798, %v825
    %v851 = vmul.f32 %v797, %v829
    %v852 = vmul.f32 %v796, %v833
    %v853 = vmul.f32 %v795, %v837
    %854 = vrot.lane.b32.xlu0 %v83, 8
    %v855 = vpop.permute.xlu0 %854
    %856 = vrot.lane.b32.xlu0 %v84, 8
    %v857 = vpop.permute.xlu0 %856
    %858 = vrot.lane.b32.xlu0 %v85, 8
    %v859 = vpop.permute.xlu0 %858
    %860 = vrot.lane.b32.xlu0 %v86, 8
    %v861 = vpop.permute.xlu0 %860
    %862 = vrot.lane.b32.xlu0 %v87, 8
    %v863 = vpop.permute.xlu0 %862
    %864 = vrot.lane.b32.xlu0 %v88, 8
    %v865 = vpop.permute.xlu0 %864
    %866 = vrot.lane.b32.xlu0 %v89, 8
    %v867 = vpop.permute.xlu0 %866
    %868 = vrot.lane.b32.xlu0 %v90, 8
    %v869 = vpop.permute.xlu0 %868
    %vm870 = vcmp.lt.s32.totalorder %v110, 8
    %v871 = vsel %vm870, %v867, %v869
    %v872 = vsel %vm870, %v865, %v867
    %v873 = vsel %vm870, %v863, %v865
    %v874 = vsel %vm870, %v861, %v863
    %v875 = vsel %vm870, %v859, %v861
    %v876 = vsel %vm870, %v857, %v859
    %v877 = vsel %vm870, %v855, %v857
    %v878 = vsel %vm870, %v869, %v855
    %s879 = scalar_lea.vmem [#allocation2], 80
    %v880 = vld [vmem:[%s879] sm:$0xff]
    %v882 = vlaneseq
    %v883 = vshrl.u32 %v882, 7
    %v884 = vsub.s32 0, %v883
    %v885 = vrot.slane %v880, %v884
    %v886 = vlaneseq
    %v887 = vshrl.u32 %v886, 7
    %v888 = vsub.s32 1, %v887
    %v889 = vrot.slane %v880, %v888
    %v890 = vlaneseq
    %v891 = vshrl.u32 %v890, 7
    %v892 = vsub.s32 2, %v891
    %v893 = vrot.slane %v880, %v892
    %v894 = vlaneseq
    %v895 = vshrl.u32 %v894, 7
    %v896 = vsub.s32 3, %v895
    %v897 = vrot.slane %v880, %v896
    %v898 = vlaneseq
    %v899 = vshrl.u32 %v898, 7
    %v900 = vsub.s32 4, %v899
    %v901 = vrot.slane %v880, %v900
    %v902 = vlaneseq
    %v903 = vshrl.u32 %v902, 7
    %v904 = vsub.s32 5, %v903
    %v905 = vrot.slane %v880, %v904
    %v906 = vlaneseq
    %v907 = vshrl.u32 %v906, 7
    %v908 = vsub.s32 6, %v907
    %v909 = vrot.slane %v880, %v908
    %v910 = vlaneseq
    %v911 = vshrl.u32 %v910, 7
    %v912 = vsub.s32 7, %v911
    %v913 = vrot.slane %v880, %v912
    %v922 = vmul.f32 %v878, %v885
    %v923 = vmul.f32 %v877, %v889
    %v924 = vmul.f32 %v876, %v893
    %v925 = vmul.f32 %v875, %v897
    %v926 = vmul.f32 %v874, %v901
    %v927 = vmul.f32 %v873, %v905
    %v928 = vmul.f32 %v872, %v909
    %v929 = vmul.f32 %v871, %v913
    %930 = vrot.lane.b32.xlu0 %v83, 7
    %v931 = vpop.permute.xlu0 %930
    %932 = vrot.lane.b32.xlu0 %v84, 7
    %v933 = vpop.permute.xlu0 %932
    %934 = vrot.lane.b32.xlu0 %v85, 7
    %v935 = vpop.permute.xlu0 %934
    %936 = vrot.lane.b32.xlu0 %v86, 7
    %v937 = vpop.permute.xlu0 %936
    %938 = vrot.lane.b32.xlu0 %v87, 7
    %v939 = vpop.permute.xlu0 %938
    %940 = vrot.lane.b32.xlu0 %v88, 7
    %v941 = vpop.permute.xlu0 %940
    %942 = vrot.lane.b32.xlu0 %v89, 7
    %v943 = vpop.permute.xlu0 %942
    %944 = vrot.lane.b32.xlu0 %v90, 7
    %v945 = vpop.permute.xlu0 %944
    %vm946 = vcmp.lt.s32.totalorder %v110, 7
    %v947 = vsel %vm946, %v943, %v945
    %v948 = vsel %vm946, %v941, %v943
    %v949 = vsel %vm946, %v939, %v941
    %v950 = vsel %vm946, %v937, %v939
    %v951 = vsel %vm946, %v935, %v937
    %v952 = vsel %vm946, %v933, %v935
    %v953 = vsel %vm946, %v931, %v933
    %v954 = vsel %vm946, %v945, %v931
    %s955 = scalar_lea.vmem [#allocation2], 88
    %v956 = vld [vmem:[%s955] sm:$0xff]
    %v958 = vlaneseq
    %v959 = vshrl.u32 %v958, 7
    %v960 = vsub.s32 0, %v959
    %v961 = vrot.slane %v956, %v960
    %v962 = vlaneseq
    %v963 = vshrl.u32 %v962, 7
    %v964 = vsub.s32 1, %v963
    %v965 = vrot.slane %v956, %v964
    %v966 = vlaneseq
    %v967 = vshrl.u32 %v966, 7
    %v968 = vsub.s32 2, %v967
    %v969 = vrot.slane %v956, %v968
    %v970 = vlaneseq
    %v971 = vshrl.u32 %v970, 7
    %v972 = vsub.s32 3, %v971
    %v973 = vrot.slane %v956, %v972
    %v974 = vlaneseq
    %v975 = vshrl.u32 %v974, 7
    %v976 = vsub.s32 4, %v975
    %v977 = vrot.slane %v956, %v976
    %v978 = vlaneseq
    %v979 = vshrl.u32 %v978, 7
    %v980 = vsub.s32 5, %v979
    %v981 = vrot.slane %v956, %v980
    %v982 = vlaneseq
    %v983 = vshrl.u32 %v982, 7
    %v984 = vsub.s32 6, %v983
    %v985 = vrot.slane %v956, %v984
    %v986 = vlaneseq
    %v987 = vshrl.u32 %v986, 7
    %v988 = vsub.s32 7, %v987
    %v989 = vrot.slane %v956, %v988
    %v998 = vmul.f32 %v954, %v961
    %v999 = vmul.f32 %v953, %v965
    %v1000 = vmul.f32 %v952, %v969
    %v1001 = vmul.f32 %v951, %v973
    %v1002 = vmul.f32 %v950, %v977
    %v1003 = vmul.f32 %v949, %v981
    %v1004 = vmul.f32 %v948, %v985
    %v1005 = vmul.f32 %v947, %v989
    %1006 = vrot.lane.b32.xlu0 %v83, 1
    %v1007 = vpop.permute.xlu0 %1006
    %1008 = vrot.lane.b32.xlu0 %v84, 1
    %v1009 = vpop.permute.xlu0 %1008
    %1010 = vrot.lane.b32.xlu0 %v85, 1
    %v1011 = vpop.permute.xlu0 %1010
    %1012 = vrot.lane.b32.xlu0 %v86, 1
    %v1013 = vpop.permute.xlu0 %1012
    %1014 = vrot.lane.b32.xlu0 %v87, 1
    %v1015 = vpop.permute.xlu0 %1014
    %1016 = vrot.lane.b32.xlu0 %v88, 1
    %v1017 = vpop.permute.xlu0 %1016
    %1018 = vrot.lane.b32.xlu0 %v89, 1
    %v1019 = vpop.permute.xlu0 %1018
    %1020 = vrot.lane.b32.xlu0 %v90, 1
    %v1021 = vpop.permute.xlu0 %1020
    %vm1022 = vcmp.lt.s32.totalorder %v110, 1
    %v1023 = vsel %vm1022, %v1019, %v1021
    %v1024 = vsel %vm1022, %v1017, %v1019
    %v1025 = vsel %vm1022, %v1015, %v1017
    %v1026 = vsel %vm1022, %v1013, %v1015
    %v1027 = vsel %vm1022, %v1011, %v1013
    %v1028 = vsel %vm1022, %v1009, %v1011
    %v1029 = vsel %vm1022, %v1007, %v1009
    %v1030 = vsel %vm1022, %v1021, %v1007
    %s1031 = scalar_lea.vmem [#allocation2], 96
    %v1032 = vld [vmem:[%s1031] sm:$0xff]
    %v1034 = vlaneseq
    %v1035 = vshrl.u32 %v1034, 7
    %v1036 = vsub.s32 0, %v1035
    %v1037 = vrot.slane %v1032, %v1036
    %v1038 = vlaneseq
    %v1039 = vshrl.u32 %v1038, 7
    %v1040 = vsub.s32 1, %v1039
    %v1041 = vrot.slane %v1032, %v1040
    %v1042 = vlaneseq
    %v1043 = vshrl.u32 %v1042, 7
    %v1044 = vsub.s32 2, %v1043
    %v1045 = vrot.slane %v1032, %v1044
    %v1046 = vlaneseq
    %v1047 = vshrl.u32 %v1046, 7
    %v1048 = vsub.s32 3, %v1047
    %v1049 = vrot.slane %v1032, %v1048
    %v1050 = vlaneseq
    %v1051 = vshrl.u32 %v1050, 7
    %v1052 = vsub.s32 4, %v1051
    %v1053 = vrot.slane %v1032, %v1052
    %v1054 = vlaneseq
    %v1055 = vshrl.u32 %v1054, 7
    %v1056 = vsub.s32 5, %v1055
    %v1057 = vrot.slane %v1032, %v1056
    %v1058 = vlaneseq
    %v1059 = vshrl.u32 %v1058, 7
    %v1060 = vsub.s32 6, %v1059
    %v1061 = vrot.slane %v1032, %v1060
    %v1062 = vlaneseq
    %v1063 = vshrl.u32 %v1062, 7
    %v1064 = vsub.s32 7, %v1063
    %v1065 = vrot.slane %v1032, %v1064
    %v1074 = vmul.f32 %v1030, %v1037
    %v1075 = vmul.f32 %v1029, %v1041
    %v1076 = vmul.f32 %v1028, %v1045
    %v1077 = vmul.f32 %v1027, %v1049
    %v1078 = vmul.f32 %v1026, %v1053
    %v1079 = vmul.f32 %v1025, %v1057
    %v1080 = vmul.f32 %v1024, %v1061
    %v1081 = vmul.f32 %v1023, %v1065
    %1082 = vrot.lane.b32.xlu0 %v83, 127
    %v1083 = vpop.permute.xlu0 %1082
    %1084 = vrot.lane.b32.xlu0 %v84, 127
    %v1085 = vpop.permute.xlu0 %1084
    %1086 = vrot.lane.b32.xlu0 %v85, 127
    %v1087 = vpop.permute.xlu0 %1086
    %1088 = vrot.lane.b32.xlu0 %v86, 127
    %v1089 = vpop.permute.xlu0 %1088
    %1090 = vrot.lane.b32.xlu0 %v87, 127
    %v1091 = vpop.permute.xlu0 %1090
    %1092 = vrot.lane.b32.xlu0 %v88, 127
    %v1093 = vpop.permute.xlu0 %1092
    %1094 = vrot.lane.b32.xlu0 %v89, 127
    %v1095 = vpop.permute.xlu0 %1094
    %1096 = vrot.lane.b32.xlu0 %v90, 127
    %v1097 = vpop.permute.xlu0 %1096
    %vm1098 = vcmp.lt.s32.totalorder %v110, 127
    %v1099 = vsel %vm1098, %v1095, %v1097
    %v1100 = vsel %vm1098, %v1093, %v1095
    %v1101 = vsel %vm1098, %v1091, %v1093
    %v1102 = vsel %vm1098, %v1089, %v1091
    %v1103 = vsel %vm1098, %v1087, %v1089
    %v1104 = vsel %vm1098, %v1085, %v1087
    %v1105 = vsel %vm1098, %v1083, %v1085
    %v1106 = vsel %vm1098, %v1097, %v1083
    %s1107 = scalar_lea.vmem [#allocation2], 112
    %v1108 = vld [vmem:[%s1107] sm:$0xff]
    %v1110 = vlaneseq
    %v1111 = vshrl.u32 %v1110, 7
    %v1112 = vsub.s32 0, %v1111
    %v1113 = vrot.slane %v1108, %v1112
    %v1114 = vlaneseq
    %v1115 = vshrl.u32 %v1114, 7
    %v1116 = vsub.s32 1, %v1115
    %v1117 = vrot.slane %v1108, %v1116
    %v1118 = vlaneseq
    %v1119 = vshrl.u32 %v1118, 7
    %v1120 = vsub.s32 2, %v1119
    %v1121 = vrot.slane %v1108, %v1120
    %v1122 = vlaneseq
    %v1123 = vshrl.u32 %v1122, 7
    %v1124 = vsub.s32 3, %v1123
    %v1125 = vrot.slane %v1108, %v1124
    %v1126 = vlaneseq
    %v1127 = vshrl.u32 %v1126, 7
    %v1128 = vsub.s32 4, %v1127
    %v1129 = vrot.slane %v1108, %v1128
    %v1130 = vlaneseq
    %v1131 = vshrl.u32 %v1130, 7
    %v1132 = vsub.s32 5, %v1131
    %v1133 = vrot.slane %v1108, %v1132
    %v1134 = vlaneseq
    %v1135 = vshrl.u32 %v1134, 7
    %v1136 = vsub.s32 6, %v1135
    %v1137 = vrot.slane %v1108, %v1136
    %v1138 = vlaneseq
    %v1139 = vshrl.u32 %v1138, 7
    %v1140 = vsub.s32 7, %v1139
    %v1141 = vrot.slane %v1108, %v1140
    %v1150 = vmul.f32 %v1105, %v1113
    %v1151 = vmul.f32 %v1104, %v1117
    %v1152 = vmul.f32 %v1103, %v1121
    %v1153 = vmul.f32 %v1102, %v1125
    %v1154 = vmul.f32 %v1101, %v1129
    %v1155 = vmul.f32 %v1100, %v1133
    %v1156 = vmul.f32 %v1099, %v1137
    %v1157 = vmul.f32 %v1106, %v1141
    %1158 = vrot.lane.b32.xlu0 %v83, 121
    %v1159 = vpop.permute.xlu0 %1158
    %1160 = vrot.lane.b32.xlu0 %v84, 121
    %v1161 = vpop.permute.xlu0 %1160
    %1162 = vrot.lane.b32.xlu0 %v85, 121
    %v1163 = vpop.permute.xlu0 %1162
    %1164 = vrot.lane.b32.xlu0 %v86, 121
    %v1165 = vpop.permute.xlu0 %1164
    %1166 = vrot.lane.b32.xlu0 %v87, 121
    %v1167 = vpop.permute.xlu0 %1166
    %1168 = vrot.lane.b32.xlu0 %v88, 121
    %v1169 = vpop.permute.xlu0 %1168
    %1170 = vrot.lane.b32.xlu0 %v89, 121
    %v1171 = vpop.permute.xlu0 %1170
    %1172 = vrot.lane.b32.xlu0 %v90, 121
    %v1173 = vpop.permute.xlu0 %1172
    %vm1174 = vcmp.lt.s32.totalorder %v110, 121
    %v1175 = vsel %vm1174, %v1171, %v1173
    %v1176 = vsel %vm1174, %v1169, %v1171
    %v1177 = vsel %vm1174, %v1167, %v1169
    %v1178 = vsel %vm1174, %v1165, %v1167
    %v1179 = vsel %vm1174, %v1163, %v1165
    %v1180 = vsel %vm1174, %v1161, %v1163
    %v1181 = vsel %vm1174, %v1159, %v1161
    %v1182 = vsel %vm1174, %v1173, %v1159
    %s1183 = scalar_lea.vmem [#allocation2], 120
    %v1184 = vld [vmem:[%s1183] sm:$0xff]
    %v1186 = vlaneseq
    %v1187 = vshrl.u32 %v1186, 7
    %v1188 = vsub.s32 0, %v1187
    %v1189 = vrot.slane %v1184, %v1188
    %v1190 = vlaneseq
    %v1191 = vshrl.u32 %v1190, 7
    %v1192 = vsub.s32 1, %v1191
    %v1193 = vrot.slane %v1184, %v1192
    %v1194 = vlaneseq
    %v1195 = vshrl.u32 %v1194, 7
    %v1196 = vsub.s32 2, %v1195
    %v1197 = vrot.slane %v1184, %v1196
    %v1198 = vlaneseq
    %v1199 = vshrl.u32 %v1198, 7
    %v1200 = vsub.s32 3, %v1199
    %v1201 = vrot.slane %v1184, %v1200
    %v1202 = vlaneseq
    %v1203 = vshrl.u32 %v1202, 7
    %v1204 = vsub.s32 4, %v1203
    %v1205 = vrot.slane %v1184, %v1204
    %v1206 = vlaneseq
    %v1207 = vshrl.u32 %v1206, 7
    %v1208 = vsub.s32 5, %v1207
    %v1209 = vrot.slane %v1184, %v1208
    %v1210 = vlaneseq
    %v1211 = vshrl.u32 %v1210, 7
    %v1212 = vsub.s32 6, %v1211
    %v1213 = vrot.slane %v1184, %v1212
    %v1214 = vlaneseq
    %v1215 = vshrl.u32 %v1214, 7
    %v1216 = vsub.s32 7, %v1215
    %v1217 = vrot.slane %v1184, %v1216
    %v1226 = vmul.f32 %v1181, %v1189
    %v1227 = vmul.f32 %v1180, %v1193
    %v1228 = vmul.f32 %v1179, %v1197
    %v1229 = vmul.f32 %v1178, %v1201
    %v1230 = vmul.f32 %v1177, %v1205
    %v1231 = vmul.f32 %v1176, %v1209
    %v1232 = vmul.f32 %v1175, %v1213
    %v1233 = vmul.f32 %v1182, %v1217
    %1234 = vrot.lane.b32.xlu0 %v83, 120
    %v1235 = vpop.permute.xlu0 %1234
    %1236 = vrot.lane.b32.xlu0 %v84, 120
    %v1237 = vpop.permute.xlu0 %1236
    %1238 = vrot.lane.b32.xlu0 %v85, 120
    %v1239 = vpop.permute.xlu0 %1238
    %1240 = vrot.lane.b32.xlu0 %v86, 120
    %v1241 = vpop.permute.xlu0 %1240
    %1242 = vrot.lane.b32.xlu0 %v87, 120
    %v1243 = vpop.permute.xlu0 %1242
    %1244 = vrot.lane.b32.xlu0 %v88, 120
    %v1245 = vpop.permute.xlu0 %1244
    %1246 = vrot.lane.b32.xlu0 %v89, 120
    %v1247 = vpop.permute.xlu0 %1246
    %1248 = vrot.lane.b32.xlu0 %v90, 120
    %v1249 = vpop.permute.xlu0 %1248
    %vm1250 = vcmp.lt.s32.totalorder %v110, 120
    %v1251 = vsel %vm1250, %v1247, %v1249
    %v1252 = vsel %vm1250, %v1245, %v1247
    %v1253 = vsel %vm1250, %v1243, %v1245
    %v1254 = vsel %vm1250, %v1241, %v1243
    %v1255 = vsel %vm1250, %v1239, %v1241
    %v1256 = vsel %vm1250, %v1237, %v1239
    %v1257 = vsel %vm1250, %v1235, %v1237
    %v1258 = vsel %vm1250, %v1249, %v1235
    %s1259 = scalar_lea.vmem [#allocation2], 128
    %v1260 = vld [vmem:[%s1259] sm:$0xff]
    %v1262 = vlaneseq
    %v1263 = vshrl.u32 %v1262, 7
    %v1264 = vsub.s32 0, %v1263
    %v1265 = vrot.slane %v1260, %v1264
    %v1266 = vlaneseq
    %v1267 = vshrl.u32 %v1266, 7
    %v1268 = vsub.s32 1, %v1267
    %v1269 = vrot.slane %v1260, %v1268
    %v1270 = vlaneseq
    %v1271 = vshrl.u32 %v1270, 7
    %v1272 = vsub.s32 2, %v1271
    %v1273 = vrot.slane %v1260, %v1272
    %v1274 = vlaneseq
    %v1275 = vshrl.u32 %v1274, 7
    %v1276 = vsub.s32 3, %v1275
    %v1277 = vrot.slane %v1260, %v1276
    %v1278 = vlaneseq
    %v1279 = vshrl.u32 %v1278, 7
    %v1280 = vsub.s32 4, %v1279
    %v1281 = vrot.slane %v1260, %v1280
    %v1282 = vlaneseq
    %v1283 = vshrl.u32 %v1282, 7
    %v1284 = vsub.s32 5, %v1283
    %v1285 = vrot.slane %v1260, %v1284
    %v1286 = vlaneseq
    %v1287 = vshrl.u32 %v1286, 7
    %v1288 = vsub.s32 6, %v1287
    %v1289 = vrot.slane %v1260, %v1288
    %v1290 = vlaneseq
    %v1291 = vshrl.u32 %v1290, 7
    %v1292 = vsub.s32 7, %v1291
    %v1293 = vrot.slane %v1260, %v1292
    %v1302 = vmul.f32 %v1257, %v1265
    %v1303 = vmul.f32 %v1256, %v1269
    %v1304 = vmul.f32 %v1255, %v1273
    %v1305 = vmul.f32 %v1254, %v1277
    %v1306 = vmul.f32 %v1253, %v1281
    %v1307 = vmul.f32 %v1252, %v1285
    %v1308 = vmul.f32 %v1251, %v1289
    %v1309 = vmul.f32 %v1258, %v1293
    %1310 = vrot.lane.b32.xlu0 %v83, 119
    %v1311 = vpop.permute.xlu0 %1310
    %1312 = vrot.lane.b32.xlu0 %v84, 119
    %v1313 = vpop.permute.xlu0 %1312
    %1314 = vrot.lane.b32.xlu0 %v85, 119
    %v1315 = vpop.permute.xlu0 %1314
    %1316 = vrot.lane.b32.xlu0 %v86, 119
    %v1317 = vpop.permute.xlu0 %1316
    %1318 = vrot.lane.b32.xlu0 %v87, 119
    %v1319 = vpop.permute.xlu0 %1318
    %1320 = vrot.lane.b32.xlu0 %v88, 119
    %v1321 = vpop.permute.xlu0 %1320
    %1322 = vrot.lane.b32.xlu0 %v89, 119
    %v1323 = vpop.permute.xlu0 %1322
    %1324 = vrot.lane.b32.xlu0 %v90, 119
    %v1325 = vpop.permute.xlu0 %1324
    %vm1326 = vcmp.lt.s32.totalorder %v110, 119
    %v1327 = vsel %vm1326, %v1323, %v1325
    %v1328 = vsel %vm1326, %v1321, %v1323
    %v1329 = vsel %vm1326, %v1319, %v1321
    %v1330 = vsel %vm1326, %v1317, %v1319
    %v1331 = vsel %vm1326, %v1315, %v1317
    %v1332 = vsel %vm1326, %v1313, %v1315
    %v1333 = vsel %vm1326, %v1311, %v1313
    %v1334 = vsel %vm1326, %v1325, %v1311
    %s1335 = scalar_lea.vmem [#allocation2], 136
    %v1336 = vld [vmem:[%s1335] sm:$0xff]
    %v1338 = vlaneseq
    %v1339 = vshrl.u32 %v1338, 7
    %v1340 = vsub.s32 0, %v1339
    %v1341 = vrot.slane %v1336, %v1340
    %v1342 = vlaneseq
    %v1343 = vshrl.u32 %v1342, 7
    %v1344 = vsub.s32 1, %v1343
    %v1345 = vrot.slane %v1336, %v1344
    %v1346 = vlaneseq
    %v1347 = vshrl.u32 %v1346, 7
    %v1348 = vsub.s32 2, %v1347
    %v1349 = vrot.slane %v1336, %v1348
    %v1350 = vlaneseq
    %v1351 = vshrl.u32 %v1350, 7
    %v1352 = vsub.s32 3, %v1351
    %v1353 = vrot.slane %v1336, %v1352
    %v1354 = vlaneseq
    %v1355 = vshrl.u32 %v1354, 7
    %v1356 = vsub.s32 4, %v1355
    %v1357 = vrot.slane %v1336, %v1356
    %v1358 = vlaneseq
    %v1359 = vshrl.u32 %v1358, 7
    %v1360 = vsub.s32 5, %v1359
    %v1361 = vrot.slane %v1336, %v1360
    %v1362 = vlaneseq
    %v1363 = vshrl.u32 %v1362, 7
    %v1364 = vsub.s32 6, %v1363
    %v1365 = vrot.slane %v1336, %v1364
    %v1366 = vlaneseq
    %v1367 = vshrl.u32 %v1366, 7
    %v1368 = vsub.s32 7, %v1367
    %v1369 = vrot.slane %v1336, %v1368
    %v1378 = vmul.f32 %v1333, %v1341
    %v1379 = vmul.f32 %v1332, %v1345
    %v1380 = vmul.f32 %v1331, %v1349
    %v1381 = vmul.f32 %v1330, %v1353
    %v1382 = vmul.f32 %v1329, %v1357
    %v1383 = vmul.f32 %v1328, %v1361
    %v1384 = vmul.f32 %v1327, %v1365
    %v1385 = vmul.f32 %v1334, %v1369
    %s1386 = scalar_lea.vmem [#allocation2], 144
    %v1387 = vld [vmem:[%s1386] sm:$0xff]
    %v1389 = vlaneseq
    %v1390 = vshrl.u32 %v1389, 7
    %v1391 = vsub.s32 0, %v1390
    %v1392 = vrot.slane %v1387, %v1391
    %v1393 = vlaneseq
    %v1394 = vshrl.u32 %v1393, 7
    %v1395 = vsub.s32 1, %v1394
    %v1396 = vrot.slane %v1387, %v1395
    %v1397 = vlaneseq
    %v1398 = vshrl.u32 %v1397, 7
    %v1399 = vsub.s32 2, %v1398
    %v1400 = vrot.slane %v1387, %v1399
    %v1401 = vlaneseq
    %v1402 = vshrl.u32 %v1401, 7
    %v1403 = vsub.s32 3, %v1402
    %v1404 = vrot.slane %v1387, %v1403
    %v1405 = vlaneseq
    %v1406 = vshrl.u32 %v1405, 7
    %v1407 = vsub.s32 4, %v1406
    %v1408 = vrot.slane %v1387, %v1407
    %v1409 = vlaneseq
    %v1410 = vshrl.u32 %v1409, 7
    %v1411 = vsub.s32 5, %v1410
    %v1412 = vrot.slane %v1387, %v1411
    %v1413 = vlaneseq
    %v1414 = vshrl.u32 %v1413, 7
    %v1415 = vsub.s32 6, %v1414
    %v1416 = vrot.slane %v1387, %v1415
    %v1417 = vlaneseq
    %v1418 = vshrl.u32 %v1417, 7
    %v1419 = vsub.s32 7, %v1418
    %v1420 = vrot.slane %v1387, %v1419
    %v1429 = vmul.f32 %v118, %v1392
    %v1430 = vmul.f32 %v117, %v1396
    %v1431 = vmul.f32 %v116, %v1400
    %v1432 = vmul.f32 %v115, %v1404
    %v1433 = vmul.f32 %v114, %v1408
    %v1434 = vmul.f32 %v113, %v1412
    %v1435 = vmul.f32 %v112, %v1416
    %v1436 = vmul.f32 %v119, %v1420
    %s1437 = scalar_lea.vmem [#allocation2], 152
    %v1438 = vld [vmem:[%s1437] sm:$0xff]
    %v1440 = vlaneseq
    %v1441 = vshrl.u32 %v1440, 7
    %v1442 = vsub.s32 0, %v1441
    %v1443 = vrot.slane %v1438, %v1442
    %v1444 = vlaneseq
    %v1445 = vshrl.u32 %v1444, 7
    %v1446 = vsub.s32 1, %v1445
    %v1447 = vrot.slane %v1438, %v1446
    %v1448 = vlaneseq
    %v1449 = vshrl.u32 %v1448, 7
    %v1450 = vsub.s32 2, %v1449
    %v1451 = vrot.slane %v1438, %v1450
    %v1452 = vlaneseq
    %v1453 = vshrl.u32 %v1452, 7
    %v1454 = vsub.s32 3, %v1453
    %v1455 = vrot.slane %v1438, %v1454
    %v1456 = vlaneseq
    %v1457 = vshrl.u32 %v1456, 7
    %v1458 = vsub.s32 4, %v1457
    %v1459 = vrot.slane %v1438, %v1458
    %v1460 = vlaneseq
    %v1461 = vshrl.u32 %v1460, 7
    %v1462 = vsub.s32 5, %v1461
    %v1463 = vrot.slane %v1438, %v1462
    %v1464 = vlaneseq
    %v1465 = vshrl.u32 %v1464, 7
    %v1466 = vsub.s32 6, %v1465
    %v1467 = vrot.slane %v1438, %v1466
    %v1468 = vlaneseq
    %v1469 = vshrl.u32 %v1468, 7
    %v1470 = vsub.s32 7, %v1469
    %v1471 = vrot.slane %v1438, %v1470
    %v1480 = vmul.f32 %v193, %v1443
    %v1481 = vmul.f32 %v192, %v1447
    %v1482 = vmul.f32 %v191, %v1451
    %v1483 = vmul.f32 %v190, %v1455
    %v1484 = vmul.f32 %v189, %v1459
    %v1485 = vmul.f32 %v188, %v1463
    %v1486 = vmul.f32 %v187, %v1467
    %v1487 = vmul.f32 %v194, %v1471
    %s1488 = scalar_lea.vmem [#allocation2], 160
    %v1489 = vld [vmem:[%s1488] sm:$0xff]
    %v1491 = vlaneseq
    %v1492 = vshrl.u32 %v1491, 7
    %v1493 = vsub.s32 0, %v1492
    %v1494 = vrot.slane %v1489, %v1493
    %v1495 = vlaneseq
    %v1496 = vshrl.u32 %v1495, 7
    %v1497 = vsub.s32 1, %v1496
    %v1498 = vrot.slane %v1489, %v1497
    %v1499 = vlaneseq
    %v1500 = vshrl.u32 %v1499, 7
    %v1501 = vsub.s32 2, %v1500
    %v1502 = vrot.slane %v1489, %v1501
    %v1503 = vlaneseq
    %v1504 = vshrl.u32 %v1503, 7
    %v1505 = vsub.s32 3, %v1504
    %v1506 = vrot.slane %v1489, %v1505
    %v1507 = vlaneseq
    %v1508 = vshrl.u32 %v1507, 7
    %v1509 = vsub.s32 4, %v1508
    %v1510 = vrot.slane %v1489, %v1509
    %v1511 = vlaneseq
    %v1512 = vshrl.u32 %v1511, 7
    %v1513 = vsub.s32 5, %v1512
    %v1514 = vrot.slane %v1489, %v1513
    %v1515 = vlaneseq
    %v1516 = vshrl.u32 %v1515, 7
    %v1517 = vsub.s32 6, %v1516
    %v1518 = vrot.slane %v1489, %v1517
    %v1519 = vlaneseq
    %v1520 = vshrl.u32 %v1519, 7
    %v1521 = vsub.s32 7, %v1520
    %v1522 = vrot.slane %v1489, %v1521
    %v1531 = vmul.f32 %v269, %v1494
    %v1532 = vmul.f32 %v268, %v1498
    %v1533 = vmul.f32 %v267, %v1502
    %v1534 = vmul.f32 %v266, %v1506
    %v1535 = vmul.f32 %v265, %v1510
    %v1536 = vmul.f32 %v264, %v1514
    %v1537 = vmul.f32 %v263, %v1518
    %v1538 = vmul.f32 %v270, %v1522
    %s1539 = scalar_lea.vmem [#allocation2], 168
    %v1540 = vld [vmem:[%s1539] sm:$0xff]
    %v1542 = vlaneseq
    %v1543 = vshrl.u32 %v1542, 7
    %v1544 = vsub.s32 0, %v1543
    %v1545 = vrot.slane %v1540, %v1544
    %v1546 = vlaneseq
    %v1547 = vshrl.u32 %v1546, 7
    %v1548 = vsub.s32 1, %v1547
    %v1549 = vrot.slane %v1540, %v1548
    %v1550 = vlaneseq
    %v1551 = vshrl.u32 %v1550, 7
    %v1552 = vsub.s32 2, %v1551
    %v1553 = vrot.slane %v1540, %v1552
    %v1554 = vlaneseq
    %v1555 = vshrl.u32 %v1554, 7
    %v1556 = vsub.s32 3, %v1555
    %v1557 = vrot.slane %v1540, %v1556
    %v1558 = vlaneseq
    %v1559 = vshrl.u32 %v1558, 7
    %v1560 = vsub.s32 4, %v1559
    %v1561 = vrot.slane %v1540, %v1560
    %v1562 = vlaneseq
    %v1563 = vshrl.u32 %v1562, 7
    %v1564 = vsub.s32 5, %v1563
    %v1565 = vrot.slane %v1540, %v1564
    %v1566 = vlaneseq
    %v1567 = vshrl.u32 %v1566, 7
    %v1568 = vsub.s32 6, %v1567
    %v1569 = vrot.slane %v1540, %v1568
    %v1570 = vlaneseq
    %v1571 = vshrl.u32 %v1570, 7
    %v1572 = vsub.s32 7, %v1571
    %v1573 = vrot.slane %v1540, %v1572
    %v1582 = vmul.f32 %v345, %v1545
    %v1583 = vmul.f32 %v344, %v1549
    %v1584 = vmul.f32 %v343, %v1553
    %v1585 = vmul.f32 %v342, %v1557
    %v1586 = vmul.f32 %v341, %v1561
    %v1587 = vmul.f32 %v340, %v1565
    %v1588 = vmul.f32 %v339, %v1569
    %v1589 = vmul.f32 %v346, %v1573
    %s1590 = scalar_lea.vmem [#allocation2], 176
    %v1591 = vld [vmem:[%s1590] sm:$0xff]
    %v1593 = vlaneseq
    %v1594 = vshrl.u32 %v1593, 7
    %v1595 = vsub.s32 0, %v1594
    %v1596 = vrot.slane %v1591, %v1595
    %v1597 = vlaneseq
    %v1598 = vshrl.u32 %v1597, 7
    %v1599 = vsub.s32 1, %v1598
    %v1600 = vrot.slane %v1591, %v1599
    %v1601 = vlaneseq
    %v1602 = vshrl.u32 %v1601, 7
    %v1603 = vsub.s32 2, %v1602
    %v1604 = vrot.slane %v1591, %v1603
    %v1605 = vlaneseq
    %v1606 = vshrl.u32 %v1605, 7
    %v1607 = vsub.s32 3, %v1606
    %v1608 = vrot.slane %v1591, %v1607
    %v1609 = vlaneseq
    %v1610 = vshrl.u32 %v1609, 7
    %v1611 = vsub.s32 4, %v1610
    %v1612 = vrot.slane %v1591, %v1611
    %v1613 = vlaneseq
    %v1614 = vshrl.u32 %v1613, 7
    %v1615 = vsub.s32 5, %v1614
    %v1616 = vrot.slane %v1591, %v1615
    %v1617 = vlaneseq
    %v1618 = vshrl.u32 %v1617, 7
    %v1619 = vsub.s32 6, %v1618
    %v1620 = vrot.slane %v1591, %v1619
    %v1621 = vlaneseq
    %v1622 = vshrl.u32 %v1621, 7
    %v1623 = vsub.s32 7, %v1622
    %v1624 = vrot.slane %v1591, %v1623
    %v1633 = vmul.f32 %v421, %v1596
    %v1634 = vmul.f32 %v420, %v1600
    %v1635 = vmul.f32 %v419, %v1604
    %v1636 = vmul.f32 %v418, %v1608
    %v1637 = vmul.f32 %v417, %v1612
    %v1638 = vmul.f32 %v416, %v1616
    %v1639 = vmul.f32 %v415, %v1620
    %v1640 = vmul.f32 %v422, %v1624
    %s1641 = scalar_lea.vmem [#allocation2], 184
    %v1642 = vld [vmem:[%s1641] sm:$0xff]
    %v1644 = vlaneseq
    %v1645 = vshrl.u32 %v1644, 7
    %v1646 = vsub.s32 0, %v1645
    %v1647 = vrot.slane %v1642, %v1646
    %v1648 = vlaneseq
    %v1649 = vshrl.u32 %v1648, 7
    %v1650 = vsub.s32 1, %v1649
    %v1651 = vrot.slane %v1642, %v1650
    %v1652 = vlaneseq
    %v1653 = vshrl.u32 %v1652, 7
    %v1654 = vsub.s32 2, %v1653
    %v1655 = vrot.slane %v1642, %v1654
    %v1656 = vlaneseq
    %v1657 = vshrl.u32 %v1656, 7
    %v1658 = vsub.s32 3, %v1657
    %v1659 = vrot.slane %v1642, %v1658
    %v1660 = vlaneseq
    %v1661 = vshrl.u32 %v1660, 7
    %v1662 = vsub.s32 4, %v1661
    %v1663 = vrot.slane %v1642, %v1662
    %v1664 = vlaneseq
    %v1665 = vshrl.u32 %v1664, 7
    %v1666 = vsub.s32 5, %v1665
    %v1667 = vrot.slane %v1642, %v1666
    %v1668 = vlaneseq
    %v1669 = vshrl.u32 %v1668, 7
    %v1670 = vsub.s32 6, %v1669
    %v1671 = vrot.slane %v1642, %v1670
    %v1672 = vlaneseq
    %v1673 = vshrl.u32 %v1672, 7
    %v1674 = vsub.s32 7, %v1673
    %v1675 = vrot.slane %v1642, %v1674
    %v1684 = vmul.f32 %v497, %v1647
    %v1685 = vmul.f32 %v496, %v1651
    %v1686 = vmul.f32 %v495, %v1655
    %v1687 = vmul.f32 %v494, %v1659
    %v1688 = vmul.f32 %v493, %v1663
    %v1689 = vmul.f32 %v492, %v1667
    %v1690 = vmul.f32 %v491, %v1671
    %v1691 = vmul.f32 %v498, %v1675
    %s1692 = scalar_lea.vmem [#allocation2], 192
    %v1693 = vld [vmem:[%s1692] sm:$0xff]
    %v1695 = vlaneseq
    %v1696 = vshrl.u32 %v1695, 7
    %v1697 = vsub.s32 0, %v1696
    %v1698 = vrot.slane %v1693, %v1697
    %v1699 = vlaneseq
    %v1700 = vshrl.u32 %v1699, 7
    %v1701 = vsub.s32 1, %v1700
    %v1702 = vrot.slane %v1693, %v1701
    %v1703 = vlaneseq
    %v1704 = vshrl.u32 %v1703, 7
    %v1705 = vsub.s32 2, %v1704
    %v1706 = vrot.slane %v1693, %v1705
    %v1707 = vlaneseq
    %v1708 = vshrl.u32 %v1707, 7
    %v1709 = vsub.s32 3, %v1708
    %v1710 = vrot.slane %v1693, %v1709
    %v1711 = vlaneseq
    %v1712 = vshrl.u32 %v1711, 7
    %v1713 = vsub.s32 4, %v1712
    %v1714 = vrot.slane %v1693, %v1713
    %v1715 = vlaneseq
    %v1716 = vshrl.u32 %v1715, 7
    %v1717 = vsub.s32 5, %v1716
    %v1718 = vrot.slane %v1693, %v1717
    %v1719 = vlaneseq
    %v1720 = vshrl.u32 %v1719, 7
    %v1721 = vsub.s32 6, %v1720
    %v1722 = vrot.slane %v1693, %v1721
    %v1723 = vlaneseq
    %v1724 = vshrl.u32 %v1723, 7
    %v1725 = vsub.s32 7, %v1724
    %v1726 = vrot.slane %v1693, %v1725
    %v1735 = vmul.f32 %v573, %v1698
    %v1736 = vmul.f32 %v572, %v1702
    %v1737 = vmul.f32 %v571, %v1706
    %v1738 = vmul.f32 %v570, %v1710
    %v1739 = vmul.f32 %v569, %v1714
    %v1740 = vmul.f32 %v568, %v1718
    %v1741 = vmul.f32 %v567, %v1722
    %v1742 = vmul.f32 %v574, %v1726
    %s1743 = scalar_lea.vmem [#allocation2], 200
    %v1744 = vld [vmem:[%s1743] sm:$0xff]
    %v1746 = vlaneseq
    %v1747 = vshrl.u32 %v1746, 7
    %v1748 = vsub.s32 0, %v1747
    %v1749 = vrot.slane %v1744, %v1748
    %v1750 = vlaneseq
    %v1751 = vshrl.u32 %v1750, 7
    %v1752 = vsub.s32 1, %v1751
    %v1753 = vrot.slane %v1744, %v1752
    %v1754 = vlaneseq
    %v1755 = vshrl.u32 %v1754, 7
    %v1756 = vsub.s32 2, %v1755
    %v1757 = vrot.slane %v1744, %v1756
    %v1758 = vlaneseq
    %v1759 = vshrl.u32 %v1758, 7
    %v1760 = vsub.s32 3, %v1759
    %v1761 = vrot.slane %v1744, %v1760
    %v1762 = vlaneseq
    %v1763 = vshrl.u32 %v1762, 7
    %v1764 = vsub.s32 4, %v1763
    %v1765 = vrot.slane %v1744, %v1764
    %v1766 = vlaneseq
    %v1767 = vshrl.u32 %v1766, 7
    %v1768 = vsub.s32 5, %v1767
    %v1769 = vrot.slane %v1744, %v1768
    %v1770 = vlaneseq
    %v1771 = vshrl.u32 %v1770, 7
    %v1772 = vsub.s32 6, %v1771
    %v1773 = vrot.slane %v1744, %v1772
    %v1774 = vlaneseq
    %v1775 = vshrl.u32 %v1774, 7
    %v1776 = vsub.s32 7, %v1775
    %v1777 = vrot.slane %v1744, %v1776
    %v1786 = vmul.f32 %v649, %v1749
    %v1787 = vmul.f32 %v648, %v1753
    %v1788 = vmul.f32 %v647, %v1757
    %v1789 = vmul.f32 %v646, %v1761
    %v1790 = vmul.f32 %v645, %v1765
    %v1791 = vmul.f32 %v644, %v1769
    %v1792 = vmul.f32 %v643, %v1773
    %v1793 = vmul.f32 %v650, %v1777
    %s1794 = scalar_lea.vmem [#allocation2], 208
    %v1795 = vld [vmem:[%s1794] sm:$0xff]
    %v1797 = vlaneseq
    %v1798 = vshrl.u32 %v1797, 7
    %v1799 = vsub.s32 0, %v1798
    %v1800 = vrot.slane %v1795, %v1799
    %v1801 = vlaneseq
    %v1802 = vshrl.u32 %v1801, 7
    %v1803 = vsub.s32 1, %v1802
    %v1804 = vrot.slane %v1795, %v1803
    %v1805 = vlaneseq
    %v1806 = vshrl.u32 %v1805, 7
    %v1807 = vsub.s32 2, %v1806
    %v1808 = vrot.slane %v1795, %v1807
    %v1809 = vlaneseq
    %v1810 = vshrl.u32 %v1809, 7
    %v1811 = vsub.s32 3, %v1810
    %v1812 = vrot.slane %v1795, %v1811
    %v1813 = vlaneseq
    %v1814 = vshrl.u32 %v1813, 7
    %v1815 = vsub.s32 4, %v1814
    %v1816 = vrot.slane %v1795, %v1815
    %v1817 = vlaneseq
    %v1818 = vshrl.u32 %v1817, 7
    %v1819 = vsub.s32 5, %v1818
    %v1820 = vrot.slane %v1795, %v1819
    %v1821 = vlaneseq
    %v1822 = vshrl.u32 %v1821, 7
    %v1823 = vsub.s32 6, %v1822
    %v1824 = vrot.slane %v1795, %v1823
    %v1825 = vlaneseq
    %v1826 = vshrl.u32 %v1825, 7
    %v1827 = vsub.s32 7, %v1826
    %v1828 = vrot.slane %v1795, %v1827
    %v1837 = vmul.f32 %v725, %v1800
    %v1838 = vmul.f32 %v724, %v1804
    %v1839 = vmul.f32 %v723, %v1808
    %v1840 = vmul.f32 %v722, %v1812
    %v1841 = vmul.f32 %v721, %v1816
    %v1842 = vmul.f32 %v720, %v1820
    %v1843 = vmul.f32 %v719, %v1824
    %v1844 = vmul.f32 %v726, %v1828
    %vm1845 = vcmask 719872
    %v1847 = vsel %vm1845, %v92, 0
    %1849 = vmatprep.subr.mxu0 %v163
    %1850 = vmatpush1.msra.mxu0 %v162
    %1851 = vmatprep.subr.mxu0 %v239
    %1852 = vmatpush1.msra.mxu0 %v238
    %1853 = vmatprep.subr.mxu0 %v315
    %1854 = vmatpush1.msra.mxu0 %v314
    %1855 = vmatprep.subr.mxu0 %v391
    %1856 = vmatpush1.msra.mxu0 %v390
    %1857 = vmatprep.subr.mxu0 %v467
    %1858 = vmatpush1.msra.mxu0 %v466
    %1859 = vmatprep.subr.mxu0 %v543
    %1860 = vmatpush1.msra.mxu0 %v542
    %1861 = vmatprep.subr.mxu0 %v619
    %1862 = vmatpush1.msra.mxu0 %v618
    %1863 = vmatprep.subr.mxu0 %v695
    %1864 = vmatpush1.msra.mxu0 %v694
    %1865 = vmatprep.subr.mxu0 %v771
    %1866 = vmatpush1.msra.mxu0 %v770
    %1867 = vmatprep.subr.mxu0 %v847
    %1868 = vmatpush1.msra.mxu0 %v846
    %1869 = vmatprep.subr.mxu0 %v923
    %1870 = vmatpush1.msra.mxu0 %v922
    %1871 = vmatprep.subr.mxu0 %v999
    %1872 = vmatpush1.msra.mxu0 %v998
    %1873 = vmatprep.subr.mxu0 %v1075
    %1874 = vmatpush1.msra.mxu0 %v1074
    %1875 = vmatprep.subr.mxu0 %v84
    %1876 = vmatpush1.msra.mxu0 %v83
    %1877 = vmatprep.subr.mxu0 %v1151
    %1878 = vmatpush1.msra.mxu0 %v1150
    %1879 = vmatprep.subr.mxu0 %v1227
    %1880 = vmatpush1.msra.mxu0 %v1226
    %1881 = vmatprep.subr.mxu0 %v1303
    %1882 = vmatpush1.msra.mxu0 %v1302
    %1883 = vmatprep.subr.mxu0 %v1379
    %1884 = vmatpush1.msra.mxu0 %v1378
    %1885 = vmatprep.subr.mxu0 %v1430
    %1886 = vmatpush1.msra.mxu0 %v1429
    %1887 = vmatprep.subr.mxu0 %v1481
    %1888 = vmatpush1.msra.mxu0 %v1480
    %1889 = vmatprep.subr.mxu0 %v1532
    %1890 = vmatpush1.msra.mxu0 %v1531
    %1891 = vmatprep.subr.mxu0 %v1583
    %1892 = vmatpush1.msra.mxu0 %v1582
    %1893 = vmatprep.subr.mxu0 %v1634
    %1894 = vmatpush1.msra.mxu0 %v1633
    %1895 = vmatprep.subr.mxu0 %v1685
    %1896 = vmatpush1.msra.mxu0 %v1684
    %1897 = vmatprep.subr.mxu0 %v1736
    %1898 = vmatpush1.msra.mxu0 %v1735
    %1899 = vmatprep.subr.mxu0 %v1787
    %1900 = vmatpush1.msra.mxu0 %v1786
    %1901 = vmatprep.subr.mxu0 %v1838
    %1902 = vmatpush1.msra.mxu0 %v1837
    %1903 = vmatprep.subr.mxu0 0.0
    %1904 = vmatpush1.msra.mxu0 0.0
    %1905 = vmatprep.subr.mxu0 0.0
    %1906 = vmatpush1.msra.mxu0 0.0
    %1907 = vmatprep.subr.mxu0 0.0
    %1908 = vmatpush1.msra.mxu0 0.0
    %1909 = vmatprep.subr.mxu0 0.0
    %1910 = vmatpush1.msra.mxu0 0.0
    %1911 = vmatprep.subr.mxu0 0.0
    %1912 = vmatpush1.msra.mxu0 0.0
    %1913 = vmatprep.mubr.f32.mxu0 %v1847
    %1914 = vmatmul.mubr.f32.gmra.mrb[0].mxu0 %v91
    %v1915 = vpop.f32.mrb[0].mxu0
    %v1916 = vadd.f32 0.0, %v1915
    %v1917 = vpop.f32.mrb[0].mxu0
    %v1918 = vadd.f32 0.0, %v1917
    %1919 = vdwg.mxu0
    %1920 = vmatprep.subr.mxu0 %v165
    %1921 = vmatpush1.msra.mxu0 %v164
    %1922 = vmatprep.subr.mxu0 %v241
    %1923 = vmatpush1.msra.mxu0 %v240
    %1924 = vmatprep.subr.mxu0 %v317
    %1925 = vmatpush1.msra.mxu0 %v316
    %1926 = vmatprep.subr.mxu0 %v393
    %1927 = vmatpush1.msra.mxu0 %v392
    %1928 = vmatprep.subr.mxu0 %v469
    %1929 = vmatpush1.msra.mxu0 %v468
    %1930 = vmatprep.subr.mxu0 %v545
    %1931 = vmatpush1.msra.mxu0 %v544
    %1932 = vmatprep.subr.mxu0 %v621
    %1933 = vmatpush1.msra.mxu0 %v620
    %1934 = vmatprep.subr.mxu0 %v697
    %1935 = vmatpush1.msra.mxu0 %v696
    %1936 = vmatprep.subr.mxu0 %v773
    %1937 = vmatpush1.msra.mxu0 %v772
    %1938 = vmatprep.subr.mxu0 %v849
    %1939 = vmatpush1.msra.mxu0 %v848
    %1940 = vmatprep.subr.mxu0 %v925
    %1941 = vmatpush1.msra.mxu0 %v924
    %1942 = vmatprep.subr.mxu0 %v1001
    %1943 = vmatpush1.msra.mxu0 %v1000
    %1944 = vmatprep.subr.mxu0 %v1077
    %1945 = vmatpush1.msra.mxu0 %v1076
    %1946 = vmatprep.subr.mxu0 %v86
    %1947 = vmatpush1.msra.mxu0 %v85
    %1948 = vmatprep.subr.mxu0 %v1153
    %1949 = vmatpush1.msra.mxu0 %v1152
    %1950 = vmatprep.subr.mxu0 %v1229
    %1951 = vmatpush1.msra.mxu0 %v1228
    %1952 = vmatprep.subr.mxu0 %v1305
    %1953 = vmatpush1.msra.mxu0 %v1304
    %1954 = vmatprep.subr.mxu0 %v1381
    %1955 = vmatpush1.msra.mxu0 %v1380
    %1956 = vmatprep.subr.mxu0 %v1432
    %1957 = vmatpush1.msra.mxu0 %v1431
    %1958 = vmatprep.subr.mxu0 %v1483
    %1959 = vmatpush1.msra.mxu0 %v1482
    %1960 = vmatprep.subr.mxu0 %v1534
    %1961 = vmatpush1.msra.mxu0 %v1533
    %1962 = vmatprep.subr.mxu0 %v1585
    %1963 = vmatpush1.msra.mxu0 %v1584
    %1964 = vmatprep.subr.mxu0 %v1636
    %1965 = vmatpush1.msra.mxu0 %v1635
    %1966 = vmatprep.subr.mxu0 %v1687
    %1967 = vmatpush1.msra.mxu0 %v1686
    %1968 = vmatprep.subr.mxu0 %v1738
    %1969 = vmatpush1.msra.mxu0 %v1737
    %1970 = vmatprep.subr.mxu0 %v1789
    %1971 = vmatpush1.msra.mxu0 %v1788
    %1972 = vmatprep.subr.mxu0 %v1840
    %1973 = vmatpush1.msra.mxu0 %v1839
    %1974 = vmatprep.subr.mxu0 0.0
    %1975 = vmatpush1.msra.mxu0 0.0
    %1976 = vmatprep.subr.mxu0 0.0
    %1977 = vmatpush1.msra.mxu0 0.0
    %1978 = vmatprep.subr.mxu0 0.0
    %1979 = vmatpush1.msra.mxu0 0.0
    %1980 = vmatprep.subr.mxu0 0.0
    %1981 = vmatpush1.msra.mxu0 0.0
    %1982 = vmatprep.subr.mxu0 0.0
    %1983 = vmatpush1.msra.mxu0 0.0
    %1984 = vmatprep.mubr.f32.mxu0 %v1847
    %1985 = vmatmul.mubr.f32.gmra.mrb[0].mxu0 %v91
    %v1986 = vpop.f32.mrb[0].mxu0
    %v1987 = vadd.f32 0.0, %v1986
    %v1988 = vpop.f32.mrb[0].mxu0
    %v1989 = vadd.f32 0.0, %v1988
    %1990 = vdwg.mxu0
    %1991 = vmatprep.subr.mxu0 %v167
    %1992 = vmatpush1.msra.mxu0 %v166
    %1993 = vmatprep.subr.mxu0 %v243
    %1994 = vmatpush1.msra.mxu0 %v242
    %1995 = vmatprep.subr.mxu0 %v319
    %1996 = vmatpush1.msra.mxu0 %v318
    %1997 = vmatprep.subr.mxu0 %v395
    %1998 = vmatpush1.msra.mxu0 %v394
    %1999 = vmatprep.subr.mxu0 %v471
    %2000 = vmatpush1.msra.mxu0 %v470
    %2001 = vmatprep.subr.mxu0 %v547
    %2002 = vmatpush1.msra.mxu0 %v546
    %2003 = vmatprep.subr.mxu0 %v623
    %2004 = vmatpush1.msra.mxu0 %v622
    %2005 = vmatprep.subr.mxu0 %v699
    %2006 = vmatpush1.msra.mxu0 %v698
    %2007 = vmatprep.subr.mxu0 %v775
    %2008 = vmatpush1.msra.mxu0 %v774
    %2009 = vmatprep.subr.mxu0 %v851
    %2010 = vmatpush1.msra.mxu0 %v850
    %2011 = vmatprep.subr.mxu0 %v927
    %2012 = vmatpush1.msra.mxu0 %v926
    %2013 = vmatprep.subr.mxu0 %v1003
    %2014 = vmatpush1.msra.mxu0 %v1002
    %2015 = vmatprep.subr.mxu0 %v1079
    %2016 = vmatpush1.msra.mxu0 %v1078
    %2017 = vmatprep.subr.mxu0 %v88
    %2018 = vmatpush1.msra.mxu0 %v87
    %2019 = vmatprep.subr.mxu0 %v1155
    %2020 = vmatpush1.msra.mxu0 %v1154
    %2021 = vmatprep.subr.mxu0 %v1231
    %2022 = vmatpush1.msra.mxu0 %v1230
    %2023 = vmatprep.subr.mxu0 %v1307
    %2024 = vmatpush1.msra.mxu0 %v1306
    %2025 = vmatprep.subr.mxu0 %v1383
    %2026 = vmatpush1.msra.mxu0 %v1382
    %2027 = vmatprep.subr.mxu0 %v1434
    %2028 = vmatpush1.msra.mxu0 %v1433
    %2029 = vmatprep.subr.mxu0 %v1485
    %2030 = vmatpush1.msra.mxu0 %v1484
    %2031 = vmatprep.subr.mxu0 %v1536
    %2032 = vmatpush1.msra.mxu0 %v1535
    %2033 = vmatprep.subr.mxu0 %v1587
    %2034 = vmatpush1.msra.mxu0 %v1586
    %2035 = vmatprep.subr.mxu0 %v1638
    %2036 = vmatpush1.msra.mxu0 %v1637
    %2037 = vmatprep.subr.mxu0 %v1689
    %2038 = vmatpush1.msra.mxu0 %v1688
    %2039 = vmatprep.subr.mxu0 %v1740
    %2040 = vmatpush1.msra.mxu0 %v1739
    %2041 = vmatprep.subr.mxu0 %v1791
    %2042 = vmatpush1.msra.mxu0 %v1790
    %2043 = vmatprep.subr.mxu0 %v1842
    %2044 = vmatpush1.msra.mxu0 %v1841
    %2045 = vmatprep.subr.mxu0 0.0
    %2046 = vmatpush1.msra.mxu0 0.0
    %2047 = vmatprep.subr.mxu0 0.0
    %2048 = vmatpush1.msra.mxu0 0.0
    %2049 = vmatprep.subr.mxu0 0.0
    %2050 = vmatpush1.msra.mxu0 0.0
    %2051 = vmatprep.subr.mxu0 0.0
    %2052 = vmatpush1.msra.mxu0 0.0
    %2053 = vmatprep.subr.mxu0 0.0
    %2054 = vmatpush1.msra.mxu0 0.0
    %2055 = vmatprep.mubr.f32.mxu0 %v1847
    %2056 = vmatmul.mubr.f32.gmra.mrb[0].mxu0 %v91
    %v2057 = vpop.f32.mrb[0].mxu0
    %v2058 = vadd.f32 0.0, %v2057
    %v2059 = vpop.f32.mrb[0].mxu0
    %v2060 = vadd.f32 0.0, %v2059
    %2061 = vdwg.mxu0
    %2062 = vmatprep.subr.mxu0 %v169
    %2063 = vmatpush1.msra.mxu0 %v168
    %2064 = vmatprep.subr.mxu0 %v245
    %2065 = vmatpush1.msra.mxu0 %v244
    %2066 = vmatprep.subr.mxu0 %v321
    %2067 = vmatpush1.msra.mxu0 %v320
    %2068 = vmatprep.subr.mxu0 %v397
    %2069 = vmatpush1.msra.mxu0 %v396
    %2070 = vmatprep.subr.mxu0 %v473
    %2071 = vmatpush1.msra.mxu0 %v472
    %2072 = vmatprep.subr.mxu0 %v549
    %2073 = vmatpush1.msra.mxu0 %v548
    %2074 = vmatprep.subr.mxu0 %v625
    %2075 = vmatpush1.msra.mxu0 %v624
    %2076 = vmatprep.subr.mxu0 %v701
    %2077 = vmatpush1.msra.mxu0 %v700
    %2078 = vmatprep.subr.mxu0 %v777
    %2079 = vmatpush1.msra.mxu0 %v776
    %2080 = vmatprep.subr.mxu0 %v853
    %2081 = vmatpush1.msra.mxu0 %v852
    %2082 = vmatprep.subr.mxu0 %v929
    %2083 = vmatpush1.msra.mxu0 %v928
    %2084 = vmatprep.subr.mxu0 %v1005
    %2085 = vmatpush1.msra.mxu0 %v1004
    %2086 = vmatprep.subr.mxu0 %v1081
    %2087 = vmatpush1.msra.mxu0 %v1080
    %2088 = vmatprep.subr.mxu0 %v90
    %2089 = vmatpush1.msra.mxu0 %v89
    %2090 = vmatprep.subr.mxu0 %v1157
    %2091 = vmatpush1.msra.mxu0 %v1156
    %2092 = vmatprep.subr.mxu0 %v1233
    %2093 = vmatpush1.msra.mxu0 %v1232
    %2094 = vmatprep.subr.mxu0 %v1309
    %2095 = vmatpush1.msra.mxu0 %v1308
    %2096 = vmatprep.subr.mxu0 %v1385
    %2097 = vmatpush1.msra.mxu0 %v1384
    %2098 = vmatprep.subr.mxu0 %v1436
    %2099 = vmatpush1.msra.mxu0 %v1435
    %2100 = vmatprep.subr.mxu0 %v1487
    %2101 = vmatpush1.msra.mxu0 %v1486
    %2102 = vmatprep.subr.mxu0 %v1538
    %2103 = vmatpush1.msra.mxu0 %v1537
    %2104 = vmatprep.subr.mxu0 %v1589
    %2105 = vmatpush1.msra.mxu0 %v1588
    %2106 = vmatprep.subr.mxu0 %v1640
    %2107 = vmatpush1.msra.mxu0 %v1639
    %2108 = vmatprep.subr.mxu0 %v1691
    %2109 = vmatpush1.msra.mxu0 %v1690
    %2110 = vmatprep.subr.mxu0 %v1742
    %2111 = vmatpush1.msra.mxu0 %v1741
    %2112 = vmatprep.subr.mxu0 %v1793
    %2113 = vmatpush1.msra.mxu0 %v1792
    %2114 = vmatprep.subr.mxu0 %v1844
    %2115 = vmatpush1.msra.mxu0 %v1843
    %2116 = vmatprep.subr.mxu0 0.0
    %2117 = vmatpush1.msra.mxu0 0.0
    %2118 = vmatprep.subr.mxu0 0.0
    %2119 = vmatpush1.msra.mxu0 0.0
    %2120 = vmatprep.subr.mxu0 0.0
    %2121 = vmatpush1.msra.mxu0 0.0
    %2122 = vmatprep.subr.mxu0 0.0
    %2123 = vmatpush1.msra.mxu0 0.0
    %2124 = vmatprep.subr.mxu0 0.0
    %2125 = vmatpush1.msra.mxu0 0.0
    %2126 = vmatprep.mubr.f32.mxu0 %v1847
    %2127 = vmatmul.mubr.f32.gmra.mrb[0].mxu0 %v91
    %v2128 = vpop.f32.mrb[0].mxu0
    %v2129 = vadd.f32 0.0, %v2128
    %v2130 = vpop.f32.mrb[0].mxu0
    %v2131 = vadd.f32 0.0, %v2130
    %2132 = vdwg.mxu0
    %v2133 = vld [vmem:[%s5] sm:$0xff]
    %v2134 = vld [vmem:[%s6] sm:$0xff]
    %v2135 = vadd.f32 %v1916, %v1918
    %v2136 = vadd.f32 %v2135, %v1987
    %v2137 = vadd.f32 %v2136, %v1989
    %v2138 = vadd.f32 %v2137, %v2058
    %v2139 = vadd.f32 %v2138, %v2060
    %v2140 = vadd.f32 %v2139, %v2129
    %v2141 = vadd.f32 %v2140, %v2131
    %2142 = vadd.xlane.f32.xlu0 %v2141
    %v2143 = vpop.xlane.xlu0 %2142
    %v2144 = vrcp.pop 1024.0
    %v2145 = vmul.f32 %v2143, %v2144
    %v2146 = vsub.f32 %v1916, %v2145
    %v2147 = vsub.f32 %v1918, %v2145
    %v2148 = vsub.f32 %v1987, %v2145
    %v2149 = vsub.f32 %v1989, %v2145
    %v2150 = vsub.f32 %v2058, %v2145
    %v2151 = vsub.f32 %v2060, %v2145
    %v2152 = vsub.f32 %v2129, %v2145
    %v2153 = vsub.f32 %v2131, %v2145
    %v2154 = vmul.f32 %v2146, %v2146
    %v2155 = vmul.f32 %v2147, %v2147
    %v2156 = vmul.f32 %v2148, %v2148
    %v2157 = vmul.f32 %v2149, %v2149
    %v2158 = vmul.f32 %v2150, %v2150
    %v2159 = vmul.f32 %v2151, %v2151
    %v2160 = vmul.f32 %v2152, %v2152
    %v2161 = vmul.f32 %v2153, %v2153
    %v2162 = vadd.f32 %v2154, %v2155
    %v2163 = vadd.f32 %v2162, %v2156
    %v2164 = vadd.f32 %v2163, %v2157
    %v2165 = vadd.f32 %v2164, %v2158
    %v2166 = vadd.f32 %v2165, %v2159
    %v2167 = vadd.f32 %v2166, %v2160
    %v2168 = vadd.f32 %v2167, %v2161
    %2169 = vadd.xlane.f32.xlu0 %v2168
    %v2170 = vpop.xlane.xlu0 %2169
    %v2171 = vmul.f32 %v2170, %v2144
    %v2172 = vadd.f32 %v2171, 0.001
    %v2173 = vrsqrt.pop %v2172
    %v2174 = vmul.f32 %v2146, %v2173
    %v2175 = vmul.f32 %v2147, %v2173
    %v2176 = vmul.f32 %v2148, %v2173
    %v2177 = vmul.f32 %v2149, %v2173
    %v2178 = vmul.f32 %v2150, %v2173
    %v2179 = vmul.f32 %v2151, %v2173
    %v2180 = vmul.f32 %v2152, %v2173
    %v2181 = vmul.f32 %v2153, %v2173
    %2183 = vset.pattern.permute.xlu0 0
    %2184 = vperm.xlu0 %2183, %v2133
    %v2185 = vpop.permute.xlu0 %2184
    %v2187 = vmul.f32 %v2174, %v2185
    %v2188 = vmul.f32 %v2175, %v2185
    %v2189 = vmul.f32 %v2176, %v2185
    %v2190 = vmul.f32 %v2177, %v2185
    %v2191 = vmul.f32 %v2178, %v2185
    %v2192 = vmul.f32 %v2179, %v2185
    %v2193 = vmul.f32 %v2180, %v2185
    %v2194 = vmul.f32 %v2181, %v2185
    %2196 = vset.pattern.permute.xlu0 0
    %2197 = vperm.xlu0 %2196, %v2134
    %v2198 = vpop.permute.xlu0 %2197
    %v2200 = vadd.f32 %v2187, %v2198
    %v2201 = vadd.f32 %v2188, %v2198
    %v2202 = vadd.f32 %v2189, %v2198
    %v2203 = vadd.f32 %v2190, %v2198
    %v2204 = vadd.f32 %v2191, %v2198
    %v2205 = vadd.f32 %v2192, %v2198
    %v2206 = vadd.f32 %v2193, %v2198
    %v2207 = vadd.f32 %v2194, %v2198
    %v2208 = vmax.f32 %v2200, 0.0
    %v2209 = vmax.f32 %v2201, 0.0
    %v2210 = vmax.f32 %v2202, 0.0
    %v2211 = vmax.f32 %v2203, 0.0
    %v2212 = vmax.f32 %v2204, 0.0
    %v2213 = vmax.f32 %v2205, 0.0
    %v2214 = vmax.f32 %v2206, 0.0
    %v2215 = vmax.f32 %v2207, 0.0
    %v2216 = vld [vmem:[%s3] sm:$0xff]
    %v2217 = vld [vmem:[%s3 + $0x8] sm:$0xff]
    %2218 = vrot.lane.b32.xlu0 %v2208, 73
    %v2219 = vpop.permute.xlu0 %2218
    %2220 = vrot.lane.b32.xlu0 %v2209, 73
    %v2221 = vpop.permute.xlu0 %2220
    %2222 = vrot.lane.b32.xlu0 %v2210, 73
    %v2223 = vpop.permute.xlu0 %2222
    %2224 = vrot.lane.b32.xlu0 %v2211, 73
    %v2225 = vpop.permute.xlu0 %2224
    %2226 = vrot.lane.b32.xlu0 %v2212, 73
    %v2227 = vpop.permute.xlu0 %2226
    %2228 = vrot.lane.b32.xlu0 %v2213, 73
    %v2229 = vpop.permute.xlu0 %2228
    %2230 = vrot.lane.b32.xlu0 %v2214, 73
    %v2231 = vpop.permute.xlu0 %2230
    %2232 = vrot.lane.b32.xlu0 %v2215, 73
    %v2233 = vpop.permute.xlu0 %2232
    %v2234 = vsel %vm111, %v2231, %v2233
    %v2235 = vsel %vm111, %v2229, %v2231
    %v2236 = vsel %vm111, %v2227, %v2229
    %v2237 = vsel %vm111, %v2225, %v2227
    %v2238 = vsel %vm111, %v2223, %v2225
    %v2239 = vsel %vm111, %v2221, %v2223
    %v2240 = vsel %vm111, %v2219, %v2221
    %v2241 = vsel %vm111, %v2233, %v2219
    %v2242 = vmul.f32 %v2241, %v125
    %v2243 = vmul.f32 %v2240, %v129
    %v2244 = vmul.f32 %v2239, %v133
    %v2245 = vmul.f32 %v2238, %v137
    %v2246 = vmul.f32 %v2237, %v141
    %v2247 = vmul.f32 %v2236, %v145
    %v2248 = vmul.f32 %v2235, %v149
    %v2249 = vmul.f32 %v2234, %v153
    %2250 = vrot.lane.b32.xlu0 %v2208, 72
    %v2251 = vpop.permute.xlu0 %2250
    %2252 = vrot.lane.b32.xlu0 %v2209, 72
    %v2253 = vpop.permute.xlu0 %2252
    %2254 = vrot.lane.b32.xlu0 %v2210, 72
    %v2255 = vpop.permute.xlu0 %2254
    %2256 = vrot.lane.b32.xlu0 %v2211, 72
    %v2257 = vpop.permute.xlu0 %2256
    %2258 = vrot.lane.b32.xlu0 %v2212, 72
    %v2259 = vpop.permute.xlu0 %2258
    %2260 = vrot.lane.b32.xlu0 %v2213, 72
    %v2261 = vpop.permute.xlu0 %2260
    %2262 = vrot.lane.b32.xlu0 %v2214, 72
    %v2263 = vpop.permute.xlu0 %2262
    %2264 = vrot.lane.b32.xlu0 %v2215, 72
    %v2265 = vpop.permute.xlu0 %2264
    %v2266 = vsel %vm186, %v2263, %v2265
    %v2267 = vsel %vm186, %v2261, %v2263
    %v2268 = vsel %vm186, %v2259, %v2261
    %v2269 = vsel %vm186, %v2257, %v2259
    %v2270 = vsel %vm186, %v2255, %v2257
    %v2271 = vsel %vm186, %v2253, %v2255
    %v2272 = vsel %vm186, %v2251, %v2253
    %v2273 = vsel %vm186, %v2265, %v2251
    %v2274 = vmul.f32 %v2273, %v201
    %v2275 = vmul.f32 %v2272, %v205
    %v2276 = vmul.f32 %v2271, %v209
    %v2277 = vmul.f32 %v2270, %v213
    %v2278 = vmul.f32 %v2269, %v217
    %v2279 = vmul.f32 %v2268, %v221
    %v2280 = vmul.f32 %v2267, %v225
    %v2281 = vmul.f32 %v2266, %v229
    %2282 = vrot.lane.b32.xlu0 %v2208, 71
    %v2283 = vpop.permute.xlu0 %2282
    %2284 = vrot.lane.b32.xlu0 %v2209, 71
    %v2285 = vpop.permute.xlu0 %2284
    %2286 = vrot.lane.b32.xlu0 %v2210, 71
    %v2287 = vpop.permute.xlu0 %2286
    %2288 = vrot.lane.b32.xlu0 %v2211, 71
    %v2289 = vpop.permute.xlu0 %2288
    %2290 = vrot.lane.b32.xlu0 %v2212, 71
    %v2291 = vpop.permute.xlu0 %2290
    %2292 = vrot.lane.b32.xlu0 %v2213, 71
    %v2293 = vpop.permute.xlu0 %2292
    %2294 = vrot.lane.b32.xlu0 %v2214, 71
    %v2295 = vpop.permute.xlu0 %2294
    %2296 = vrot.lane.b32.xlu0 %v2215, 71
    %v2297 = vpop.permute.xlu0 %2296
    %v2298 = vsel %vm262, %v2295, %v2297
    %v2299 = vsel %vm262, %v2293, %v2295
    %v2300 = vsel %vm262, %v2291, %v2293
    %v2301 = vsel %vm262, %v2289, %v2291
    %v2302 = vsel %vm262, %v2287, %v2289
    %v2303 = vsel %vm262, %v2285, %v2287
    %v2304 = vsel %vm262, %v2283, %v2285
    %v2305 = vsel %vm262, %v2297, %v2283
    %v2306 = vmul.f32 %v2305, %v277
    %v2307 = vmul.f32 %v2304, %v281
    %v2308 = vmul.f32 %v2303, %v285
    %v2309 = vmul.f32 %v2302, %v289
    %v2310 = vmul.f32 %v2301, %v293
    %v2311 = vmul.f32 %v2300, %v297
    %v2312 = vmul.f32 %v2299, %v301
    %v2313 = vmul.f32 %v2298, %v305
    %2314 = vrot.lane.b32.xlu0 %v2208, 65
    %v2315 = vpop.permute.xlu0 %2314
    %2316 = vrot.lane.b32.xlu0 %v2209, 65
    %v2317 = vpop.permute.xlu0 %2316
    %2318 = vrot.lane.b32.xlu0 %v2210, 65
    %v2319 = vpop.permute.xlu0 %2318
    %2320 = vrot.lane.b32.xlu0 %v2211, 65
    %v2321 = vpop.permute.xlu0 %2320
    %2322 = vrot.lane.b32.xlu0 %v2212, 65
    %v2323 = vpop.permute.xlu0 %2322
    %2324 = vrot.lane.b32.xlu0 %v2213, 65
    %v2325 = vpop.permute.xlu0 %2324
    %2326 = vrot.lane.b32.xlu0 %v2214, 65
    %v2327 = vpop.permute.xlu0 %2326
    %2328 = vrot.lane.b32.xlu0 %v2215, 65
    %v2329 = vpop.permute.xlu0 %2328
    %v2330 = vsel %vm338, %v2327, %v2329
    %v2331 = vsel %vm338, %v2325, %v2327
    %v2332 = vsel %vm338, %v2323, %v2325
    %v2333 = vsel %vm338, %v2321, %v2323
    %v2334 = vsel %vm338, %v2319, %v2321
    %v2335 = vsel %vm338, %v2317, %v2319
    %v2336 = vsel %vm338, %v2315, %v2317
    %v2337 = vsel %vm338, %v2329, %v2315
    %v2338 = vmul.f32 %v2337, %v353
    %v2339 = vmul.f32 %v2336, %v357
    %v2340 = vmul.f32 %v2335, %v361
    %v2341 = vmul.f32 %v2334, %v365
    %v2342 = vmul.f32 %v2333, %v369
    %v2343 = vmul.f32 %v2332, %v373
    %v2344 = vmul.f32 %v2331, %v377
    %v2345 = vmul.f32 %v2330, %v381
    %2346 = vrot.lane.b32.xlu0 %v2208, 64
    %v2347 = vpop.permute.xlu0 %2346
    %2348 = vrot.lane.b32.xlu0 %v2209, 64
    %v2349 = vpop.permute.xlu0 %2348
    %2350 = vrot.lane.b32.xlu0 %v2210, 64
    %v2351 = vpop.permute.xlu0 %2350
    %2352 = vrot.lane.b32.xlu0 %v2211, 64
    %v2353 = vpop.permute.xlu0 %2352
    %2354 = vrot.lane.b32.xlu0 %v2212, 64
    %v2355 = vpop.permute.xlu0 %2354
    %2356 = vrot.lane.b32.xlu0 %v2213, 64
    %v2357 = vpop.permute.xlu0 %2356
    %2358 = vrot.lane.b32.xlu0 %v2214, 64
    %v2359 = vpop.permute.xlu0 %2358
    %2360 = vrot.lane.b32.xlu0 %v2215, 64
    %v2361 = vpop.permute.xlu0 %2360
    %v2362 = vsel %vm414, %v2359, %v2361
    %v2363 = vsel %vm414, %v2357, %v2359
    %v2364 = vsel %vm414, %v2355, %v2357
    %v2365 = vsel %vm414, %v2353, %v2355
    %v2366 = vsel %vm414, %v2351, %v2353
    %v2367 = vsel %vm414, %v2349, %v2351
    %v2368 = vsel %vm414, %v2347, %v2349
    %v2369 = vsel %vm414, %v2361, %v2347
    %v2370 = vmul.f32 %v2369, %v429
    %v2371 = vmul.f32 %v2368, %v433
    %v2372 = vmul.f32 %v2367, %v437
    %v2373 = vmul.f32 %v2366, %v441
    %v2374 = vmul.f32 %v2365, %v445
    %v2375 = vmul.f32 %v2364, %v449
    %v2376 = vmul.f32 %v2363, %v453
    %v2377 = vmul.f32 %v2362, %v457
    %2378 = vrot.lane.b32.xlu0 %v2208, 63
    %v2379 = vpop.permute.xlu0 %2378
    %2380 = vrot.lane.b32.xlu0 %v2209, 63
    %v2381 = vpop.permute.xlu0 %2380
    %2382 = vrot.lane.b32.xlu0 %v2210, 63
    %v2383 = vpop.permute.xlu0 %2382
    %2384 = vrot.lane.b32.xlu0 %v2211, 63
    %v2385 = vpop.permute.xlu0 %2384
    %2386 = vrot.lane.b32.xlu0 %v2212, 63
    %v2387 = vpop.permute.xlu0 %2386
    %2388 = vrot.lane.b32.xlu0 %v2213, 63
    %v2389 = vpop.permute.xlu0 %2388
    %2390 = vrot.lane.b32.xlu0 %v2214, 63
    %v2391 = vpop.permute.xlu0 %2390
    %2392 = vrot.lane.b32.xlu0 %v2215, 63
    %v2393 = vpop.permute.xlu0 %2392
    %v2394 = vsel %vm490, %v2391, %v2393
    %v2395 = vsel %vm490, %v2389, %v2391
    %v2396 = vsel %vm490, %v2387, %v2389
    %v2397 = vsel %vm490, %v2385, %v2387
    %v2398 = vsel %vm490, %v2383, %v2385
    %v2399 = vsel %vm490, %v2381, %v2383
    %v2400 = vsel %vm490, %v2379, %v2381
    %v2401 = vsel %vm490, %v2393, %v2379
    %v2402 = vmul.f32 %v2401, %v505
    %v2403 = vmul.f32 %v2400, %v509
    %v2404 = vmul.f32 %v2399, %v513
    %v2405 = vmul.f32 %v2398, %v517
    %v2406 = vmul.f32 %v2397, %v521
    %v2407 = vmul.f32 %v2396, %v525
    %v2408 = vmul.f32 %v2395, %v529
    %v2409 = vmul.f32 %v2394, %v533
    %2410 = vrot.lane.b32.xlu0 %v2208, 57
    %v2411 = vpop.permute.xlu0 %2410
    %2412 = vrot.lane.b32.xlu0 %v2209, 57
    %v2413 = vpop.permute.xlu0 %2412
    %2414 = vrot.lane.b32.xlu0 %v2210, 57
    %v2415 = vpop.permute.xlu0 %2414
    %2416 = vrot.lane.b32.xlu0 %v2211, 57
    %v2417 = vpop.permute.xlu0 %2416
    %2418 = vrot.lane.b32.xlu0 %v2212, 57
    %v2419 = vpop.permute.xlu0 %2418
    %2420 = vrot.lane.b32.xlu0 %v2213, 57
    %v2421 = vpop.permute.xlu0 %2420
    %2422 = vrot.lane.b32.xlu0 %v2214, 57
    %v2423 = vpop.permute.xlu0 %2422
    %2424 = vrot.lane.b32.xlu0 %v2215, 57
    %v2425 = vpop.permute.xlu0 %2424
    %v2426 = vsel %vm566, %v2423, %v2425
    %v2427 = vsel %vm566, %v2421, %v2423
    %v2428 = vsel %vm566, %v2419, %v2421
    %v2429 = vsel %vm566, %v2417, %v2419
    %v2430 = vsel %vm566, %v2415, %v2417
    %v2431 = vsel %vm566, %v2413, %v2415
    %v2432 = vsel %vm566, %v2411, %v2413
    %v2433 = vsel %vm566, %v2425, %v2411
    %v2434 = vmul.f32 %v2433, %v581
    %v2435 = vmul.f32 %v2432, %v585
    %v2436 = vmul.f32 %v2431, %v589
    %v2437 = vmul.f32 %v2430, %v593
    %v2438 = vmul.f32 %v2429, %v597
    %v2439 = vmul.f32 %v2428, %v601
    %v2440 = vmul.f32 %v2427, %v605
    %v2441 = vmul.f32 %v2426, %v609
    %2442 = vrot.lane.b32.xlu0 %v2208, 56
    %v2443 = vpop.permute.xlu0 %2442
    %2444 = vrot.lane.b32.xlu0 %v2209, 56
    %v2445 = vpop.permute.xlu0 %2444
    %2446 = vrot.lane.b32.xlu0 %v2210, 56
    %v2447 = vpop.permute.xlu0 %2446
    %2448 = vrot.lane.b32.xlu0 %v2211, 56
    %v2449 = vpop.permute.xlu0 %2448
    %2450 = vrot.lane.b32.xlu0 %v2212, 56
    %v2451 = vpop.permute.xlu0 %2450
    %2452 = vrot.lane.b32.xlu0 %v2213, 56
    %v2453 = vpop.permute.xlu0 %2452
    %2454 = vrot.lane.b32.xlu0 %v2214, 56
    %v2455 = vpop.permute.xlu0 %2454
    %2456 = vrot.lane.b32.xlu0 %v2215, 56
    %v2457 = vpop.permute.xlu0 %2456
    %v2458 = vsel %vm642, %v2455, %v2457
    %v2459 = vsel %vm642, %v2453, %v2455
    %v2460 = vsel %vm642, %v2451, %v2453
    %v2461 = vsel %vm642, %v2449, %v2451
    %v2462 = vsel %vm642, %v2447, %v2449
    %v2463 = vsel %vm642, %v2445, %v2447
    %v2464 = vsel %vm642, %v2443, %v2445
    %v2465 = vsel %vm642, %v2457, %v2443
    %v2466 = vmul.f32 %v2465, %v657
    %v2467 = vmul.f32 %v2464, %v661
    %v2468 = vmul.f32 %v2463, %v665
    %v2469 = vmul.f32 %v2462, %v669
    %v2470 = vmul.f32 %v2461, %v673
    %v2471 = vmul.f32 %v2460, %v677
    %v2472 = vmul.f32 %v2459, %v681
    %v2473 = vmul.f32 %v2458, %v685
    %2474 = vrot.lane.b32.xlu0 %v2208, 55
    %v2475 = vpop.permute.xlu0 %2474
    %2476 = vrot.lane.b32.xlu0 %v2209, 55
    %v2477 = vpop.permute.xlu0 %2476
    %2478 = vrot.lane.b32.xlu0 %v2210, 55
    %v2479 = vpop.permute.xlu0 %2478
    %2480 = vrot.lane.b32.xlu0 %v2211, 55
    %v2481 = vpop.permute.xlu0 %2480
    %2482 = vrot.lane.b32.xlu0 %v2212, 55
    %v2483 = vpop.permute.xlu0 %2482
    %2484 = vrot.lane.b32.xlu0 %v2213, 55
    %v2485 = vpop.permute.xlu0 %2484
    %2486 = vrot.lane.b32.xlu0 %v2214, 55
    %v2487 = vpop.permute.xlu0 %2486
    %2488 = vrot.lane.b32.xlu0 %v2215, 55
    %v2489 = vpop.permute.xlu0 %2488
    %v2490 = vsel %vm718, %v2487, %v2489
    %v2491 = vsel %vm718, %v2485, %v2487
    %v2492 = vsel %vm718, %v2483, %v2485
    %v2493 = vsel %vm718, %v2481, %v2483
    %v2494 = vsel %vm718, %v2479, %v2481
    %v2495 = vsel %vm718, %v2477, %v2479
    %v2496 = vsel %vm718, %v2475, %v2477
    %v2497 = vsel %vm718, %v2489, %v2475
    %v2498 = vmul.f32 %v2497, %v733
    %v2499 = vmul.f32 %v2496, %v737
    %v2500 = vmul.f32 %v2495, %v741
    %v2501 = vmul.f32 %v2494, %v745
    %v2502 = vmul.f32 %v2493, %v749
    %v2503 = vmul.f32 %v2492, %v753
    %v2504 = vmul.f32 %v2491, %v757
    %v2505 = vmul.f32 %v2490, %v761
    %2506 = vrot.lane.b32.xlu0 %v2208, 9
    %v2507 = vpop.permute.xlu0 %2506
    %2508 = vrot.lane.b32.xlu0 %v2209, 9
    %v2509 = vpop.permute.xlu0 %2508
    %2510 = vrot.lane.b32.xlu0 %v2210, 9
    %v2511 = vpop.permute.xlu0 %2510
    %2512 = vrot.lane.b32.xlu0 %v2211, 9
    %v2513 = vpop.permute.xlu0 %2512
    %2514 = vrot.lane.b32.xlu0 %v2212, 9
    %v2515 = vpop.permute.xlu0 %2514
    %2516 = vrot.lane.b32.xlu0 %v2213, 9
    %v2517 = vpop.permute.xlu0 %2516
    %2518 = vrot.lane.b32.xlu0 %v2214, 9
    %v2519 = vpop.permute.xlu0 %2518
    %2520 = vrot.lane.b32.xlu0 %v2215, 9
    %v2521 = vpop.permute.xlu0 %2520
    %v2522 = vsel %vm794, %v2519, %v2521
    %v2523 = vsel %vm794, %v2517, %v2519
    %v2524 = vsel %vm794, %v2515, %v2517
    %v2525 = vsel %vm794, %v2513, %v2515
    %v2526 = vsel %vm794, %v2511, %v2513
    %v2527 = vsel %vm794, %v2509, %v2511
    %v2528 = vsel %vm794, %v2507, %v2509
    %v2529 = vsel %vm794, %v2521, %v2507
    %v2530 = vmul.f32 %v2529, %v809
    %v2531 = vmul.f32 %v2528, %v813
    %v2532 = vmul.f32 %v2527, %v817
    %v2533 = vmul.f32 %v2526, %v821
    %v2534 = vmul.f32 %v2525, %v825
    %v2535 = vmul.f32 %v2524, %v829
    %v2536 = vmul.f32 %v2523, %v833
    %v2537 = vmul.f32 %v2522, %v837
    %2538 = vrot.lane.b32.xlu0 %v2208, 8
    %v2539 = vpop.permute.xlu0 %2538
    %2540 = vrot.lane.b32.xlu0 %v2209, 8
    %v2541 = vpop.permute.xlu0 %2540
    %2542 = vrot.lane.b32.xlu0 %v2210, 8
    %v2543 = vpop.permute.xlu0 %2542
    %2544 = vrot.lane.b32.xlu0 %v2211, 8
    %v2545 = vpop.permute.xlu0 %2544
    %2546 = vrot.lane.b32.xlu0 %v2212, 8
    %v2547 = vpop.permute.xlu0 %2546
    %2548 = vrot.lane.b32.xlu0 %v2213, 8
    %v2549 = vpop.permute.xlu0 %2548
    %2550 = vrot.lane.b32.xlu0 %v2214, 8
    %v2551 = vpop.permute.xlu0 %2550
    %2552 = vrot.lane.b32.xlu0 %v2215, 8
    %v2553 = vpop.permute.xlu0 %2552
    %v2554 = vsel %vm870, %v2551, %v2553
    %v2555 = vsel %vm870, %v2549, %v2551
    %v2556 = vsel %vm870, %v2547, %v2549
    %v2557 = vsel %vm870, %v2545, %v2547
    %v2558 = vsel %vm870, %v2543, %v2545
    %v2559 = vsel %vm870, %v2541, %v2543
    %v2560 = vsel %vm870, %v2539, %v2541
    %v2561 = vsel %vm870, %v2553, %v2539
    %v2562 = vmul.f32 %v2561, %v885
    %v2563 = vmul.f32 %v2560, %v889
    %v2564 = vmul.f32 %v2559, %v893
    %v2565 = vmul.f32 %v2558, %v897
    %v2566 = vmul.f32 %v2557, %v901
    %v2567 = vmul.f32 %v2556, %v905
    %v2568 = vmul.f32 %v2555, %v909
    %v2569 = vmul.f32 %v2554, %v913
    %2570 = vrot.lane.b32.xlu0 %v2208, 7
    %v2571 = vpop.permute.xlu0 %2570
    %2572 = vrot.lane.b32.xlu0 %v2209, 7
    %v2573 = vpop.permute.xlu0 %2572
    %2574 = vrot.lane.b32.xlu0 %v2210, 7
    %v2575 = vpop.permute.xlu0 %2574
    %2576 = vrot.lane.b32.xlu0 %v2211, 7
    %v2577 = vpop.permute.xlu0 %2576
    %2578 = vrot.lane.b32.xlu0 %v2212, 7
    %v2579 = vpop.permute.xlu0 %2578
    %2580 = vrot.lane.b32.xlu0 %v2213, 7
    %v2581 = vpop.permute.xlu0 %2580
    %2582 = vrot.lane.b32.xlu0 %v2214, 7
    %v2583 = vpop.permute.xlu0 %2582
    %2584 = vrot.lane.b32.xlu0 %v2215, 7
    %v2585 = vpop.permute.xlu0 %2584
    %v2586 = vsel %vm946, %v2583, %v2585
    %v2587 = vsel %vm946, %v2581, %v2583
    %v2588 = vsel %vm946, %v2579, %v2581
    %v2589 = vsel %vm946, %v2577, %v2579
    %v2590 = vsel %vm946, %v2575, %v2577
    %v2591 = vsel %vm946, %v2573, %v2575
    %v2592 = vsel %vm946, %v2571, %v2573
    %v2593 = vsel %vm946, %v2585, %v2571
    %v2594 = vmul.f32 %v2593, %v961
    %v2595 = vmul.f32 %v2592, %v965
    %v2596 = vmul.f32 %v2591, %v969
    %v2597 = vmul.f32 %v2590, %v973
    %v2598 = vmul.f32 %v2589, %v977
    %v2599 = vmul.f32 %v2588, %v981
    %v2600 = vmul.f32 %v2587, %v985
    %v2601 = vmul.f32 %v2586, %v989
    %2602 = vrot.lane.b32.xlu0 %v2208, 1
    %v2603 = vpop.permute.xlu0 %2602
    %2604 = vrot.lane.b32.xlu0 %v2209, 1
    %v2605 = vpop.permute.xlu0 %2604
    %2606 = vrot.lane.b32.xlu0 %v2210, 1
    %v2607 = vpop.permute.xlu0 %2606
    %2608 = vrot.lane.b32.xlu0 %v2211, 1
    %v2609 = vpop.permute.xlu0 %2608
    %2610 = vrot.lane.b32.xlu0 %v2212, 1
    %v2611 = vpop.permute.xlu0 %2610
    %2612 = vrot.lane.b32.xlu0 %v2213, 1
    %v2613 = vpop.permute.xlu0 %2612
    %2614 = vrot.lane.b32.xlu0 %v2214, 1
    %v2615 = vpop.permute.xlu0 %2614
    %2616 = vrot.lane.b32.xlu0 %v2215, 1
    %v2617 = vpop.permute.xlu0 %2616
    %v2618 = vsel %vm1022, %v2615, %v2617
    %v2619 = vsel %vm1022, %v2613, %v2615
    %v2620 = vsel %vm1022, %v2611, %v2613
    %v2621 = vsel %vm1022, %v2609, %v2611
    %v2622 = vsel %vm1022, %v2607, %v2609
    %v2623 = vsel %vm1022, %v2605, %v2607
    %v2624 = vsel %vm1022, %v2603, %v2605
    %v2625 = vsel %vm1022, %v2617, %v2603
    %v2626 = vmul.f32 %v2625, %v1037
    %v2627 = vmul.f32 %v2624, %v1041
    %v2628 = vmul.f32 %v2623, %v1045
    %v2629 = vmul.f32 %v2622, %v1049
    %v2630 = vmul.f32 %v2621, %v1053
    %v2631 = vmul.f32 %v2620, %v1057
    %v2632 = vmul.f32 %v2619, %v1061
    %v2633 = vmul.f32 %v2618, %v1065
    %2634 = vrot.lane.b32.xlu0 %v2208, 127
    %v2635 = vpop.permute.xlu0 %2634
    %2636 = vrot.lane.b32.xlu0 %v2209, 127
    %v2637 = vpop.permute.xlu0 %2636
    %2638 = vrot.lane.b32.xlu0 %v2210, 127
    %v2639 = vpop.permute.xlu0 %2638
    %2640 = vrot.lane.b32.xlu0 %v2211, 127
    %v2641 = vpop.permute.xlu0 %2640
    %2642 = vrot.lane.b32.xlu0 %v2212, 127
    %v2643 = vpop.permute.xlu0 %2642
    %2644 = vrot.lane.b32.xlu0 %v2213, 127
    %v2645 = vpop.permute.xlu0 %2644
    %2646 = vrot.lane.b32.xlu0 %v2214, 127
    %v2647 = vpop.permute.xlu0 %2646
    %2648 = vrot.lane.b32.xlu0 %v2215, 127
    %v2649 = vpop.permute.xlu0 %2648
    %v2650 = vsel %vm1098, %v2647, %v2649
    %v2651 = vsel %vm1098, %v2645, %v2647
    %v2652 = vsel %vm1098, %v2643, %v2645
    %v2653 = vsel %vm1098, %v2641, %v2643
    %v2654 = vsel %vm1098, %v2639, %v2641
    %v2655 = vsel %vm1098, %v2637, %v2639
    %v2656 = vsel %vm1098, %v2635, %v2637
    %v2657 = vsel %vm1098, %v2649, %v2635
    %v2658 = vmul.f32 %v2656, %v1113
    %v2659 = vmul.f32 %v2655, %v1117
    %v2660 = vmul.f32 %v2654, %v1121
    %v2661 = vmul.f32 %v2653, %v1125
    %v2662 = vmul.f32 %v2652, %v1129
    %v2663 = vmul.f32 %v2651, %v1133
    %v2664 = vmul.f32 %v2650, %v1137
    %v2665 = vmul.f32 %v2657, %v1141
    %2666 = vrot.lane.b32.xlu0 %v2208, 121
    %v2667 = vpop.permute.xlu0 %2666
    %2668 = vrot.lane.b32.xlu0 %v2209, 121
    %v2669 = vpop.permute.xlu0 %2668
    %2670 = vrot.lane.b32.xlu0 %v2210, 121
    %v2671 = vpop.permute.xlu0 %2670
    %2672 = vrot.lane.b32.xlu0 %v2211, 121
    %v2673 = vpop.permute.xlu0 %2672
    %2674 = vrot.lane.b32.xlu0 %v2212, 121
    %v2675 = vpop.permute.xlu0 %2674
    %2676 = vrot.lane.b32.xlu0 %v2213, 121
    %v2677 = vpop.permute.xlu0 %2676
    %2678 = vrot.lane.b32.xlu0 %v2214, 121
    %v2679 = vpop.permute.xlu0 %2678
    %2680 = vrot.lane.b32.xlu0 %v2215, 121
    %v2681 = vpop.permute.xlu0 %2680
    %v2682 = vsel %vm1174, %v2679, %v2681
    %v2683 = vsel %vm1174, %v2677, %v2679
    %v2684 = vsel %vm1174, %v2675, %v2677
    %v2685 = vsel %vm1174, %v2673, %v2675
    %v2686 = vsel %vm1174, %v2671, %v2673
    %v2687 = vsel %vm1174, %v2669, %v2671
    %v2688 = vsel %vm1174, %v2667, %v2669
    %v2689 = vsel %vm1174, %v2681, %v2667
    %v2690 = vmul.f32 %v2688, %v1189
    %v2691 = vmul.f32 %v2687, %v1193
    %v2692 = vmul.f32 %v2686, %v1197
    %v2693 = vmul.f32 %v2685, %v1201
    %v2694 = vmul.f32 %v2684, %v1205
    %v2695 = vmul.f32 %v2683, %v1209
    %v2696 = vmul.f32 %v2682, %v1213
    %v2697 = vmul.f32 %v2689, %v1217
    %2698 = vrot.lane.b32.xlu0 %v2208, 120
    %v2699 = vpop.permute.xlu0 %2698
    %2700 = vrot.lane.b32.xlu0 %v2209, 120
    %v2701 = vpop.permute.xlu0 %2700
    %2702 = vrot.lane.b32.xlu0 %v2210, 120
    %v2703 = vpop.permute.xlu0 %2702
    %2704 = vrot.lane.b32.xlu0 %v2211, 120
    %v2705 = vpop.permute.xlu0 %2704
    %2706 = vrot.lane.b32.xlu0 %v2212, 120
    %v2707 = vpop.permute.xlu0 %2706
    %2708 = vrot.lane.b32.xlu0 %v2213, 120
    %v2709 = vpop.permute.xlu0 %2708
    %2710 = vrot.lane.b32.xlu0 %v2214, 120
    %v2711 = vpop.permute.xlu0 %2710
    %2712 = vrot.lane.b32.xlu0 %v2215, 120
    %v2713 = vpop.permute.xlu0 %2712
    %v2714 = vsel %vm1250, %v2711, %v2713
    %v2715 = vsel %vm1250, %v2709, %v2711
    %v2716 = vsel %vm1250, %v2707, %v2709
    %v2717 = vsel %vm1250, %v2705, %v2707
    %v2718 = vsel %vm1250, %v2703, %v2705
    %v2719 = vsel %vm1250, %v2701, %v2703
    %v2720 = vsel %vm1250, %v2699, %v2701
    %v2721 = vsel %vm1250, %v2713, %v2699
    %v2722 = vmul.f32 %v2720, %v1265
    %v2723 = vmul.f32 %v2719, %v1269
    %v2724 = vmul.f32 %v2718, %v1273
    %v2725 = vmul.f32 %v2717, %v1277
    %v2726 = vmul.f32 %v2716, %v1281
    %v2727 = vmul.f32 %v2715, %v1285
    %v2728 = vmul.f32 %v2714, %v1289
    %v2729 = vmul.f32 %v2721, %v1293
    %2730 = vrot.lane.b32.xlu0 %v2208, 119
    %v2731 = vpop.permute.xlu0 %2730
    %2732 = vrot.lane.b32.xlu0 %v2209, 119
    %v2733 = vpop.permute.xlu0 %2732
    %2734 = vrot.lane.b32.xlu0 %v2210, 119
    %v2735 = vpop.permute.xlu0 %2734
    %2736 = vrot.lane.b32.xlu0 %v2211, 119
    %v2737 = vpop.permute.xlu0 %2736
    %2738 = vrot.lane.b32.xlu0 %v2212, 119
    %v2739 = vpop.permute.xlu0 %2738
    %2740 = vrot.lane.b32.xlu0 %v2213, 119
    %v2741 = vpop.permute.xlu0 %2740
    %2742 = vrot.lane.b32.xlu0 %v2214, 119
    %v2743 = vpop.permute.xlu0 %2742
    %2744 = vrot.lane.b32.xlu0 %v2215, 119
    %v2745 = vpop.permute.xlu0 %2744
    %v2746 = vsel %vm1326, %v2743, %v2745
    %v2747 = vsel %vm1326, %v2741, %v2743
    %v2748 = vsel %vm1326, %v2739, %v2741
    %v2749 = vsel %vm1326, %v2737, %v2739
    %v2750 = vsel %vm1326, %v2735, %v2737
    %v2751 = vsel %vm1326, %v2733, %v2735
    %v2752 = vsel %vm1326, %v2731, %v2733
    %v2753 = vsel %vm1326, %v2745, %v2731
    %v2754 = vmul.f32 %v2752, %v1341
    %v2755 = vmul.f32 %v2751, %v1345
    %v2756 = vmul.f32 %v2750, %v1349
    %v2757 = vmul.f32 %v2749, %v1353
    %v2758 = vmul.f32 %v2748, %v1357
    %v2759 = vmul.f32 %v2747, %v1361
    %v2760 = vmul.f32 %v2746, %v1365
    %v2761 = vmul.f32 %v2753, %v1369
    %v2762 = vmul.f32 %v2240, %v1392
    %v2763 = vmul.f32 %v2239, %v1396
    %v2764 = vmul.f32 %v2238, %v1400
    %v2765 = vmul.f32 %v2237, %v1404
    %v2766 = vmul.f32 %v2236, %v1408
    %v2767 = vmul.f32 %v2235, %v1412
    %v2768 = vmul.f32 %v2234, %v1416
    %v2769 = vmul.f32 %v2241, %v1420
    %v2770 = vmul.f32 %v2272, %v1443
    %v2771 = vmul.f32 %v2271, %v1447
    %v2772 = vmul.f32 %v2270, %v1451
    %v2773 = vmul.f32 %v2269, %v1455
    %v2774 = vmul.f32 %v2268, %v1459
    %v2775 = vmul.f32 %v2267, %v1463
    %v2776 = vmul.f32 %v2266, %v1467
    %v2777 = vmul.f32 %v2273, %v1471
    %v2778 = vmul.f32 %v2304, %v1494
    %v2779 = vmul.f32 %v2303, %v1498
    %v2780 = vmul.f32 %v2302, %v1502
    %v2781 = vmul.f32 %v2301, %v1506
    %v2782 = vmul.f32 %v2300, %v1510
    %v2783 = vmul.f32 %v2299, %v1514
    %v2784 = vmul.f32 %v2298, %v1518
    %v2785 = vmul.f32 %v2305, %v1522
    %v2786 = vmul.f32 %v2336, %v1545
    %v2787 = vmul.f32 %v2335, %v1549
    %v2788 = vmul.f32 %v2334, %v1553
    %v2789 = vmul.f32 %v2333, %v1557
    %v2790 = vmul.f32 %v2332, %v1561
    %v2791 = vmul.f32 %v2331, %v1565
    %v2792 = vmul.f32 %v2330, %v1569
    %v2793 = vmul.f32 %v2337, %v1573
    %v2794 = vmul.f32 %v2368, %v1596
    %v2795 = vmul.f32 %v2367, %v1600
    %v2796 = vmul.f32 %v2366, %v1604
    %v2797 = vmul.f32 %v2365, %v1608
    %v2798 = vmul.f32 %v2364, %v1612
    %v2799 = vmul.f32 %v2363, %v1616
    %v2800 = vmul.f32 %v2362, %v1620
    %v2801 = vmul.f32 %v2369, %v1624
    %v2802 = vmul.f32 %v2400, %v1647
    %v2803 = vmul.f32 %v2399, %v1651
    %v2804 = vmul.f32 %v2398, %v1655
    %v2805 = vmul.f32 %v2397, %v1659
    %v2806 = vmul.f32 %v2396, %v1663
    %v2807 = vmul.f32 %v2395, %v1667
    %v2808 = vmul.f32 %v2394, %v1671
    %v2809 = vmul.f32 %v2401, %v1675
    %v2810 = vmul.f32 %v2432, %v1698
    %v2811 = vmul.f32 %v2431, %v1702
    %v2812 = vmul.f32 %v2430, %v1706
    %v2813 = vmul.f32 %v2429, %v1710
    %v2814 = vmul.f32 %v2428, %v1714
    %v2815 = vmul.f32 %v2427, %v1718
    %v2816 = vmul.f32 %v2426, %v1722
    %v2817 = vmul.f32 %v2433, %v1726
    %v2818 = vmul.f32 %v2464, %v1749
    %v2819 = vmul.f32 %v2463, %v1753
    %v2820 = vmul.f32 %v2462, %v1757
    %v2821 = vmul.f32 %v2461, %v1761
    %v2822 = vmul.f32 %v2460, %v1765
    %v2823 = vmul.f32 %v2459, %v1769
    %v2824 = vmul.f32 %v2458, %v1773
    %v2825 = vmul.f32 %v2465, %v1777
    %v2826 = vmul.f32 %v2496, %v1800
    %v2827 = vmul.f32 %v2495, %v1804
    %v2828 = vmul.f32 %v2494, %v1808
    %v2829 = vmul.f32 %v2493, %v1812
    %v2830 = vmul.f32 %v2492, %v1816
    %v2831 = vmul.f32 %v2491, %v1820
    %v2832 = vmul.f32 %v2490, %v1824
    %v2833 = vmul.f32 %v2497, %v1828
    %v2835 = vsel %vm1845, %v2217, 0
    %2837 = vmatprep.subr.mxu0 %v2243
    %2838 = vmatpush1.msra.mxu0 %v2242
    %2839 = vmatprep.subr.mxu0 %v2275
    %2840 = vmatpush1.msra.mxu0 %v2274
    %2841 = vmatprep.subr.mxu0 %v2307
    %2842 = vmatpush1.msra.mxu0 %v2306
    %2843 = vmatprep.subr.mxu0 %v2339
    %2844 = vmatpush1.msra.mxu0 %v2338
    %2845 = vmatprep.subr.mxu0 %v2371
    %2846 = vmatpush1.msra.mxu0 %v2370
    %2847 = vmatprep.subr.mxu0 %v2403
    %2848 = vmatpush1.msra.mxu0 %v2402
    %2849 = vmatprep.subr.mxu0 %v2435
    %2850 = vmatpush1.msra.mxu0 %v2434
    %2851 = vmatprep.subr.mxu0 %v2467
    %2852 = vmatpush1.msra.mxu0 %v2466
    %2853 = vmatprep.subr.mxu0 %v2499
    %2854 = vmatpush1.msra.mxu0 %v2498
    %2855 = vmatprep.subr.mxu0 %v2531
    %2856 = vmatpush1.msra.mxu0 %v2530
    %2857 = vmatprep.subr.mxu0 %v2563
    %2858 = vmatpush1.msra.mxu0 %v2562
    %2859 = vmatprep.subr.mxu0 %v2595
    %2860 = vmatpush1.msra.mxu0 %v2594
    %2861 = vmatprep.subr.mxu0 %v2627
    %2862 = vmatpush1.msra.mxu0 %v2626
    %2863 = vmatprep.subr.mxu0 %v2209
    %2864 = vmatpush1.msra.mxu0 %v2208
    %2865 = vmatprep.subr.mxu0 %v2659
    %2866 = vmatpush1.msra.mxu0 %v2658
    %2867 = vmatprep.subr.mxu0 %v2691
    %2868 = vmatpush1.msra.mxu0 %v2690
    %2869 = vmatprep.subr.mxu0 %v2723
    %2870 = vmatpush1.msra.mxu0 %v2722
    %2871 = vmatprep.subr.mxu0 %v2755
    %2872 = vmatpush1.msra.mxu0 %v2754
    %2873 = vmatprep.subr.mxu0 %v2763
    %2874 = vmatpush1.msra.mxu0 %v2762
    %2875 = vmatprep.subr.mxu0 %v2771
    %2876 = vmatpush1.msra.mxu0 %v2770
    %2877 = vmatprep.subr.mxu0 %v2779
    %2878 = vmatpush1.msra.mxu0 %v2778
    %2879 = vmatprep.subr.mxu0 %v2787
    %2880 = vmatpush1.msra.mxu0 %v2786
    %2881 = vmatprep.subr.mxu0 %v2795
    %2882 = vmatpush1.msra.mxu0 %v2794
    %2883 = vmatprep.subr.mxu0 %v2803
    %2884 = vmatpush1.msra.mxu0 %v2802
    %2885 = vmatprep.subr.mxu0 %v2811
    %2886 = vmatpush1.msra.mxu0 %v2810
    %2887 = vmatprep.subr.mxu0 %v2819
    %2888 = vmatpush1.msra.mxu0 %v2818
    %2889 = vmatprep.subr.mxu0 %v2827
    %2890 = vmatpush1.msra.mxu0 %v2826
    %2891 = vmatprep.subr.mxu0 0.0
    %2892 = vmatpush1.msra.mxu0 0.0
    %2893 = vmatprep.subr.mxu0 0.0
    %2894 = vmatpush1.msra.mxu0 0.0
    %2895 = vmatprep.subr.mxu0 0.0
    %2896 = vmatpush1.msra.mxu0 0.0
    %2897 = vmatprep.subr.mxu0 0.0
    %2898 = vmatpush1.msra.mxu0 0.0
    %2899 = vmatprep.subr.mxu0 0.0
    %2900 = vmatpush1.msra.mxu0 0.0
    %2901 = vmatprep.mubr.f32.mxu0 %v2835
    %2902 = vmatmul.mubr.f32.gmra.mrb[0].mxu0 %v2216
    %v2903 = vpop.f32.mrb[0].mxu0
    %v2904 = vadd.f32 0.0, %v2903
    %v2905 = vpop.f32.mrb[0].mxu0
    %v2906 = vadd.f32 0.0, %v2905
    %2907 = vdwg.mxu0
    %2908 = vmatprep.subr.mxu0 %v2245
    %2909 = vmatpush1.msra.mxu0 %v2244
    %2910 = vmatprep.subr.mxu0 %v2277
    %2911 = vmatpush1.msra.mxu0 %v2276
    %2912 = vmatprep.subr.mxu0 %v2309
    %2913 = vmatpush1.msra.mxu0 %v2308
    %2914 = vmatprep.subr.mxu0 %v2341
    %2915 = vmatpush1.msra.mxu0 %v2340
    %2916 = vmatprep.subr.mxu0 %v2373
    %2917 = vmatpush1.msra.mxu0 %v2372
    %2918 = vmatprep.subr.mxu0 %v2405
    %2919 = vmatpush1.msra.mxu0 %v2404
    %2920 = vmatprep.subr.mxu0 %v2437
    %2921 = vmatpush1.msra.mxu0 %v2436
    %2922 = vmatprep.subr.mxu0 %v2469
    %2923 = vmatpush1.msra.mxu0 %v2468
    %2924 = vmatprep.subr.mxu0 %v2501
    %2925 = vmatpush1.msra.mxu0 %v2500
    %2926 = vmatprep.subr.mxu0 %v2533
    %2927 = vmatpush1.msra.mxu0 %v2532
    %2928 = vmatprep.subr.mxu0 %v2565
    %2929 = vmatpush1.msra.mxu0 %v2564
    %2930 = vmatprep.subr.mxu0 %v2597
    %2931 = vmatpush1.msra.mxu0 %v2596
    %2932 = vmatprep.subr.mxu0 %v2629
    %2933 = vmatpush1.msra.mxu0 %v2628
    %2934 = vmatprep.subr.mxu0 %v2211
    %2935 = vmatpush1.msra.mxu0 %v2210
    %2936 = vmatprep.subr.mxu0 %v2661
    %2937 = vmatpush1.msra.mxu0 %v2660
    %2938 = vmatprep.subr.mxu0 %v2693
    %2939 = vmatpush1.msra.mxu0 %v2692
    %2940 = vmatprep.subr.mxu0 %v2725
    %2941 = vmatpush1.msra.mxu0 %v2724
    %2942 = vmatprep.subr.mxu0 %v2757
    %2943 = vmatpush1.msra.mxu0 %v2756
    %2944 = vmatprep.subr.mxu0 %v2765
    %2945 = vmatpush1.msra.mxu0 %v2764
    %2946 = vmatprep.subr.mxu0 %v2773
    %2947 = vmatpush1.msra.mxu0 %v2772
    %2948 = vmatprep.subr.mxu0 %v2781
    %2949 = vmatpush1.msra.mxu0 %v2780
    %2950 = vmatprep.subr.mxu0 %v2789
    %2951 = vmatpush1.msra.mxu0 %v2788
    %2952 = vmatprep.subr.mxu0 %v2797
    %2953 = vmatpush1.msra.mxu0 %v2796
    %2954 = vmatprep.subr.mxu0 %v2805
    %2955 = vmatpush1.msra.mxu0 %v2804
    %2956 = vmatprep.subr.mxu0 %v2813
    %2957 = vmatpush1.msra.mxu0 %v2812
    %2958 = vmatprep.subr.mxu0 %v2821
    %2959 = vmatpush1.msra.mxu0 %v2820
    %2960 = vmatprep.subr.mxu0 %v2829
    %2961 = vmatpush1.msra.mxu0 %v2828
    %2962 = vmatprep.subr.mxu0 0.0
    %2963 = vmatpush1.msra.mxu0 0.0
    %2964 = vmatprep.subr.mxu0 0.0
    %2965 = vmatpush1.msra.mxu0 0.0
    %2966 = vmatprep.subr.mxu0 0.0
    %2967 = vmatpush1.msra.mxu0 0.0
    %2968 = vmatprep.subr.mxu0 0.0
    %2969 = vmatpush1.msra.mxu0 0.0
    %2970 = vmatprep.subr.mxu0 0.0
    %2971 = vmatpush1.msra.mxu0 0.0
    %2972 = vmatprep.mubr.f32.mxu0 %v2835
    %2973 = vmatmul.mubr.f32.gmra.mrb[0].mxu0 %v2216
    %v2974 = vpop.f32.mrb[0].mxu0
    %v2975 = vadd.f32 0.0, %v2974
    %v2976 = vpop.f32.mrb[0].mxu0
    %v2977 = vadd.f32 0.0, %v2976
    %2978 = vdwg.mxu0
    %2979 = vmatprep.subr.mxu0 %v2247
    %2980 = vmatpush1.msra.mxu0 %v2246
    %2981 = vmatprep.subr.mxu0 %v2279
    %2982 = vmatpush1.msra.mxu0 %v2278
    %2983 = vmatprep.subr.mxu0 %v2311
    %2984 = vmatpush1.msra.mxu0 %v2310
    %2985 = vmatprep.subr.mxu0 %v2343
    %2986 = vmatpush1.msra.mxu0 %v2342
    %2987 = vmatprep.subr.mxu0 %v2375
    %2988 = vmatpush1.msra.mxu0 %v2374
    %2989 = vmatprep.subr.mxu0 %v2407
    %2990 = vmatpush1.msra.mxu0 %v2406
    %2991 = vmatprep.subr.mxu0 %v2439
    %2992 = vmatpush1.msra.mxu0 %v2438
    %2993 = vmatprep.subr.mxu0 %v2471
    %2994 = vmatpush1.msra.mxu0 %v2470
    %2995 = vmatprep.subr.mxu0 %v2503
    %2996 = vmatpush1.msra.mxu0 %v2502
    %2997 = vmatprep.subr.mxu0 %v2535
    %2998 = vmatpush1.msra.mxu0 %v2534
    %2999 = vmatprep.subr.mxu0 %v2567
    %3000 = vmatpush1.msra.mxu0 %v2566
    %3001 = vmatprep.subr.mxu0 %v2599
    %3002 = vmatpush1.msra.mxu0 %v2598
    %3003 = vmatprep.subr.mxu0 %v2631
    %3004 = vmatpush1.msra.mxu0 %v2630
    %3005 = vmatprep.subr.mxu0 %v2213
    %3006 = vmatpush1.msra.mxu0 %v2212
    %3007 = vmatprep.subr.mxu0 %v2663
    %3008 = vmatpush1.msra.mxu0 %v2662
    %3009 = vmatprep.subr.mxu0 %v2695
    %3010 = vmatpush1.msra.mxu0 %v2694
    %3011 = vmatprep.subr.mxu0 %v2727
    %3012 = vmatpush1.msra.mxu0 %v2726
    %3013 = vmatprep.subr.mxu0 %v2759
    %3014 = vmatpush1.msra.mxu0 %v2758
    %3015 = vmatprep.subr.mxu0 %v2767
    %3016 = vmatpush1.msra.mxu0 %v2766
    %3017 = vmatprep.subr.mxu0 %v2775
    %3018 = vmatpush1.msra.mxu0 %v2774
    %3019 = vmatprep.subr.mxu0 %v2783
    %3020 = vmatpush1.msra.mxu0 %v2782
    %3021 = vmatprep.subr.mxu0 %v2791
    %3022 = vmatpush1.msra.mxu0 %v2790
    %3023 = vmatprep.subr.mxu0 %v2799
    %3024 = vmatpush1.msra.mxu0 %v2798
    %3025 = vmatprep.subr.mxu0 %v2807
    %3026 = vmatpush1.msra.mxu0 %v2806
    %3027 = vmatprep.subr.mxu0 %v2815
    %3028 = vmatpush1.msra.mxu0 %v2814
    %3029 = vmatprep.subr.mxu0 %v2823
    %3030 = vmatpush1.msra.mxu0 %v2822
    %3031 = vmatprep.subr.mxu0 %v2831
    %3032 = vmatpush1.msra.mxu0 %v2830
    %3033 = vmatprep.subr.mxu0 0.0
    %3034 = vmatpush1.msra.mxu0 0.0
    %3035 = vmatprep.subr.mxu0 0.0
    %3036 = vmatpush1.msra.mxu0 0.0
    %3037 = vmatprep.subr.mxu0 0.0
    %3038 = vmatpush1.msra.mxu0 0.0
    %3039 = vmatprep.subr.mxu0 0.0
    %3040 = vmatpush1.msra.mxu0 0.0
    %3041 = vmatprep.subr.mxu0 0.0
    %3042 = vmatpush1.msra.mxu0 0.0
    %3043 = vmatprep.mubr.f32.mxu0 %v2835
    %3044 = vmatmul.mubr.f32.gmra.mrb[0].mxu0 %v2216
    %v3045 = vpop.f32.mrb[0].mxu0
    %v3046 = vadd.f32 0.0, %v3045
    %v3047 = vpop.f32.mrb[0].mxu0
    %v3048 = vadd.f32 0.0, %v3047
    %3049 = vdwg.mxu0
    %3050 = vmatprep.subr.mxu0 %v2249
    %3051 = vmatpush1.msra.mxu0 %v2248
    %3052 = vmatprep.subr.mxu0 %v2281
    %3053 = vmatpush1.msra.mxu0 %v2280
    %3054 = vmatprep.subr.mxu0 %v2313
    %3055 = vmatpush1.msra.mxu0 %v2312
    %3056 = vmatprep.subr.mxu0 %v2345
    %3057 = vmatpush1.msra.mxu0 %v2344
    %3058 = vmatprep.subr.mxu0 %v2377
    %3059 = vmatpush1.msra.mxu0 %v2376
    %3060 = vmatprep.subr.mxu0 %v2409
    %3061 = vmatpush1.msra.mxu0 %v2408
    %3062 = vmatprep.subr.mxu0 %v2441
    %3063 = vmatpush1.msra.mxu0 %v2440
    %3064 = vmatprep.subr.mxu0 %v2473
    %3065 = vmatpush1.msra.mxu0 %v2472
    %3066 = vmatprep.subr.mxu0 %v2505
    %3067 = vmatpush1.msra.mxu0 %v2504
    %3068 = vmatprep.subr.mxu0 %v2537
    %3069 = vmatpush1.msra.mxu0 %v2536
    %3070 = vmatprep.subr.mxu0 %v2569
    %3071 = vmatpush1.msra.mxu0 %v2568
    %3072 = vmatprep.subr.mxu0 %v2601
    %3073 = vmatpush1.msra.mxu0 %v2600
    %3074 = vmatprep.subr.mxu0 %v2633
    %3075 = vmatpush1.msra.mxu0 %v2632
    %3076 = vmatprep.subr.mxu0 %v2215
    %3077 = vmatpush1.msra.mxu0 %v2214
    %3078 = vmatprep.subr.mxu0 %v2665
    %3079 = vmatpush1.msra.mxu0 %v2664
    %3080 = vmatprep.subr.mxu0 %v2697
    %3081 = vmatpush1.msra.mxu0 %v2696
    %3082 = vmatprep.subr.mxu0 %v2729
    %3083 = vmatpush1.msra.mxu0 %v2728
    %3084 = vmatprep.subr.mxu0 %v2761
    %3085 = vmatpush1.msra.mxu0 %v2760
    %3086 = vmatprep.subr.mxu0 %v2769
    %3087 = vmatpush1.msra.mxu0 %v2768
    %3088 = vmatprep.subr.mxu0 %v2777
    %3089 = vmatpush1.msra.mxu0 %v2776
    %3090 = vmatprep.subr.mxu0 %v2785
    %3091 = vmatpush1.msra.mxu0 %v2784
    %3092 = vmatprep.subr.mxu0 %v2793
    %3093 = vmatpush1.msra.mxu0 %v2792
    %3094 = vmatprep.subr.mxu0 %v2801
    %3095 = vmatpush1.msra.mxu0 %v2800
    %3096 = vmatprep.subr.mxu0 %v2809
    %3097 = vmatpush1.msra.mxu0 %v2808
    %3098 = vmatprep.subr.mxu0 %v2817
    %3099 = vmatpush1.msra.mxu0 %v2816
    %3100 = vmatprep.subr.mxu0 %v2825
    %3101 = vmatpush1.msra.mxu0 %v2824
    %3102 = vmatprep.subr.mxu0 %v2833
    %3103 = vmatpush1.msra.mxu0 %v2832
    %3104 = vmatprep.subr.mxu0 0.0
    %3105 = vmatpush1.msra.mxu0 0.0
    %3106 = vmatprep.subr.mxu0 0.0
    %3107 = vmatpush1.msra.mxu0 0.0
    %3108 = vmatprep.subr.mxu0 0.0
    %3109 = vmatpush1.msra.mxu0 0.0
    %3110 = vmatprep.subr.mxu0 0.0
    %3111 = vmatpush1.msra.mxu0 0.0
    %3112 = vmatprep.subr.mxu0 0.0
    %3113 = vmatpush1.msra.mxu0 0.0
    %3114 = vmatprep.mubr.f32.mxu0 %v2835
    %3115 = vmatmul.mubr.f32.gmra.mrb[0].mxu0 %v2216
    %v3116 = vpop.f32.mrb[0].mxu0
    %v3117 = vadd.f32 0.0, %v3116
    %v3118 = vpop.f32.mrb[0].mxu0
    %v3119 = vadd.f32 0.0, %v3118
    %3120 = vdwg.mxu0
    %v3121 = vld [vmem:[#allocation5] sm:$0xff]
    %vm3122 = vcmask 64512
    %v3124 = vsel %vm3122, %v3121, 0
    %3126 = vmatprep.subr.mxu0 %v84
    %3127 = vmatpush1.msra.mxu0 %v83
    %3128 = vmatprep.subr.mxu0 0.0
    %3129 = vmatpush1.msra.mxu0 0.0
    %3130 = vmatprep.subr.mxu0 0.0
    %3131 = vmatpush1.msra.mxu0 0.0
    %3132 = vmatprep.subr.mxu0 0.0
    %3133 = vmatpush1.msra.mxu0 0.0
    %3134 = vmatprep.subr.mxu0 0.0
    %3135 = vmatpush1.msra.mxu0 0.0
    %3136 = vmatprep.subr.mxu0 0.0
    %3137 = vmatpush1.msra.mxu0 0.0
    %3138 = vmatprep.subr.mxu0 0.0
    %3139 = vmatpush1.msra.mxu0 0.0
    %3140 = vmatprep.subr.mxu0 0.0
    %3141 = vmatpush1.msra.mxu0 0.0
    %3142 = vmatprep.subr.mxu0 0.0
    %3143 = vmatpush1.msra.mxu0 0.0
    %3144 = vmatprep.subr.mxu0 0.0
    %3145 = vmatpush1.msra.mxu0 0.0
    %3146 = vmatprep.subr.mxu0 0.0
    %3147 = vmatpush1.msra.mxu0 0.0
    %3148 = vmatprep.subr.mxu0 0.0
    %3149 = vmatpush1.msra.mxu0 0.0
    %3150 = vmatprep.subr.mxu0 0.0
    %3151 = vmatpush1.msra.mxu0 0.0
    %3152 = vmatprep.subr.mxu0 0.0
    %3153 = vmatpush1.msra.mxu0 0.0
    %3154 = vmatprep.subr.mxu0 0.0
    %3155 = vmatpush1.msra.mxu0 0.0
    %3156 = vmatprep.subr.mxu0 0.0
    %3157 = vmatpush1.msra.mxu0 0.0
    %3158 = vmatprep.subr.mxu0 0.0
    %3159 = vmatpush1.msra.mxu0 0.0
    %3160 = vmatprep.subr.mxu0 0.0
    %3161 = vmatpush1.msra.mxu0 0.0
    %3162 = vmatprep.subr.mxu0 0.0
    %3163 = vmatpush1.msra.mxu0 0.0
    %3164 = vmatprep.subr.mxu0 0.0
    %3165 = vmatpush1.msra.mxu0 0.0
    %3166 = vmatprep.subr.mxu0 0.0
    %3167 = vmatpush1.msra.mxu0 0.0
    %3168 = vmatprep.subr.mxu0 0.0
    %3169 = vmatpush1.msra.mxu0 0.0
    %3170 = vmatprep.subr.mxu0 0.0
    %3171 = vmatpush1.msra.mxu0 0.0
    %3172 = vmatprep.subr.mxu0 0.0
    %3173 = vmatpush1.msra.mxu0 0.0
    %3174 = vmatprep.subr.mxu0 0.0
    %3175 = vmatpush1.msra.mxu0 0.0
    %3176 = vmatprep.subr.mxu0 0.0
    %3177 = vmatpush1.msra.mxu0 0.0
    %3178 = vmatprep.subr.mxu0 0.0
    %3179 = vmatpush1.msra.mxu0 0.0
    %3180 = vmatprep.subr.mxu0 0.0
    %3181 = vmatpush1.msra.mxu0 0.0
    %3182 = vmatprep.subr.mxu0 0.0
    %3183 = vmatpush1.msra.mxu0 0.0
    %3184 = vmatprep.subr.mxu0 0.0
    %3185 = vmatpush1.msra.mxu0 0.0
    %3186 = vmatprep.subr.mxu0 0.0
    %3187 = vmatpush1.msra.mxu0 0.0
    %3188 = vmatprep.subr.mxu0 0.0
    %3189 = vmatpush1.msra.mxu0 0.0
    %3190 = vmatprep.mubr.f32.mxu0 0.0
    %3191 = vmatmul.mubr.f32.gmra.mrb[0].mxu0 %v3124
    %v3192 = vpop.f32.mrb[0].mxu0
    %v3193 = vadd.f32 0.0, %v3192
    %v3194 = vpop.f32.mrb[0].mxu0
    %v3195 = vadd.f32 0.0, %v3194
    %3196 = vdwg.mxu0
    %3197 = vmatprep.subr.mxu0 %v86
    %3198 = vmatpush1.msra.mxu0 %v85
    %3199 = vmatprep.subr.mxu0 0.0
    %3200 = vmatpush1.msra.mxu0 0.0
    %3201 = vmatprep.subr.mxu0 0.0
    %3202 = vmatpush1.msra.mxu0 0.0
    %3203 = vmatprep.subr.mxu0 0.0
    %3204 = vmatpush1.msra.mxu0 0.0
    %3205 = vmatprep.subr.mxu0 0.0
    %3206 = vmatpush1.msra.mxu0 0.0
    %3207 = vmatprep.subr.mxu0 0.0
    %3208 = vmatpush1.msra.mxu0 0.0
    %3209 = vmatprep.subr.mxu0 0.0
    %3210 = vmatpush1.msra.mxu0 0.0
    %3211 = vmatprep.subr.mxu0 0.0
    %3212 = vmatpush1.msra.mxu0 0.0
    %3213 = vmatprep.subr.mxu0 0.0
    %3214 = vmatpush1.msra.mxu0 0.0
    %3215 = vmatprep.subr.mxu0 0.0
    %3216 = vmatpush1.msra.mxu0 0.0
    %3217 = vmatprep.subr.mxu0 0.0
    %3218 = vmatpush1.msra.mxu0 0.0
    %3219 = vmatprep.subr.mxu0 0.0
    %3220 = vmatpush1.msra.mxu0 0.0
    %3221 = vmatprep.subr.mxu0 0.0
    %3222 = vmatpush1.msra.mxu0 0.0
    %3223 = vmatprep.subr.mxu0 0.0
    %3224 = vmatpush1.msra.mxu0 0.0
    %3225 = vmatprep.subr.mxu0 0.0
    %3226 = vmatpush1.msra.mxu0 0.0
    %3227 = vmatprep.subr.mxu0 0.0
    %3228 = vmatpush1.msra.mxu0 0.0
    %3229 = vmatprep.subr.mxu0 0.0
    %3230 = vmatpush1.msra.mxu0 0.0
    %3231 = vmatprep.subr.mxu0 0.0
    %3232 = vmatpush1.msra.mxu0 0.0
    %3233 = vmatprep.subr.mxu0 0.0
    %3234 = vmatpush1.msra.mxu0 0.0
    %3235 = vmatprep.subr.mxu0 0.0
    %3236 = vmatpush1.msra.mxu0 0.0
    %3237 = vmatprep.subr.mxu0 0.0
    %3238 = vmatpush1.msra.mxu0 0.0
    %3239 = vmatprep.subr.mxu0 0.0
    %3240 = vmatpush1.msra.mxu0 0.0
    %3241 = vmatprep.subr.mxu0 0.0
    %3242 = vmatpush1.msra.mxu0 0.0
    %3243 = vmatprep.subr.mxu0 0.0
    %3244 = vmatpush1.msra.mxu0 0.0
    %3245 = vmatprep.subr.mxu0 0.0
    %3246 = vmatpush1.msra.mxu0 0.0
    %3247 = vmatprep.subr.mxu0 0.0
    %3248 = vmatpush1.msra.mxu0 0.0
    %3249 = vmatprep.subr.mxu0 0.0
    %3250 = vmatpush1.msra.mxu0 0.0
    %3251 = vmatprep.subr.mxu0 0.0
    %3252 = vmatpush1.msra.mxu0 0.0
    %3253 = vmatprep.subr.mxu0 0.0
    %3254 = vmatpush1.msra.mxu0 0.0
    %3255 = vmatprep.subr.mxu0 0.0
    %3256 = vmatpush1.msra.mxu0 0.0
    %3257 = vmatprep.subr.mxu0 0.0
    %3258 = vmatpush1.msra.mxu0 0.0
    %3259 = vmatprep.subr.mxu0 0.0
    %3260 = vmatpush1.msra.mxu0 0.0
    %3261 = vmatprep.mubr.f32.mxu0 0.0
    %3262 = vmatmul.mubr.f32.gmra.mrb[0].mxu0 %v3124
    %v3263 = vpop.f32.mrb[0].mxu0
    %v3264 = vadd.f32 0.0, %v3263
    %v3265 = vpop.f32.mrb[0].mxu0
    %v3266 = vadd.f32 0.0, %v3265
    %3267 = vdwg.mxu0
    %3268 = vmatprep.subr.mxu0 %v88
    %3269 = vmatpush1.msra.mxu0 %v87
    %3270 = vmatprep.subr.mxu0 0.0
    %3271 = vmatpush1.msra.mxu0 0.0
    %3272 = vmatprep.subr.mxu0 0.0
    %3273 = vmatpush1.msra.mxu0 0.0
    %3274 = vmatprep.subr.mxu0 0.0
    %3275 = vmatpush1.msra.mxu0 0.0
    %3276 = vmatprep.subr.mxu0 0.0
    %3277 = vmatpush1.msra.mxu0 0.0
    %3278 = vmatprep.subr.mxu0 0.0
    %3279 = vmatpush1.msra.mxu0 0.0
    %3280 = vmatprep.subr.mxu0 0.0
    %3281 = vmatpush1.msra.mxu0 0.0
    %3282 = vmatprep.subr.mxu0 0.0
    %3283 = vmatpush1.msra.mxu0 0.0
    %3284 = vmatprep.subr.mxu0 0.0
    %3285 = vmatpush1.msra.mxu0 0.0
    %3286 = vmatprep.subr.mxu0 0.0
    %3287 = vmatpush1.msra.mxu0 0.0
    %3288 = vmatprep.subr.mxu0 0.0
    %3289 = vmatpush1.msra.mxu0 0.0
    %3290 = vmatprep.subr.mxu0 0.0
    %3291 = vmatpush1.msra.mxu0 0.0
    %3292 = vmatprep.subr.mxu0 0.0
    %3293 = vmatpush1.msra.mxu0 0.0
    %3294 = vmatprep.subr.mxu0 0.0
    %3295 = vmatpush1.msra.mxu0 0.0
    %3296 = vmatprep.subr.mxu0 0.0
    %3297 = vmatpush1.msra.mxu0 0.0
    %3298 = vmatprep.subr.mxu0 0.0
    %3299 = vmatpush1.msra.mxu0 0.0
    %3300 = vmatprep.subr.mxu0 0.0
    %3301 = vmatpush1.msra.mxu0 0.0
    %3302 = vmatprep.subr.mxu0 0.0
    %3303 = vmatpush1.msra.mxu0 0.0
    %3304 = vmatprep.subr.mxu0 0.0
    %3305 = vmatpush1.msra.mxu0 0.0
    %3306 = vmatprep.subr.mxu0 0.0
    %3307 = vmatpush1.msra.mxu0 0.0
    %3308 = vmatprep.subr.mxu0 0.0
    %3309 = vmatpush1.msra.mxu0 0.0
    %3310 = vmatprep.subr.mxu0 0.0
    %3311 = vmatpush1.msra.mxu0 0.0
    %3312 = vmatprep.subr.mxu0 0.0
    %3313 = vmatpush1.msra.mxu0 0.0
    %3314 = vmatprep.subr.mxu0 0.0
    %3315 = vmatpush1.msra.mxu0 0.0
    %3316 = vmatprep.subr.mxu0 0.0
    %3317 = vmatpush1.msra.mxu0 0.0
    %3318 = vmatprep.subr.mxu0 0.0
    %3319 = vmatpush1.msra.mxu0 0.0
    %3320 = vmatprep.subr.mxu0 0.0
    %3321 = vmatpush1.msra.mxu0 0.0
    %3322 = vmatprep.subr.mxu0 0.0
    %3323 = vmatpush1.msra.mxu0 0.0
    %3324 = vmatprep.subr.mxu0 0.0
    %3325 = vmatpush1.msra.mxu0 0.0
    %3326 = vmatprep.subr.mxu0 0.0
    %3327 = vmatpush1.msra.mxu0 0.0
    %3328 = vmatprep.subr.mxu0 0.0
    %3329 = vmatpush1.msra.mxu0 0.0
    %3330 = vmatprep.subr.mxu0 0.0
    %3331 = vmatpush1.msra.mxu0 0.0
    %3332 = vmatprep.mubr.f32.mxu0 0.0
    %3333 = vmatmul.mubr.f32.gmra.mrb[0].mxu0 %v3124
    %v3334 = vpop.f32.mrb[0].mxu0
    %v3335 = vadd.f32 0.0, %v3334
    %v3336 = vpop.f32.mrb[0].mxu0
    %v3337 = vadd.f32 0.0, %v3336
    %3338 = vdwg.mxu0
    %3339 = vmatprep.subr.mxu0 %v90
    %3340 = vmatpush1.msra.mxu0 %v89
    %3341 = vmatprep.subr.mxu0 0.0
    %3342 = vmatpush1.msra.mxu0 0.0
    %3343 = vmatprep.subr.mxu0 0.0
    %3344 = vmatpush1.msra.mxu0 0.0
    %3345 = vmatprep.subr.mxu0 0.0
    %3346 = vmatpush1.msra.mxu0 0.0
    %3347 = vmatprep.subr.mxu0 0.0
    %3348 = vmatpush1.msra.mxu0 0.0
    %3349 = vmatprep.subr.mxu0 0.0
    %3350 = vmatpush1.msra.mxu0 0.0
    %3351 = vmatprep.subr.mxu0 0.0
    %3352 = vmatpush1.msra.mxu0 0.0
    %3353 = vmatprep.subr.mxu0 0.0
    %3354 = vmatpush1.msra.mxu0 0.0
    %3355 = vmatprep.subr.mxu0 0.0
    %3356 = vmatpush1.msra.mxu0 0.0
    %3357 = vmatprep.subr.mxu0 0.0
    %3358 = vmatpush1.msra.mxu0 0.0
    %3359 = vmatprep.subr.mxu0 0.0
    %3360 = vmatpush1.msra.mxu0 0.0
    %3361 = vmatprep.subr.mxu0 0.0
    %3362 = vmatpush1.msra.mxu0 0.0
    %3363 = vmatprep.subr.mxu0 0.0
    %3364 = vmatpush1.msra.mxu0 0.0
    %3365 = vmatprep.subr.mxu0 0.0
    %3366 = vmatpush1.msra.mxu0 0.0
    %3367 = vmatprep.subr.mxu0 0.0
    %3368 = vmatpush1.msra.mxu0 0.0
    %3369 = vmatprep.subr.mxu0 0.0
    %3370 = vmatpush1.msra.mxu0 0.0
    %3371 = vmatprep.subr.mxu0 0.0
    %3372 = vmatpush1.msra.mxu0 0.0
    %3373 = vmatprep.subr.mxu0 0.0
    %3374 = vmatpush1.msra.mxu0 0.0
    %3375 = vmatprep.subr.mxu0 0.0
    %3376 = vmatpush1.msra.mxu0 0.0
    %3377 = vmatprep.subr.mxu0 0.0
    %3378 = vmatpush1.msra.mxu0 0.0
    %3379 = vmatprep.subr.mxu0 0.0
    %3380 = vmatpush1.msra.mxu0 0.0
    %3381 = vmatprep.subr.mxu0 0.0
    %3382 = vmatpush1.msra.mxu0 0.0
    %3383 = vmatprep.subr.mxu0 0.0
    %3384 = vmatpush1.msra.mxu0 0.0
    %3385 = vmatprep.subr.mxu0 0.0
    %3386 = vmatpush1.msra.mxu0 0.0
    %3387 = vmatprep.subr.mxu0 0.0
    %3388 = vmatpush1.msra.mxu0 0.0
    %3389 = vmatprep.subr.mxu0 0.0
    %3390 = vmatpush1.msra.mxu0 0.0
    %3391 = vmatprep.subr.mxu0 0.0
    %3392 = vmatpush1.msra.mxu0 0.0
    %3393 = vmatprep.subr.mxu0 0.0
    %3394 = vmatpush1.msra.mxu0 0.0
    %3395 = vmatprep.subr.mxu0 0.0
    %3396 = vmatpush1.msra.mxu0 0.0
    %3397 = vmatprep.subr.mxu0 0.0
    %3398 = vmatpush1.msra.mxu0 0.0
    %3399 = vmatprep.subr.mxu0 0.0
    %3400 = vmatpush1.msra.mxu0 0.0
    %3401 = vmatprep.subr.mxu0 0.0
    %3402 = vmatpush1.msra.mxu0 0.0
    %3403 = vmatprep.mubr.f32.mxu0 0.0
    %3404 = vmatmul.mubr.f32.gmra.mrb[0].mxu0 %v3124
    %v3405 = vpop.f32.mrb[0].mxu0
    %v3406 = vadd.f32 0.0, %v3405
    %v3407 = vpop.f32.mrb[0].mxu0
    %v3408 = vadd.f32 0.0, %v3407
    %3409 = vdwg.mxu0
    %v3410 = vld [vmem:[%s9] sm:$0xff]
    %v3411 = vld [vmem:[%s10] sm:$0xff]
    %v3412 = vadd.f32 %v3193, %v3195
    %v3413 = vadd.f32 %v3412, %v3264
    %v3414 = vadd.f32 %v3413, %v3266
    %v3415 = vadd.f32 %v3414, %v3335
    %v3416 = vadd.f32 %v3415, %v3337
    %v3417 = vadd.f32 %v3416, %v3406
    %v3418 = vadd.f32 %v3417, %v3408
    %3419 = vadd.xlane.f32.xlu0 %v3418
    %v3420 = vpop.xlane.xlu0 %3419
    %v3421 = vmul.f32 %v3420, %v2144
    %v3422 = vsub.f32 %v3193, %v3421
    %v3423 = vsub.f32 %v3195, %v3421
    %v3424 = vsub.f32 %v3264, %v3421
    %v3425 = vsub.f32 %v3266, %v3421
    %v3426 = vsub.f32 %v3335, %v3421
    %v3427 = vsub.f32 %v3337, %v3421
    %v3428 = vsub.f32 %v3406, %v3421
    %v3429 = vsub.f32 %v3408, %v3421
    %v3430 = vmul.f32 %v3422, %v3422
    %v3431 = vmul.f32 %v3423, %v3423
    %v3432 = vmul.f32 %v3424, %v3424
    %v3433 = vmul.f32 %v3425, %v3425
    %v3434 = vmul.f32 %v3426, %v3426
    %v3435 = vmul.f32 %v3427, %v3427
    %v3436 = vmul.f32 %v3428, %v3428
    %v3437 = vmul.f32 %v3429, %v3429
    %v3438 = vadd.f32 %v3430, %v3431
    %v3439 = vadd.f32 %v3438, %v3432
    %v3440 = vadd.f32 %v3439, %v3433
    %v3441 = vadd.f32 %v3440, %v3434
    %v3442 = vadd.f32 %v3441, %v3435
    %v3443 = vadd.f32 %v3442, %v3436
    %v3444 = vadd.f32 %v3443, %v3437
    %3445 = vadd.xlane.f32.xlu0 %v3444
    %v3446 = vpop.xlane.xlu0 %3445
    %v3447 = vmul.f32 %v3446, %v2144
    %v3448 = vadd.f32 %v3447, 0.001
    %v3449 = vrsqrt.pop %v3448
    %v3450 = vmul.f32 %v3422, %v3449
    %v3451 = vmul.f32 %v3423, %v3449
    %v3452 = vmul.f32 %v3424, %v3449
    %v3453 = vmul.f32 %v3425, %v3449
    %v3454 = vmul.f32 %v3426, %v3449
    %v3455 = vmul.f32 %v3427, %v3449
    %v3456 = vmul.f32 %v3428, %v3449
    %v3457 = vmul.f32 %v3429, %v3449
    %3459 = vset.pattern.permute.xlu0 0
    %3460 = vperm.xlu0 %3459, %v3410
    %v3461 = vpop.permute.xlu0 %3460
    %v3463 = vmul.f32 %v3450, %v3461
    %v3464 = vmul.f32 %v3451, %v3461
    %v3465 = vmul.f32 %v3452, %v3461
    %v3466 = vmul.f32 %v3453, %v3461
    %v3467 = vmul.f32 %v3454, %v3461
    %v3468 = vmul.f32 %v3455, %v3461
    %v3469 = vmul.f32 %v3456, %v3461
    %v3470 = vmul.f32 %v3457, %v3461
    %3472 = vset.pattern.permute.xlu0 0
    %3473 = vperm.xlu0 %3472, %v3411
    %v3474 = vpop.permute.xlu0 %3473
    %v3476 = vadd.f32 %v3463, %v3474
    %v3477 = vadd.f32 %v3464, %v3474
    %v3478 = vadd.f32 %v3465, %v3474
    %v3479 = vadd.f32 %v3466, %v3474
    %v3480 = vadd.f32 %v3467, %v3474
    %v3481 = vadd.f32 %v3468, %v3474
    %v3482 = vadd.f32 %v3469, %v3474
    %v3483 = vadd.f32 %v3470, %v3474
    %v3484 = vld [vmem:[%s7] sm:$0xff]
    %v3485 = vld [vmem:[%s8] sm:$0xff]
    %v3486 = vadd.f32 %v2904, %v2906
    %v3487 = vadd.f32 %v3486, %v2975
    %v3488 = vadd.f32 %v3487, %v2977
    %v3489 = vadd.f32 %v3488, %v3046
    %v3490 = vadd.f32 %v3489, %v3048
    %v3491 = vadd.f32 %v3490, %v3117
    %v3492 = vadd.f32 %v3491, %v3119
    %3493 = vadd.xlane.f32.xlu0 %v3492
    %v3494 = vpop.xlane.xlu0 %3493
    %v3495 = vmul.f32 %v3494, %v2144
    %v3496 = vsub.f32 %v2904, %v3495
    %v3497 = vsub.f32 %v2906, %v3495
    %v3498 = vsub.f32 %v2975, %v3495
    %v3499 = vsub.f32 %v2977, %v3495
    %v3500 = vsub.f32 %v3046, %v3495
    %v3501 = vsub.f32 %v3048, %v3495
    %v3502 = vsub.f32 %v3117, %v3495
    %v3503 = vsub.f32 %v3119, %v3495
    %v3504 = vmul.f32 %v3496, %v3496
    %v3505 = vmul.f32 %v3497, %v3497
    %v3506 = vmul.f32 %v3498, %v3498
    %v3507 = vmul.f32 %v3499, %v3499
    %v3508 = vmul.f32 %v3500, %v3500
    %v3509 = vmul.f32 %v3501, %v3501
    %v3510 = vmul.f32 %v3502, %v3502
    %v3511 = vmul.f32 %v3503, %v3503
    %v3512 = vadd.f32 %v3504, %v3505
    %v3513 = vadd.f32 %v3512, %v3506
    %v3514 = vadd.f32 %v3513, %v3507
    %v3515 = vadd.f32 %v3514, %v3508
    %v3516 = vadd.f32 %v3515, %v3509
    %v3517 = vadd.f32 %v3516, %v3510
    %v3518 = vadd.f32 %v3517, %v3511
    %3519 = vadd.xlane.f32.xlu0 %v3518
    %v3520 = vpop.xlane.xlu0 %3519
    %v3521 = vmul.f32 %v3520, %v2144
    %v3522 = vadd.f32 %v3521, 0.001
    %v3523 = vrsqrt.pop %v3522
    %v3524 = vmul.f32 %v3496, %v3523
    %v3525 = vmul.f32 %v3497, %v3523
    %v3526 = vmul.f32 %v3498, %v3523
    %v3527 = vmul.f32 %v3499, %v3523
    %v3528 = vmul.f32 %v3500, %v3523
    %v3529 = vmul.f32 %v3501, %v3523
    %v3530 = vmul.f32 %v3502, %v3523
    %v3531 = vmul.f32 %v3503, %v3523
    %3533 = vset.pattern.permute.xlu0 0
    %3534 = vperm.xlu0 %3533, %v3484
    %v3535 = vpop.permute.xlu0 %3534
    %v3537 = vmul.f32 %v3524, %v3535
    %v3538 = vmul.f32 %v3525, %v3535
    %v3539 = vmul.f32 %v3526, %v3535
    %v3540 = vmul.f32 %v3527, %v3535
    %v3541 = vmul.f32 %v3528, %v3535
    %v3542 = vmul.f32 %v3529, %v3535
    %v3543 = vmul.f32 %v3530, %v3535
    %v3544 = vmul.f32 %v3531, %v3535
    %3546 = vset.pattern.permute.xlu0 0
    %3547 = vperm.xlu0 %3546, %v3485
    %v3548 = vpop.permute.xlu0 %3547
    %v3550 = vadd.f32 %v3537, %v3548
    %v3551 = vadd.f32 %v3538, %v3548
    %v3552 = vadd.f32 %v3539, %v3548
    %v3553 = vadd.f32 %v3540, %v3548
    %v3554 = vadd.f32 %v3541, %v3548
    %v3555 = vadd.f32 %v3542, %v3548
    %v3556 = vadd.f32 %v3543, %v3548
    %v3557 = vadd.f32 %v3544, %v3548
    %v3558 = vadd.f32 %v3550, %v3476
    %v3559 = vadd.f32 %v3551, %v3477
    %v3560 = vadd.f32 %v3552, %v3478
    %v3561 = vadd.f32 %v3553, %v3479
    %v3562 = vadd.f32 %v3554, %v3480
    %v3563 = vadd.f32 %v3555, %v3481
    %v3564 = vadd.f32 %v3556, %v3482
    %v3565 = vadd.f32 %v3557, %v3483
    %v3566 = vmax.f32 %v3558, 0.0
    %v3567 = vmax.f32 %v3559, 0.0
    %v3568 = vmax.f32 %v3560, 0.0
    %v3569 = vmax.f32 %v3561, 0.0
    %v3570 = vmax.f32 %v3562, 0.0
    %v3571 = vmax.f32 %v3563, 0.0
    %v3572 = vmax.f32 %v3564, 0.0
    %v3573 = vmax.f32 %v3565, 0.0
    %3574 = vst [vmem:[#allocation7] sm:$0xff] %v3566
    %3575 = vst [vmem:[#allocation7 + $0x8] sm:$0xff] %v3567
    %3576 = vst [vmem:[#allocation7 + $0x10] sm:$0xff] %v3568
    %3577 = vst [vmem:[#allocation7 + $0x18] sm:$0xff] %v3569
    %s3578 = scalar_lea.vmem [#allocation7], 32
    %3579 = vst [vmem:[%s3578] sm:$0xff] %v3570
    %3580 = vst [vmem:[%s3578 + $0x8] sm:$0xff] %v3571
    %3581 = vst [vmem:[%s3578 + $0x10] sm:$0xff] %v3572
    %3582 = vst [vmem:[%s3578 + $0x18] sm:$0xff] %v3573
    // Predicated region
    $region54: #{tpu_custom_call.1} parent=1 // pred_check
      _
    $region55: #{tpu_custom_call.1} parent=1 // pred_check_branch
      %3584 = sbr.rel (0) target = $region57
    $region56: #{tpu_custom_call.1} parent=1 // pred_region
      %s3586 = ssub.s32 1024, 1024
      %3587 = vsyncadd [#allocation4], %s3586
      %s3588 = sshll.u32 [#allocation7], 4
      %s3589 = int_to_ptr.vmem [resolvable:$true] %s3588
      %3594 = dma.vmem_to_hbm [thread:$0]  %s3589, 1024, %s11, [#allocation4], 512, 512, 32
    $region57: #{tpu_custom_call.1} parent=1 // pred_fallthru
      _
    // Predicated region
    $region58: #{tpu_custom_call.1} parent=1 // pred_check
      _
    $region59: #{tpu_custom_call.1} parent=1 // pred_check_branch
      %3596 = sbr.rel (0) target = $region61
    $region60: #{tpu_custom_call.1} parent=1 // pred_region
      %3597 = dma.done [#allocation4], 1024
    $region61: #{tpu_custom_call.1} parent=1 // pred_fallthru
      _
    %3598 = vsyncpa [#allocation3], 1
    %3599 = vsyncpa [#allocation6], 1
    %3600 = vsyncpa [#allocation4], 1

</llo_original>
